<compile_context>
chip_gen: v7x
topology: tpu7x:2x2x1
jax: 0.10.0
libtpu: 0.0.40
codegen_flags: <defaults>
</compile_context>

<pallas_src>
import math
from functools import partial

import jax
import jax.numpy as jnp
from jax.experimental import pallas as pl
from jax.experimental.pallas import tpu as pltpu

# ---------------- config (small, consistent with the module) ----------------
S = 16          # sequence length
B = 2           # batch
D = 32          # d_model
NHEAD = 4       # attention heads
HEAD_DIM = D // NHEAD
FF = 64         # dim_feedforward
NUM_LAYERS = 2
EPS = 1e-5
N = S * B       # packed token rows
NEG_INF = -1e30
USE_APPROX_RECIP = True   # set False for exact softmax reciprocal (tighter match)


# --------------------------- Pallas kernel ----------------------------------
def _layer_norm(z, w, b):
    mu = jnp.mean(z, axis=-1, keepdims=True)
    var = jnp.mean((z - mu) * (z - mu), axis=-1, keepdims=True)
    return (z - mu) * jax.lax.rsqrt(var + EPS) * w + b


def encoder_stack_kernel(x_ref, pos_ref,
                         wqk_ref, bqk_ref, wv_ref, bv_ref,
                         wo_ref, bo_ref, ln1w_ref, ln1b_ref,
                         w1_ref, b1_ref, w2_ref, b2_ref,
                         ln2w_ref, ln2b_ref,
                         fnw_ref, fnb_ref,
                         o_ref,
                         *, num_layers, use_final_norm, approx_recip):
    x = x_ref[...].astype(jnp.float32)      # (N, D) packed tokens, f32 master copy
    pos = pos_ref[...].astype(jnp.float32)  # (N, D)

    # Same-batch additive mask for the packed (S*B, S*B) score matrix, generated
    # in-kernel (no HBM input / DMA).  Row r is token (s = r // B, b = r % B).
    row_b = jax.lax.broadcasted_iota(jnp.int32, (N, N), 0) % B
    col_b = jax.lax.broadcasted_iota(jnp.int32, (N, N), 1) % B
    bias = jnp.where(row_b == col_b, 0.0, NEG_INF).astype(jnp.float32)

    for l in range(num_layers):             # static unroll; all params VMEM-resident
        # Fused Q|K projection; 1/sqrt(head_dim) already folded into the Q half.
        qk_in = (x + pos).astype(jnp.bfloat16)
        qk = jnp.dot(qk_in, wqk_ref[l],
                     preferred_element_type=jnp.float32) + bqk_ref[l]      # (N, 2D) f32
        v = jnp.dot(x.astype(jnp.bfloat16), wv_ref[l],
                    preferred_element_type=jnp.float32) + bv_ref[l]        # (N, D) f32

        ctx_parts = []
        for h in range(NHEAD):              # static head loop (D=32: one lane tile)
            lo = h * HEAD_DIM
            qh = qk[:, lo:lo + HEAD_DIM].astype(jnp.bfloat16)              # (N, hd)
            kh = qk[:, D + lo:D + lo + HEAD_DIM].astype(jnp.bfloat16)      # (N, hd)
            vh = v[:, lo:lo + HEAD_DIM].astype(jnp.bfloat16)               # (N, hd)
            s = jax.lax.dot_general(qh, kh, (((1,), (1,)), ((), ())),
                                    preferred_element_type=jnp.float32)    # (N, N) f32
            s = s + bias
            # Keep the max subtraction: with the -1e30 cross-batch bias it keeps
            # exp() finite and masked entries exactly zero.
            s = s - jnp.max(s, axis=-1, keepdims=True)
            p = jnp.exp(s)
            denom = jnp.sum(p, axis=-1, keepdims=True)
            if approx_recip:
                p = p * pl.reciprocal(denom, approx=True)
            else:
                p = p / denom
            ctx_parts.append(jnp.dot(p.astype(jnp.bfloat16), vh,
                                     preferred_element_type=jnp.float32))  # (N, hd)

        # Single K=D output projection instead of NHEAD K=head_dim matmuls + adds.
        ctx = jnp.concatenate(ctx_parts, axis=-1).astype(jnp.bfloat16)     # (N, D)
        attn = jnp.dot(ctx, wo_ref[l],
                       preferred_element_type=jnp.float32) + bo_ref[l]

        # Residual + LayerNorm 1 (f32).
        y = _layer_norm(x + attn, ln1w_ref[l], ln1b_ref[l])

        # Feed-forward: Linear1 -> ReLU -> Linear2 (bf16 matmul inputs, f32 acc).
        h1 = jnp.dot(y.astype(jnp.bfloat16), w1_ref[l],
                     preferred_element_type=jnp.float32) + b1_ref[l]
        h1 = jnp.maximum(h1, 0.0)
        h2 = jnp.dot(h1.astype(jnp.bfloat16), w2_ref[l],
                     preferred_element_type=jnp.float32) + b2_ref[l]

        # Residual + LayerNorm 2 (f32).
        x = _layer_norm(y + h2, ln2w_ref[l], ln2b_ref[l])

    if use_final_norm:
        x = _layer_norm(x, fnw_ref[...], fnb_ref[...])
    o_ref[...] = x.astype(o_ref.dtype)


# --------------------------- wrapper -----------------------------------------
def _full(shape):
    n = len(shape)
    return pl.BlockSpec(shape, lambda i, n=n: (0,) * n)


def stack_layer_params(layer_params):
    """Stack per-layer params along a leading layer axis.

    Fuses [wq|wk], folds the 1/sqrt(head_dim) softmax scale into the Q half
    (before the bf16 cast), and casts weight matrices to bf16 for single-pass
    MXU matmuls; biases / LayerNorm params stay f32 (VPU math stays f32).
    """
    scale = 1.0 / math.sqrt(HEAD_DIM)

    def st(f, dtype=jnp.float32):
        return jnp.stack([f(lp) for lp in layer_params]).astype(dtype)

    return dict(
        wqk=st(lambda lp: jnp.concatenate([lp["wq"] * scale, lp["wk"]], axis=1),
               jnp.bfloat16),                                              # (L, D, 2D)
        bqk=st(lambda lp: jnp.concatenate([lp["bq"] * scale, lp["bk"]], axis=1)),
        wv=st(lambda lp: lp["wv"], jnp.bfloat16), bv=st(lambda lp: lp["bv"]),
        wo=st(lambda lp: lp["wo"], jnp.bfloat16), bo=st(lambda lp: lp["bo"]),
        ln1w=st(lambda lp: lp["ln1_w"]), ln1b=st(lambda lp: lp["ln1_b"]),
        w1=st(lambda lp: lp["w1"], jnp.bfloat16), b1=st(lambda lp: lp["b1"]),
        w2=st(lambda lp: lp["w2"], jnp.bfloat16), b2=st(lambda lp: lp["b2"]),
        ln2w=st(lambda lp: lp["ln2_w"]), ln2b=st(lambda lp: lp["ln2_b"]),
    )


def transformer_encoder(src, pos, layer_params, norm_params):
    """src, pos: (S, B, D) seq-first (PyTorch convention). Returns (S, B, D)."""
    L = len(layer_params)
    # Free row-major flatten: (S, B, D) -> (S*B, D). Row r -> (s=r//B, b=r%B).
    xf = src.reshape(N, D)
    pf = pos.reshape(N, D)

    sp = stack_layer_params(layer_params)
    use_final = norm_params is not None
    fnw = norm_params[0] if use_final else jnp.ones((1, D), jnp.float32)
    fnb = norm_params[1] if use_final else jnp.zeros((1, D), jnp.float32)

    args = (xf, pf,
            sp["wqk"], sp["bqk"], sp["wv"], sp["bv"], sp["wo"], sp["bo"],
            sp["ln1w"], sp["ln1b"], sp["w1"], sp["b1"], sp["w2"], sp["b2"],
            sp["ln2w"], sp["ln2b"], fnw, fnb)
    in_specs = [_full(a.shape) for a in args]

    # Advisory cost estimate so XLA schedules the custom call sensibly.
    flops_per_layer = (2 * N * D * (2 * D)   # fused Q|K proj
                       + 2 * N * D * D       # V proj
                       + 2 * N * N * D       # scores (all heads)
                       + 2 * N * N * D       # p @ v (all heads)
                       + 2 * N * D * D       # W_o
                       + 2 * N * D * FF      # FF1
                       + 2 * N * FF * D)     # FF2
    cost = pl.CostEstimate(
        flops=L * flops_per_layer,
        transcendentals=L * NHEAD * N * N,
        bytes_accessed=sum(int(a.size) * a.dtype.itemsize for a in args) + N * D * 4)

    kernel = partial(encoder_stack_kernel, num_layers=L,
                     use_final_norm=use_final, approx_recip=USE_APPROX_RECIP)
    out = pl.pallas_call(
        kernel,
        out_shape=jax.ShapeDtypeStruct((N, D), src.dtype),
        grid_spec=pltpu.PrefetchScalarGridSpec(
            num_scalar_prefetch=0,
            grid=(1,),
            in_specs=in_specs,
            out_specs=_full((N, D)),
        ),
        compiler_params=pltpu.CompilerParams(dimension_semantics=("arbitrary",)),
        cost_estimate=cost,
    )(*args)
    return out.reshape(S, B, D)


# --------------------------- pure-JAX reference -------------------------------
def reference_forward(src, pos, layer_params, norm_params):
    x = jnp.transpose(src, (1, 0, 2)).astype(jnp.float32)
    p = jnp.transpose(pos, (1, 0, 2)).astype(jnp.float32)

    def ln(z, w, b):
        mu = jnp.mean(z, -1, keepdims=True)
        var = jnp.mean((z - mu) ** 2, -1, keepdims=True)
        return (z - mu) * jax.lax.rsqrt(var + EPS) * w + b

    for lp in layer_params:
        qk = x + p
        q = qk @ lp["wq"] + lp["bq"]
        k = qk @ lp["wk"] + lp["bk"]
        v = x @ lp["wv"] + lp["bv"]
        qh = q.reshape(B, S, NHEAD, HEAD_DIM).transpose(0, 2, 1, 3)
        kh = k.reshape(B, S, NHEAD, HEAD_DIM).transpose(0, 2, 1, 3)
        vh = v.reshape(B, S, NHEAD, HEAD_DIM).transpose(0, 2, 1, 3)
        s = jnp.einsum("bhqd,bhkd->bhqk", qh, kh) / math.sqrt(HEAD_DIM)
        pattn = jax.nn.softmax(s, axis=-1)
        o = jnp.einsum("bhqk,bhkd->bhqd", pattn, vh).transpose(0, 2, 1, 3).reshape(B, S, D)
        o = o @ lp["wo"] + lp["bo"]
        x = ln(x + o, lp["ln1_w"], lp["ln1_b"])
        f = jnp.maximum(x @ lp["w1"] + lp["b1"], 0.0) @ lp["w2"] + lp["b2"]
        x = ln(x + f, lp["ln2_w"], lp["ln2_b"])
    if norm_params is not None:
        x = ln(x, norm_params[0], norm_params[1])
    return jnp.transpose(x, (1, 0, 2))


# --------------------------- parameter init ----------------------------------
def make_layer_params(key):
    ks = jax.random.split(key, 10)
    std = 0.05
    return {
        "wq": jax.random.normal(ks[0], (D, D), jnp.float32) * std,
        "wk": jax.random.normal(ks[1], (D, D), jnp.float32) * std,
        "wv": jax.random.normal(ks[2], (D, D), jnp.float32) * std,
        "bq": jax.random.normal(ks[3], (1, D), jnp.float32) * std,
        "bk": jax.random.normal(ks[4], (1, D), jnp.float32) * std,
        "bv": jnp.zeros((1, D), jnp.float32),
        "wo": jax.random.normal(ks[5], (D, D), jnp.float32) * std,
        "bo": jnp.zeros((1, D), jnp.float32),
        "ln1_w": jnp.ones((1, D), jnp.float32),
        "ln1_b": jnp.zeros((1, D), jnp.float32),
        "w1": jax.random.normal(ks[6], (D, FF), jnp.float32) * std,
        "b1": jax.random.normal(ks[7], (1, FF), jnp.float32) * std,
        "w2": jax.random.normal(ks[8], (FF, D), jnp.float32) * std,
        "b2": jax.random.normal(ks[9], (1, D), jnp.float32) * std,
        "ln2_w": jnp.ones((1, D), jnp.float32),
        "ln2_b": jnp.zeros((1, D), jnp.float32),
    }


if __name__ == "__main__":
    root = jax.random.PRNGKey(0)
    k_src, k_pos, *k_layers = jax.random.split(root, 2 + NUM_LAYERS)

    src = jax.random.normal(k_src, (S, B, D), jnp.float32)   # seq-first, like PyTorch
    pos = jax.random.normal(k_pos, (S, B, D), jnp.float32)

    layer_params = [make_layer_params(k) for k in k_layers]
    norm_params = (jnp.ones((1, D), jnp.float32), jnp.zeros((1, D), jnp.float32))

    out = transformer_encoder(src, pos, layer_params, norm_params)
    out = jax.block_until_ready(out)

    ref = reference_forward(src, pos, layer_params, norm_params)
    assert out.shape == (S, B, D)
    # Tolerance reflects bf16 MXU operands (and approx softmax reciprocal) in the
    # kernel vs the f32 reference; values are O(1) after the final LayerNorm.
    assert jnp.allclose(out, ref, rtol=3e-2, atol=3e-2), "mismatch vs JAX reference"

    print("KERNEL_OK")
</pallas_src>

<mosaic_0001>
module attributes {stable_mosaic.version = 11 : i64} {
  func.func @encoder_stack_kernel(%arg0: i32, %arg1: memref<32x32xf32, #tpu.memory_space<vmem>>, %arg2: memref<32x32xf32, #tpu.memory_space<vmem>>, %arg3: memref<2x32x64xbf16, #tpu.memory_space<vmem>>, %arg4: memref<2x1x64xf32, #tpu.memory_space<vmem>>, %arg5: memref<2x32x32xbf16, #tpu.memory_space<vmem>>, %arg6: memref<2x1x32xf32, #tpu.memory_space<vmem>>, %arg7: memref<2x32x32xbf16, #tpu.memory_space<vmem>>, %arg8: memref<2x1x32xf32, #tpu.memory_space<vmem>>, %arg9: memref<2x1x32xf32, #tpu.memory_space<vmem>>, %arg10: memref<2x1x32xf32, #tpu.memory_space<vmem>>, %arg11: memref<2x32x64xbf16, #tpu.memory_space<vmem>>, %arg12: memref<2x1x64xf32, #tpu.memory_space<vmem>>, %arg13: memref<2x64x32xbf16, #tpu.memory_space<vmem>>, %arg14: memref<2x1x32xf32, #tpu.memory_space<vmem>>, %arg15: memref<2x1x32xf32, #tpu.memory_space<vmem>>, %arg16: memref<2x1x32xf32, #tpu.memory_space<vmem>>, %arg17: memref<1x32xf32, #tpu.memory_space<vmem>>, %arg18: memref<1x32xf32, #tpu.memory_space<vmem>>, %arg19: memref<32x32xf32, #tpu.memory_space<vmem>>) attributes {dimension_semantics = [#tpu.dimension_semantics<arbitrary>], iteration_bounds = array<i64: 1>, scalar_prefetch = 0 : i64, scratch_operands = 0 : i64, tpu.core_type = #tpu.core_type<tc>, window_params = [{pipeline_mode = #tpu.pipeline_mode<synchronous>, transform_indices = @transform_0, window_bounds = array<i64: 32, 32>}, {pipeline_mode = #tpu.pipeline_mode<synchronous>, transform_indices = @transform_1, window_bounds = array<i64: 32, 32>}, {pipeline_mode = #tpu.pipeline_mode<synchronous>, transform_indices = @transform_2, window_bounds = array<i64: 2, 32, 64>}, {pipeline_mode = #tpu.pipeline_mode<synchronous>, transform_indices = @transform_3, window_bounds = array<i64: 2, 1, 64>}, {pipeline_mode = #tpu.pipeline_mode<synchronous>, transform_indices = @transform_4, window_bounds = array<i64: 2, 32, 32>}, {pipeline_mode = #tpu.pipeline_mode<synchronous>, transform_indices = @transform_5, window_bounds = array<i64: 2, 1, 32>}, {pipeline_mode = #tpu.pipeline_mode<synchronous>, transform_indices = @transform_6, window_bounds = array<i64: 2, 32, 32>}, {pipeline_mode = #tpu.pipeline_mode<synchronous>, transform_indices = @transform_7, window_bounds = array<i64: 2, 1, 32>}, {pipeline_mode = #tpu.pipeline_mode<synchronous>, transform_indices = @transform_8, window_bounds = array<i64: 2, 1, 32>}, {pipeline_mode = #tpu.pipeline_mode<synchronous>, transform_indices = @transform_9, window_bounds = array<i64: 2, 1, 32>}, {pipeline_mode = #tpu.pipeline_mode<synchronous>, transform_indices = @transform_10, window_bounds = array<i64: 2, 32, 64>}, {pipeline_mode = #tpu.pipeline_mode<synchronous>, transform_indices = @transform_11, window_bounds = array<i64: 2, 1, 64>}, {pipeline_mode = #tpu.pipeline_mode<synchronous>, transform_indices = @transform_12, window_bounds = array<i64: 2, 64, 32>}, {pipeline_mode = #tpu.pipeline_mode<synchronous>, transform_indices = @transform_13, window_bounds = array<i64: 2, 1, 32>}, {pipeline_mode = #tpu.pipeline_mode<synchronous>, transform_indices = @transform_14, window_bounds = array<i64: 2, 1, 32>}, {pipeline_mode = #tpu.pipeline_mode<synchronous>, transform_indices = @transform_15, window_bounds = array<i64: 2, 1, 32>}, {pipeline_mode = #tpu.pipeline_mode<synchronous>, transform_indices = @transform_16, window_bounds = array<i64: 1, 32>}, {pipeline_mode = #tpu.pipeline_mode<synchronous>, transform_indices = @transform_17, window_bounds = array<i64: 1, 32>}, {pipeline_mode = #tpu.pipeline_mode<synchronous>, transform_indices = @transform_18, window_bounds = array<i64: 32, 32>}]} {
    %c0 = arith.constant 0 : index
    %c0_0 = arith.constant 0 : index
    %0 = vector.load %arg1[%c0, %c0_0] : memref<32x32xf32, #tpu.memory_space<vmem>>, vector<32x32xf32>
    %c0_1 = arith.constant 0 : index
    %c0_2 = arith.constant 0 : index
    %1 = vector.load %arg2[%c0_1, %c0_2] : memref<32x32xf32, #tpu.memory_space<vmem>>, vector<32x32xf32>
    %2 = tpu.iota {dimensions = array<i32: 0>} : vector<32x32xi32>
    %c2_i32 = arith.constant 2 : i32
    %c0_i32 = arith.constant 0 : i32
    %3 = arith.cmpi eq, %c2_i32, %c0_i32 : i32
    %c1_i32 = arith.constant 1 : i32
    %4 = arith.select %3, %c1_i32, %c2_i32 : i32
    %5 = vector.broadcast %4 : i32 to vector<32x32xi32>
    %6 = arith.remsi %2, %5 : vector<32x32xi32>
    %c0_i32_3 = arith.constant 0 : i32
    %7 = vector.broadcast %c0_i32_3 : i32 to vector<32x32xi32>
    %8 = arith.cmpi ne, %6, %7 : vector<32x32xi32>
    %c0_i32_4 = arith.constant 0 : i32
    %9 = vector.broadcast %c0_i32_4 : i32 to vector<32x32xi32>
    %10 = arith.cmpi slt, %6, %9 : vector<32x32xi32>
    %c0_i32_5 = arith.constant 0 : i32
    %11 = arith.cmpi slt, %4, %c0_i32_5 : i32
    %12 = vector.broadcast %11 : i1 to vector<32x32xi1>
    %13 = vector.broadcast %12 : vector<32x32xi1> to vector<32x32xi1>
    %14 = arith.xori %10, %13 : vector<32x32xi1>
    %15 = arith.andi %14, %8 : vector<32x32xi1>
    %16 = vector.broadcast %4 : i32 to vector<32x32xi32>
    %17 = arith.addi %6, %16 : vector<32x32xi32>
    %18 = arith.select %15, %17, %6 : vector<32x32xi1>, vector<32x32xi32>
    %19 = tpu.iota {dimensions = array<i32: 1>} : vector<32x32xi32>
    %c2_i32_6 = arith.constant 2 : i32
    %c0_i32_7 = arith.constant 0 : i32
    %20 = arith.cmpi eq, %c2_i32_6, %c0_i32_7 : i32
    %c1_i32_8 = arith.constant 1 : i32
    %21 = arith.select %20, %c1_i32_8, %c2_i32_6 : i32
    %22 = vector.broadcast %21 : i32 to vector<32x32xi32>
    %23 = arith.remsi %19, %22 : vector<32x32xi32>
    %c0_i32_9 = arith.constant 0 : i32
    %24 = vector.broadcast %c0_i32_9 : i32 to vector<32x32xi32>
    %25 = arith.cmpi ne, %23, %24 : vector<32x32xi32>
    %c0_i32_10 = arith.constant 0 : i32
    %26 = vector.broadcast %c0_i32_10 : i32 to vector<32x32xi32>
    %27 = arith.cmpi slt, %23, %26 : vector<32x32xi32>
    %c0_i32_11 = arith.constant 0 : i32
    %28 = arith.cmpi slt, %21, %c0_i32_11 : i32
    %29 = vector.broadcast %28 : i1 to vector<32x32xi1>
    %30 = vector.broadcast %29 : vector<32x32xi1> to vector<32x32xi1>
    %31 = arith.xori %27, %30 : vector<32x32xi1>
    %32 = arith.andi %31, %25 : vector<32x32xi1>
    %33 = vector.broadcast %21 : i32 to vector<32x32xi32>
    %34 = arith.addi %23, %33 : vector<32x32xi32>
    %35 = arith.select %32, %34, %23 : vector<32x32xi1>, vector<32x32xi32>
    %36 = arith.cmpi eq, %18, %35 : vector<32x32xi32>
    %cst = arith.constant 0.000000e+00 : f32
    %cst_12 = arith.constant -1.000000e+30 : f32
    %37 = vector.broadcast %cst : f32 to vector<32x32xf32>
    %38 = vector.broadcast %cst_12 : f32 to vector<32x32xf32>
    %39 = arith.select %36, %37, %38 : vector<32x32xi1>, vector<32x32xf32>
    %40 = arith.addf %0, %1 : vector<32x32xf32>
    %41 = arith.truncf %40 : vector<32x32xf32> to vector<32x32xbf16>
    %c0_13 = arith.constant 0 : index
    %c0_14 = arith.constant 0 : index
    %c0_15 = arith.constant 0 : index
    %42 = vector.load %arg3[%c0_13, %c0_14, %c0_15] : memref<2x32x64xbf16, #tpu.memory_space<vmem>>, vector<1x32x64xbf16>
    %43 = vector.shape_cast %42 : vector<1x32x64xbf16> to vector<32x64xbf16>
    %cst_16 = arith.constant dense<0.000000e+00> : vector<32x64xf32>
    %44 = tpu.matmul %41, %43, %cst_16 {dimension_numbers = #tpu.dot_dimension_numbers<[1], [0], [0], [1], [0, 0, 1, 1], [], []>} : vector<32x32xbf16>, vector<32x64xbf16>, vector<32x64xf32> -> vector<32x64xf32>
    %c0_17 = arith.constant 0 : index
    %c0_18 = arith.constant 0 : index
    %c0_19 = arith.constant 0 : index
    %45 = vector.load %arg4[%c0_17, %c0_18, %c0_19] : memref<2x1x64xf32, #tpu.memory_space<vmem>>, vector<1x1x64xf32>
    %46 = vector.shape_cast %45 : vector<1x1x64xf32> to vector<1x64xf32>
    %47 = vector.broadcast %46 : vector<1x64xf32> to vector<32x64xf32>
    %48 = arith.addf %44, %47 : vector<32x64xf32>
    %49 = arith.truncf %0 : vector<32x32xf32> to vector<32x32xbf16>
    %c0_20 = arith.constant 0 : index
    %c0_21 = arith.constant 0 : index
    %c0_22 = arith.constant 0 : index
    %50 = vector.load %arg5[%c0_20, %c0_21, %c0_22] : memref<2x32x32xbf16, #tpu.memory_space<vmem>>, vector<1x32x32xbf16>
    %51 = vector.shape_cast %50 : vector<1x32x32xbf16> to vector<32x32xbf16>
    %cst_23 = arith.constant dense<0.000000e+00> : vector<32x32xf32>
    %52 = tpu.matmul %49, %51, %cst_23 {dimension_numbers = #tpu.dot_dimension_numbers<[1], [0], [0], [1], [0, 0, 1, 1], [], []>} : vector<32x32xbf16>, vector<32x32xbf16>, vector<32x32xf32> -> vector<32x32xf32>
    %c0_24 = arith.constant 0 : index
    %c0_25 = arith.constant 0 : index
    %c0_26 = arith.constant 0 : index
    %53 = vector.load %arg6[%c0_24, %c0_25, %c0_26] : memref<2x1x32xf32, #tpu.memory_space<vmem>>, vector<1x1x32xf32>
    %54 = vector.shape_cast %53 : vector<1x1x32xf32> to vector<1x32xf32>
    %55 = vector.broadcast %54 : vector<1x32xf32> to vector<32x32xf32>
    %56 = arith.addf %52, %55 : vector<32x32xf32>
    %57 = vector.extract_strided_slice %48 {offsets = [0, 0], sizes = [32, 8], strides = [1, 1]} : vector<32x64xf32> to vector<32x8xf32>
    %58 = arith.truncf %57 : vector<32x8xf32> to vector<32x8xbf16>
    %59 = vector.extract_strided_slice %48 {offsets = [0, 32], sizes = [32, 8], strides = [1, 1]} : vector<32x64xf32> to vector<32x8xf32>
    %60 = arith.truncf %59 : vector<32x8xf32> to vector<32x8xbf16>
    %61 = vector.extract_strided_slice %56 {offsets = [0, 0], sizes = [32, 8], strides = [1, 1]} : vector<32x32xf32> to vector<32x8xf32>
    %62 = arith.truncf %61 : vector<32x8xf32> to vector<32x8xbf16>
    %cst_27 = arith.constant dense<0.000000e+00> : vector<32x32xf32>
    %63 = tpu.matmul %58, %60, %cst_27 {dimension_numbers = #tpu.dot_dimension_numbers<[1], [1], [0], [0], [0, 0, 1, 0], [], []>} : vector<32x8xbf16>, vector<32x8xbf16>, vector<32x32xf32> -> vector<32x32xf32>
    %64 = arith.addf %63, %39 : vector<32x32xf32>
    %cst_28 = arith.constant dense<0xFF800000> : vector<32xf32>
    %65 = vector.multi_reduction <maximumf>, %64, %cst_28 [1] : vector<32x32xf32> to vector<32xf32>
    %66 = vector.shape_cast %65 : vector<32xf32> to vector<32x1xf32>
    %67 = vector.broadcast %66 : vector<32x1xf32> to vector<32x32xf32>
    %68 = arith.subf %64, %67 : vector<32x32xf32>
    %69 = math.exp %68 : vector<32x32xf32>
    %cst_29 = arith.constant dense<0.000000e+00> : vector<32xf32>
    %70 = vector.multi_reduction <add>, %69, %cst_29 [1] : vector<32x32xf32> to vector<32xf32>
    %71 = vector.shape_cast %70 : vector<32xf32> to vector<32x1xf32>
    %72 = tpu.reciprocal %71 {approx = true} : vector<32x1xf32> -> vector<32x1xf32>
    %73 = vector.broadcast %72 : vector<32x1xf32> to vector<32x32xf32>
    %74 = arith.mulf %69, %73 : vector<32x32xf32>
    %75 = arith.truncf %74 : vector<32x32xf32> to vector<32x32xbf16>
    %cst_30 = arith.constant dense<0.000000e+00> : vector<32x8xf32>
    %76 = tpu.matmul %75, %62, %cst_30 {dimension_numbers = #tpu.dot_dimension_numbers<[1], [0], [0], [1], [0, 0, 1, 1], [], []>} : vector<32x32xbf16>, vector<32x8xbf16>, vector<32x8xf32> -> vector<32x8xf32>
    %77 = vector.extract_strided_slice %48 {offsets = [0, 8], sizes = [32, 8], strides = [1, 1]} : vector<32x64xf32> to vector<32x8xf32>
    %78 = arith.truncf %77 : vector<32x8xf32> to vector<32x8xbf16>
    %79 = vector.extract_strided_slice %48 {offsets = [0, 40], sizes = [32, 8], strides = [1, 1]} : vector<32x64xf32> to vector<32x8xf32>
    %80 = arith.truncf %79 : vector<32x8xf32> to vector<32x8xbf16>
    %81 = vector.extract_strided_slice %56 {offsets = [0, 8], sizes = [32, 8], strides = [1, 1]} : vector<32x32xf32> to vector<32x8xf32>
    %82 = arith.truncf %81 : vector<32x8xf32> to vector<32x8xbf16>
    %cst_31 = arith.constant dense<0.000000e+00> : vector<32x32xf32>
    %83 = tpu.matmul %78, %80, %cst_31 {dimension_numbers = #tpu.dot_dimension_numbers<[1], [1], [0], [0], [0, 0, 1, 0], [], []>} : vector<32x8xbf16>, vector<32x8xbf16>, vector<32x32xf32> -> vector<32x32xf32>
    %84 = arith.addf %83, %39 : vector<32x32xf32>
    %cst_32 = arith.constant dense<0xFF800000> : vector<32xf32>
    %85 = vector.multi_reduction <maximumf>, %84, %cst_32 [1] : vector<32x32xf32> to vector<32xf32>
    %86 = vector.shape_cast %85 : vector<32xf32> to vector<32x1xf32>
    %87 = vector.broadcast %86 : vector<32x1xf32> to vector<32x32xf32>
    %88 = arith.subf %84, %87 : vector<32x32xf32>
    %89 = math.exp %88 : vector<32x32xf32>
    %cst_33 = arith.constant dense<0.000000e+00> : vector<32xf32>
    %90 = vector.multi_reduction <add>, %89, %cst_33 [1] : vector<32x32xf32> to vector<32xf32>
    %91 = vector.shape_cast %90 : vector<32xf32> to vector<32x1xf32>
    %92 = tpu.reciprocal %91 {approx = true} : vector<32x1xf32> -> vector<32x1xf32>
    %93 = vector.broadcast %92 : vector<32x1xf32> to vector<32x32xf32>
    %94 = arith.mulf %89, %93 : vector<32x32xf32>
    %95 = arith.truncf %94 : vector<32x32xf32> to vector<32x32xbf16>
    %cst_34 = arith.constant dense<0.000000e+00> : vector<32x8xf32>
    %96 = tpu.matmul %95, %82, %cst_34 {dimension_numbers = #tpu.dot_dimension_numbers<[1], [0], [0], [1], [0, 0, 1, 1], [], []>} : vector<32x32xbf16>, vector<32x8xbf16>, vector<32x8xf32> -> vector<32x8xf32>
    %97 = vector.extract_strided_slice %48 {offsets = [0, 16], sizes = [32, 8], strides = [1, 1]} : vector<32x64xf32> to vector<32x8xf32>
    %98 = arith.truncf %97 : vector<32x8xf32> to vector<32x8xbf16>
    %99 = vector.extract_strided_slice %48 {offsets = [0, 48], sizes = [32, 8], strides = [1, 1]} : vector<32x64xf32> to vector<32x8xf32>
    %100 = arith.truncf %99 : vector<32x8xf32> to vector<32x8xbf16>
    %101 = vector.extract_strided_slice %56 {offsets = [0, 16], sizes = [32, 8], strides = [1, 1]} : vector<32x32xf32> to vector<32x8xf32>
    %102 = arith.truncf %101 : vector<32x8xf32> to vector<32x8xbf16>
    %cst_35 = arith.constant dense<0.000000e+00> : vector<32x32xf32>
    %103 = tpu.matmul %98, %100, %cst_35 {dimension_numbers = #tpu.dot_dimension_numbers<[1], [1], [0], [0], [0, 0, 1, 0], [], []>} : vector<32x8xbf16>, vector<32x8xbf16>, vector<32x32xf32> -> vector<32x32xf32>
    %104 = arith.addf %103, %39 : vector<32x32xf32>
    %cst_36 = arith.constant dense<0xFF800000> : vector<32xf32>
    %105 = vector.multi_reduction <maximumf>, %104, %cst_36 [1] : vector<32x32xf32> to vector<32xf32>
    %106 = vector.shape_cast %105 : vector<32xf32> to vector<32x1xf32>
    %107 = vector.broadcast %106 : vector<32x1xf32> to vector<32x32xf32>
    %108 = arith.subf %104, %107 : vector<32x32xf32>
    %109 = math.exp %108 : vector<32x32xf32>
    %cst_37 = arith.constant dense<0.000000e+00> : vector<32xf32>
    %110 = vector.multi_reduction <add>, %109, %cst_37 [1] : vector<32x32xf32> to vector<32xf32>
    %111 = vector.shape_cast %110 : vector<32xf32> to vector<32x1xf32>
    %112 = tpu.reciprocal %111 {approx = true} : vector<32x1xf32> -> vector<32x1xf32>
    %113 = vector.broadcast %112 : vector<32x1xf32> to vector<32x32xf32>
    %114 = arith.mulf %109, %113 : vector<32x32xf32>
    %115 = arith.truncf %114 : vector<32x32xf32> to vector<32x32xbf16>
    %cst_38 = arith.constant dense<0.000000e+00> : vector<32x8xf32>
    %116 = tpu.matmul %115, %102, %cst_38 {dimension_numbers = #tpu.dot_dimension_numbers<[1], [0], [0], [1], [0, 0, 1, 1], [], []>} : vector<32x32xbf16>, vector<32x8xbf16>, vector<32x8xf32> -> vector<32x8xf32>
    %117 = vector.extract_strided_slice %48 {offsets = [0, 24], sizes = [32, 8], strides = [1, 1]} : vector<32x64xf32> to vector<32x8xf32>
    %118 = arith.truncf %117 : vector<32x8xf32> to vector<32x8xbf16>
    %119 = vector.extract_strided_slice %48 {offsets = [0, 56], sizes = [32, 8], strides = [1, 1]} : vector<32x64xf32> to vector<32x8xf32>
    %120 = arith.truncf %119 : vector<32x8xf32> to vector<32x8xbf16>
    %121 = vector.extract_strided_slice %56 {offsets = [0, 24], sizes = [32, 8], strides = [1, 1]} : vector<32x32xf32> to vector<32x8xf32>
    %122 = arith.truncf %121 : vector<32x8xf32> to vector<32x8xbf16>
    %cst_39 = arith.constant dense<0.000000e+00> : vector<32x32xf32>
    %123 = tpu.matmul %118, %120, %cst_39 {dimension_numbers = #tpu.dot_dimension_numbers<[1], [1], [0], [0], [0, 0, 1, 0], [], []>} : vector<32x8xbf16>, vector<32x8xbf16>, vector<32x32xf32> -> vector<32x32xf32>
    %124 = arith.addf %123, %39 : vector<32x32xf32>
    %cst_40 = arith.constant dense<0xFF800000> : vector<32xf32>
    %125 = vector.multi_reduction <maximumf>, %124, %cst_40 [1] : vector<32x32xf32> to vector<32xf32>
    %126 = vector.shape_cast %125 : vector<32xf32> to vector<32x1xf32>
    %127 = vector.broadcast %126 : vector<32x1xf32> to vector<32x32xf32>
    %128 = arith.subf %124, %127 : vector<32x32xf32>
    %129 = math.exp %128 : vector<32x32xf32>
    %cst_41 = arith.constant dense<0.000000e+00> : vector<32xf32>
    %130 = vector.multi_reduction <add>, %129, %cst_41 [1] : vector<32x32xf32> to vector<32xf32>
    %131 = vector.shape_cast %130 : vector<32xf32> to vector<32x1xf32>
    %132 = tpu.reciprocal %131 {approx = true} : vector<32x1xf32> -> vector<32x1xf32>
    %133 = vector.broadcast %132 : vector<32x1xf32> to vector<32x32xf32>
    %134 = arith.mulf %129, %133 : vector<32x32xf32>
    %135 = arith.truncf %134 : vector<32x32xf32> to vector<32x32xbf16>
    %cst_42 = arith.constant dense<0.000000e+00> : vector<32x8xf32>
    %136 = tpu.matmul %135, %122, %cst_42 {dimension_numbers = #tpu.dot_dimension_numbers<[1], [0], [0], [1], [0, 0, 1, 1], [], []>} : vector<32x32xbf16>, vector<32x8xbf16>, vector<32x8xf32> -> vector<32x8xf32>
    %137 = tpu.concatenate %76, %96, %116, %136 in 1 : vector<32x8xf32>, vector<32x8xf32>, vector<32x8xf32>, vector<32x8xf32> -> vector<32x32xf32>
    %138 = arith.truncf %137 : vector<32x32xf32> to vector<32x32xbf16>
    %c0_43 = arith.constant 0 : index
    %c0_44 = arith.constant 0 : index
    %c0_45 = arith.constant 0 : index
    %139 = vector.load %arg7[%c0_43, %c0_44, %c0_45] : memref<2x32x32xbf16, #tpu.memory_space<vmem>>, vector<1x32x32xbf16>
    %140 = vector.shape_cast %139 : vector<1x32x32xbf16> to vector<32x32xbf16>
    %cst_46 = arith.constant dense<0.000000e+00> : vector<32x32xf32>
    %141 = tpu.matmul %138, %140, %cst_46 {dimension_numbers = #tpu.dot_dimension_numbers<[1], [0], [0], [1], [0, 0, 1, 1], [], []>} : vector<32x32xbf16>, vector<32x32xbf16>, vector<32x32xf32> -> vector<32x32xf32>
    %c0_47 = arith.constant 0 : index
    %c0_48 = arith.constant 0 : index
    %c0_49 = arith.constant 0 : index
    %142 = vector.load %arg8[%c0_47, %c0_48, %c0_49] : memref<2x1x32xf32, #tpu.memory_space<vmem>>, vector<1x1x32xf32>
    %143 = vector.shape_cast %142 : vector<1x1x32xf32> to vector<1x32xf32>
    %144 = vector.broadcast %143 : vector<1x32xf32> to vector<32x32xf32>
    %145 = arith.addf %141, %144 : vector<32x32xf32>
    %146 = arith.addf %0, %145 : vector<32x32xf32>
    %c0_50 = arith.constant 0 : index
    %c0_51 = arith.constant 0 : index
    %c0_52 = arith.constant 0 : index
    %147 = vector.load %arg9[%c0_50, %c0_51, %c0_52] : memref<2x1x32xf32, #tpu.memory_space<vmem>>, vector<1x1x32xf32>
    %148 = vector.shape_cast %147 : vector<1x1x32xf32> to vector<1x32xf32>
    %c0_53 = arith.constant 0 : index
    %c0_54 = arith.constant 0 : index
    %c0_55 = arith.constant 0 : index
    %149 = vector.load %arg10[%c0_53, %c0_54, %c0_55] : memref<2x1x32xf32, #tpu.memory_space<vmem>>, vector<1x1x32xf32>
    %150 = vector.shape_cast %149 : vector<1x1x32xf32> to vector<1x32xf32>
    %cst_56 = arith.constant dense<0.000000e+00> : vector<32xf32>
    %151 = vector.multi_reduction <add>, %146, %cst_56 [1] : vector<32x32xf32> to vector<32xf32>
    %152 = vector.shape_cast %151 : vector<32xf32> to vector<32x1xf32>
    %cst_57 = arith.constant 3.200000e+01 : f32
    %153 = vector.broadcast %cst_57 : f32 to vector<32x1xf32>
    %154 = arith.divf %152, %153 : vector<32x1xf32>
    %155 = vector.broadcast %154 : vector<32x1xf32> to vector<32x32xf32>
    %156 = arith.subf %146, %155 : vector<32x32xf32>
    %157 = vector.broadcast %154 : vector<32x1xf32> to vector<32x32xf32>
    %158 = arith.subf %146, %157 : vector<32x32xf32>
    %159 = arith.mulf %156, %158 : vector<32x32xf32>
    %cst_58 = arith.constant dense<0.000000e+00> : vector<32xf32>
    %160 = vector.multi_reduction <add>, %159, %cst_58 [1] : vector<32x32xf32> to vector<32xf32>
    %161 = vector.shape_cast %160 : vector<32xf32> to vector<32x1xf32>
    %cst_59 = arith.constant 3.200000e+01 : f32
    %162 = vector.broadcast %cst_59 : f32 to vector<32x1xf32>
    %163 = arith.divf %161, %162 : vector<32x1xf32>
    %164 = vector.broadcast %154 : vector<32x1xf32> to vector<32x32xf32>
    %165 = arith.subf %146, %164 : vector<32x32xf32>
    %cst_60 = arith.constant 9.99999974E-6 : f32
    %166 = vector.broadcast %cst_60 : f32 to vector<32x1xf32>
    %167 = arith.addf %163, %166 : vector<32x1xf32>
    %168 = math.rsqrt %167 : vector<32x1xf32>
    %169 = vector.broadcast %168 : vector<32x1xf32> to vector<32x32xf32>
    %170 = arith.mulf %165, %169 : vector<32x32xf32>
    %171 = vector.broadcast %148 : vector<1x32xf32> to vector<32x32xf32>
    %172 = arith.mulf %170, %171 : vector<32x32xf32>
    %173 = vector.broadcast %150 : vector<1x32xf32> to vector<32x32xf32>
    %174 = arith.addf %172, %173 : vector<32x32xf32>
    %175 = arith.truncf %174 : vector<32x32xf32> to vector<32x32xbf16>
    %c0_61 = arith.constant 0 : index
    %c0_62 = arith.constant 0 : index
    %c0_63 = arith.constant 0 : index
    %176 = vector.load %arg11[%c0_61, %c0_62, %c0_63] : memref<2x32x64xbf16, #tpu.memory_space<vmem>>, vector<1x32x64xbf16>
    %177 = vector.shape_cast %176 : vector<1x32x64xbf16> to vector<32x64xbf16>
    %cst_64 = arith.constant dense<0.000000e+00> : vector<32x64xf32>
    %178 = tpu.matmul %175, %177, %cst_64 {dimension_numbers = #tpu.dot_dimension_numbers<[1], [0], [0], [1], [0, 0, 1, 1], [], []>} : vector<32x32xbf16>, vector<32x64xbf16>, vector<32x64xf32> -> vector<32x64xf32>
    %c0_65 = arith.constant 0 : index
    %c0_66 = arith.constant 0 : index
    %c0_67 = arith.constant 0 : index
    %179 = vector.load %arg12[%c0_65, %c0_66, %c0_67] : memref<2x1x64xf32, #tpu.memory_space<vmem>>, vector<1x1x64xf32>
    %180 = vector.shape_cast %179 : vector<1x1x64xf32> to vector<1x64xf32>
    %181 = vector.broadcast %180 : vector<1x64xf32> to vector<32x64xf32>
    %182 = arith.addf %178, %181 : vector<32x64xf32>
    %cst_68 = arith.constant 0.000000e+00 : f32
    %183 = vector.broadcast %cst_68 : f32 to vector<32x64xf32>
    %184 = arith.maximumf %182, %183 : vector<32x64xf32>
    %185 = arith.truncf %184 : vector<32x64xf32> to vector<32x64xbf16>
    %c0_69 = arith.constant 0 : index
    %c0_70 = arith.constant 0 : index
    %c0_71 = arith.constant 0 : index
    %186 = vector.load %arg13[%c0_69, %c0_70, %c0_71] : memref<2x64x32xbf16, #tpu.memory_space<vmem>>, vector<1x64x32xbf16>
    %187 = vector.shape_cast %186 : vector<1x64x32xbf16> to vector<64x32xbf16>
    %cst_72 = arith.constant dense<0.000000e+00> : vector<32x32xf32>
    %188 = tpu.matmul %185, %187, %cst_72 {dimension_numbers = #tpu.dot_dimension_numbers<[1], [0], [0], [1], [0, 0, 1, 1], [], []>} : vector<32x64xbf16>, vector<64x32xbf16>, vector<32x32xf32> -> vector<32x32xf32>
    %c0_73 = arith.constant 0 : index
    %c0_74 = arith.constant 0 : index
    %c0_75 = arith.constant 0 : index
    %189 = vector.load %arg14[%c0_73, %c0_74, %c0_75] : memref<2x1x32xf32, #tpu.memory_space<vmem>>, vector<1x1x32xf32>
    %190 = vector.shape_cast %189 : vector<1x1x32xf32> to vector<1x32xf32>
    %191 = vector.broadcast %190 : vector<1x32xf32> to vector<32x32xf32>
    %192 = arith.addf %188, %191 : vector<32x32xf32>
    %193 = arith.addf %174, %192 : vector<32x32xf32>
    %c0_76 = arith.constant 0 : index
    %c0_77 = arith.constant 0 : index
    %c0_78 = arith.constant 0 : index
    %194 = vector.load %arg15[%c0_76, %c0_77, %c0_78] : memref<2x1x32xf32, #tpu.memory_space<vmem>>, vector<1x1x32xf32>
    %195 = vector.shape_cast %194 : vector<1x1x32xf32> to vector<1x32xf32>
    %c0_79 = arith.constant 0 : index
    %c0_80 = arith.constant 0 : index
    %c0_81 = arith.constant 0 : index
    %196 = vector.load %arg16[%c0_79, %c0_80, %c0_81] : memref<2x1x32xf32, #tpu.memory_space<vmem>>, vector<1x1x32xf32>
    %197 = vector.shape_cast %196 : vector<1x1x32xf32> to vector<1x32xf32>
    %cst_82 = arith.constant dense<0.000000e+00> : vector<32xf32>
    %198 = vector.multi_reduction <add>, %193, %cst_82 [1] : vector<32x32xf32> to vector<32xf32>
    %199 = vector.shape_cast %198 : vector<32xf32> to vector<32x1xf32>
    %cst_83 = arith.constant 3.200000e+01 : f32
    %200 = vector.broadcast %cst_83 : f32 to vector<32x1xf32>
    %201 = arith.divf %199, %200 : vector<32x1xf32>
    %202 = vector.broadcast %201 : vector<32x1xf32> to vector<32x32xf32>
    %203 = arith.subf %193, %202 : vector<32x32xf32>
    %204 = vector.broadcast %201 : vector<32x1xf32> to vector<32x32xf32>
    %205 = arith.subf %193, %204 : vector<32x32xf32>
    %206 = arith.mulf %203, %205 : vector<32x32xf32>
    %cst_84 = arith.constant dense<0.000000e+00> : vector<32xf32>
    %207 = vector.multi_reduction <add>, %206, %cst_84 [1] : vector<32x32xf32> to vector<32xf32>
    %208 = vector.shape_cast %207 : vector<32xf32> to vector<32x1xf32>
    %cst_85 = arith.constant 3.200000e+01 : f32
    %209 = vector.broadcast %cst_85 : f32 to vector<32x1xf32>
    %210 = arith.divf %208, %209 : vector<32x1xf32>
    %211 = vector.broadcast %201 : vector<32x1xf32> to vector<32x32xf32>
    %212 = arith.subf %193, %211 : vector<32x32xf32>
    %cst_86 = arith.constant 9.99999974E-6 : f32
    %213 = vector.broadcast %cst_86 : f32 to vector<32x1xf32>
    %214 = arith.addf %210, %213 : vector<32x1xf32>
    %215 = math.rsqrt %214 : vector<32x1xf32>
    %216 = vector.broadcast %215 : vector<32x1xf32> to vector<32x32xf32>
    %217 = arith.mulf %212, %216 : vector<32x32xf32>
    %218 = vector.broadcast %195 : vector<1x32xf32> to vector<32x32xf32>
    %219 = arith.mulf %217, %218 : vector<32x32xf32>
    %220 = vector.broadcast %197 : vector<1x32xf32> to vector<32x32xf32>
    %221 = arith.addf %219, %220 : vector<32x32xf32>
    %222 = arith.addf %221, %1 : vector<32x32xf32>
    %223 = arith.truncf %222 : vector<32x32xf32> to vector<32x32xbf16>
    %c1 = arith.constant 1 : index
    %c0_87 = arith.constant 0 : index
    %c0_88 = arith.constant 0 : index
    %224 = vector.load %arg3[%c1, %c0_87, %c0_88] : memref<2x32x64xbf16, #tpu.memory_space<vmem>>, vector<1x32x64xbf16>
    %225 = vector.shape_cast %224 : vector<1x32x64xbf16> to vector<32x64xbf16>
    %cst_89 = arith.constant dense<0.000000e+00> : vector<32x64xf32>
    %226 = tpu.matmul %223, %225, %cst_89 {dimension_numbers = #tpu.dot_dimension_numbers<[1], [0], [0], [1], [0, 0, 1, 1], [], []>} : vector<32x32xbf16>, vector<32x64xbf16>, vector<32x64xf32> -> vector<32x64xf32>
    %c1_90 = arith.constant 1 : index
    %c0_91 = arith.constant 0 : index
    %c0_92 = arith.constant 0 : index
    %227 = vector.load %arg4[%c1_90, %c0_91, %c0_92] : memref<2x1x64xf32, #tpu.memory_space<vmem>>, vector<1x1x64xf32>
    %228 = vector.shape_cast %227 : vector<1x1x64xf32> to vector<1x64xf32>
    %229 = vector.broadcast %228 : vector<1x64xf32> to vector<32x64xf32>
    %230 = arith.addf %226, %229 : vector<32x64xf32>
    %231 = arith.truncf %221 : vector<32x32xf32> to vector<32x32xbf16>
    %c1_93 = arith.constant 1 : index
    %c0_94 = arith.constant 0 : index
    %c0_95 = arith.constant 0 : index
    %232 = vector.load %arg5[%c1_93, %c0_94, %c0_95] : memref<2x32x32xbf16, #tpu.memory_space<vmem>>, vector<1x32x32xbf16>
    %233 = vector.shape_cast %232 : vector<1x32x32xbf16> to vector<32x32xbf16>
    %cst_96 = arith.constant dense<0.000000e+00> : vector<32x32xf32>
    %234 = tpu.matmul %231, %233, %cst_96 {dimension_numbers = #tpu.dot_dimension_numbers<[1], [0], [0], [1], [0, 0, 1, 1], [], []>} : vector<32x32xbf16>, vector<32x32xbf16>, vector<32x32xf32> -> vector<32x32xf32>
    %c1_97 = arith.constant 1 : index
    %c0_98 = arith.constant 0 : index
    %c0_99 = arith.constant 0 : index
    %235 = vector.load %arg6[%c1_97, %c0_98, %c0_99] : memref<2x1x32xf32, #tpu.memory_space<vmem>>, vector<1x1x32xf32>
    %236 = vector.shape_cast %235 : vector<1x1x32xf32> to vector<1x32xf32>
    %237 = vector.broadcast %236 : vector<1x32xf32> to vector<32x32xf32>
    %238 = arith.addf %234, %237 : vector<32x32xf32>
    %239 = vector.extract_strided_slice %230 {offsets = [0, 0], sizes = [32, 8], strides = [1, 1]} : vector<32x64xf32> to vector<32x8xf32>
    %240 = arith.truncf %239 : vector<32x8xf32> to vector<32x8xbf16>
    %241 = vector.extract_strided_slice %230 {offsets = [0, 32], sizes = [32, 8], strides = [1, 1]} : vector<32x64xf32> to vector<32x8xf32>
    %242 = arith.truncf %241 : vector<32x8xf32> to vector<32x8xbf16>
    %243 = vector.extract_strided_slice %238 {offsets = [0, 0], sizes = [32, 8], strides = [1, 1]} : vector<32x32xf32> to vector<32x8xf32>
    %244 = arith.truncf %243 : vector<32x8xf32> to vector<32x8xbf16>
    %cst_100 = arith.constant dense<0.000000e+00> : vector<32x32xf32>
    %245 = tpu.matmul %240, %242, %cst_100 {dimension_numbers = #tpu.dot_dimension_numbers<[1], [1], [0], [0], [0, 0, 1, 0], [], []>} : vector<32x8xbf16>, vector<32x8xbf16>, vector<32x32xf32> -> vector<32x32xf32>
    %246 = arith.addf %245, %39 : vector<32x32xf32>
    %cst_101 = arith.constant dense<0xFF800000> : vector<32xf32>
    %247 = vector.multi_reduction <maximumf>, %246, %cst_101 [1] : vector<32x32xf32> to vector<32xf32>
    %248 = vector.shape_cast %247 : vector<32xf32> to vector<32x1xf32>
    %249 = vector.broadcast %248 : vector<32x1xf32> to vector<32x32xf32>
    %250 = arith.subf %246, %249 : vector<32x32xf32>
    %251 = math.exp %250 : vector<32x32xf32>
    %cst_102 = arith.constant dense<0.000000e+00> : vector<32xf32>
    %252 = vector.multi_reduction <add>, %251, %cst_102 [1] : vector<32x32xf32> to vector<32xf32>
    %253 = vector.shape_cast %252 : vector<32xf32> to vector<32x1xf32>
    %254 = tpu.reciprocal %253 {approx = true} : vector<32x1xf32> -> vector<32x1xf32>
    %255 = vector.broadcast %254 : vector<32x1xf32> to vector<32x32xf32>
    %256 = arith.mulf %251, %255 : vector<32x32xf32>
    %257 = arith.truncf %256 : vector<32x32xf32> to vector<32x32xbf16>
    %cst_103 = arith.constant dense<0.000000e+00> : vector<32x8xf32>
    %258 = tpu.matmul %257, %244, %cst_103 {dimension_numbers = #tpu.dot_dimension_numbers<[1], [0], [0], [1], [0, 0, 1, 1], [], []>} : vector<32x32xbf16>, vector<32x8xbf16>, vector<32x8xf32> -> vector<32x8xf32>
    %259 = vector.extract_strided_slice %230 {offsets = [0, 8], sizes = [32, 8], strides = [1, 1]} : vector<32x64xf32> to vector<32x8xf32>
    %260 = arith.truncf %259 : vector<32x8xf32> to vector<32x8xbf16>
    %261 = vector.extract_strided_slice %230 {offsets = [0, 40], sizes = [32, 8], strides = [1, 1]} : vector<32x64xf32> to vector<32x8xf32>
    %262 = arith.truncf %261 : vector<32x8xf32> to vector<32x8xbf16>
    %263 = vector.extract_strided_slice %238 {offsets = [0, 8], sizes = [32, 8], strides = [1, 1]} : vector<32x32xf32> to vector<32x8xf32>
    %264 = arith.truncf %263 : vector<32x8xf32> to vector<32x8xbf16>
    %cst_104 = arith.constant dense<0.000000e+00> : vector<32x32xf32>
    %265 = tpu.matmul %260, %262, %cst_104 {dimension_numbers = #tpu.dot_dimension_numbers<[1], [1], [0], [0], [0, 0, 1, 0], [], []>} : vector<32x8xbf16>, vector<32x8xbf16>, vector<32x32xf32> -> vector<32x32xf32>
    %266 = arith.addf %265, %39 : vector<32x32xf32>
    %cst_105 = arith.constant dense<0xFF800000> : vector<32xf32>
    %267 = vector.multi_reduction <maximumf>, %266, %cst_105 [1] : vector<32x32xf32> to vector<32xf32>
    %268 = vector.shape_cast %267 : vector<32xf32> to vector<32x1xf32>
    %269 = vector.broadcast %268 : vector<32x1xf32> to vector<32x32xf32>
    %270 = arith.subf %266, %269 : vector<32x32xf32>
    %271 = math.exp %270 : vector<32x32xf32>
    %cst_106 = arith.constant dense<0.000000e+00> : vector<32xf32>
    %272 = vector.multi_reduction <add>, %271, %cst_106 [1] : vector<32x32xf32> to vector<32xf32>
    %273 = vector.shape_cast %272 : vector<32xf32> to vector<32x1xf32>
    %274 = tpu.reciprocal %273 {approx = true} : vector<32x1xf32> -> vector<32x1xf32>
    %275 = vector.broadcast %274 : vector<32x1xf32> to vector<32x32xf32>
    %276 = arith.mulf %271, %275 : vector<32x32xf32>
    %277 = arith.truncf %276 : vector<32x32xf32> to vector<32x32xbf16>
    %cst_107 = arith.constant dense<0.000000e+00> : vector<32x8xf32>
    %278 = tpu.matmul %277, %264, %cst_107 {dimension_numbers = #tpu.dot_dimension_numbers<[1], [0], [0], [1], [0, 0, 1, 1], [], []>} : vector<32x32xbf16>, vector<32x8xbf16>, vector<32x8xf32> -> vector<32x8xf32>
    %279 = vector.extract_strided_slice %230 {offsets = [0, 16], sizes = [32, 8], strides = [1, 1]} : vector<32x64xf32> to vector<32x8xf32>
    %280 = arith.truncf %279 : vector<32x8xf32> to vector<32x8xbf16>
    %281 = vector.extract_strided_slice %230 {offsets = [0, 48], sizes = [32, 8], strides = [1, 1]} : vector<32x64xf32> to vector<32x8xf32>
    %282 = arith.truncf %281 : vector<32x8xf32> to vector<32x8xbf16>
    %283 = vector.extract_strided_slice %238 {offsets = [0, 16], sizes = [32, 8], strides = [1, 1]} : vector<32x32xf32> to vector<32x8xf32>
    %284 = arith.truncf %283 : vector<32x8xf32> to vector<32x8xbf16>
    %cst_108 = arith.constant dense<0.000000e+00> : vector<32x32xf32>
    %285 = tpu.matmul %280, %282, %cst_108 {dimension_numbers = #tpu.dot_dimension_numbers<[1], [1], [0], [0], [0, 0, 1, 0], [], []>} : vector<32x8xbf16>, vector<32x8xbf16>, vector<32x32xf32> -> vector<32x32xf32>
    %286 = arith.addf %285, %39 : vector<32x32xf32>
    %cst_109 = arith.constant dense<0xFF800000> : vector<32xf32>
    %287 = vector.multi_reduction <maximumf>, %286, %cst_109 [1] : vector<32x32xf32> to vector<32xf32>
    %288 = vector.shape_cast %287 : vector<32xf32> to vector<32x1xf32>
    %289 = vector.broadcast %288 : vector<32x1xf32> to vector<32x32xf32>
    %290 = arith.subf %286, %289 : vector<32x32xf32>
    %291 = math.exp %290 : vector<32x32xf32>
    %cst_110 = arith.constant dense<0.000000e+00> : vector<32xf32>
    %292 = vector.multi_reduction <add>, %291, %cst_110 [1] : vector<32x32xf32> to vector<32xf32>
    %293 = vector.shape_cast %292 : vector<32xf32> to vector<32x1xf32>
    %294 = tpu.reciprocal %293 {approx = true} : vector<32x1xf32> -> vector<32x1xf32>
    %295 = vector.broadcast %294 : vector<32x1xf32> to vector<32x32xf32>
    %296 = arith.mulf %291, %295 : vector<32x32xf32>
    %297 = arith.truncf %296 : vector<32x32xf32> to vector<32x32xbf16>
    %cst_111 = arith.constant dense<0.000000e+00> : vector<32x8xf32>
    %298 = tpu.matmul %297, %284, %cst_111 {dimension_numbers = #tpu.dot_dimension_numbers<[1], [0], [0], [1], [0, 0, 1, 1], [], []>} : vector<32x32xbf16>, vector<32x8xbf16>, vector<32x8xf32> -> vector<32x8xf32>
    %299 = vector.extract_strided_slice %230 {offsets = [0, 24], sizes = [32, 8], strides = [1, 1]} : vector<32x64xf32> to vector<32x8xf32>
    %300 = arith.truncf %299 : vector<32x8xf32> to vector<32x8xbf16>
    %301 = vector.extract_strided_slice %230 {offsets = [0, 56], sizes = [32, 8], strides = [1, 1]} : vector<32x64xf32> to vector<32x8xf32>
    %302 = arith.truncf %301 : vector<32x8xf32> to vector<32x8xbf16>
    %303 = vector.extract_strided_slice %238 {offsets = [0, 24], sizes = [32, 8], strides = [1, 1]} : vector<32x32xf32> to vector<32x8xf32>
    %304 = arith.truncf %303 : vector<32x8xf32> to vector<32x8xbf16>
    %cst_112 = arith.constant dense<0.000000e+00> : vector<32x32xf32>
    %305 = tpu.matmul %300, %302, %cst_112 {dimension_numbers = #tpu.dot_dimension_numbers<[1], [1], [0], [0], [0, 0, 1, 0], [], []>} : vector<32x8xbf16>, vector<32x8xbf16>, vector<32x32xf32> -> vector<32x32xf32>
    %306 = arith.addf %305, %39 : vector<32x32xf32>
    %cst_113 = arith.constant dense<0xFF800000> : vector<32xf32>
    %307 = vector.multi_reduction <maximumf>, %306, %cst_113 [1] : vector<32x32xf32> to vector<32xf32>
    %308 = vector.shape_cast %307 : vector<32xf32> to vector<32x1xf32>
    %309 = vector.broadcast %308 : vector<32x1xf32> to vector<32x32xf32>
    %310 = arith.subf %306, %309 : vector<32x32xf32>
    %311 = math.exp %310 : vector<32x32xf32>
    %cst_114 = arith.constant dense<0.000000e+00> : vector<32xf32>
    %312 = vector.multi_reduction <add>, %311, %cst_114 [1] : vector<32x32xf32> to vector<32xf32>
    %313 = vector.shape_cast %312 : vector<32xf32> to vector<32x1xf32>
    %314 = tpu.reciprocal %313 {approx = true} : vector<32x1xf32> -> vector<32x1xf32>
    %315 = vector.broadcast %314 : vector<32x1xf32> to vector<32x32xf32>
    %316 = arith.mulf %311, %315 : vector<32x32xf32>
    %317 = arith.truncf %316 : vector<32x32xf32> to vector<32x32xbf16>
    %cst_115 = arith.constant dense<0.000000e+00> : vector<32x8xf32>
    %318 = tpu.matmul %317, %304, %cst_115 {dimension_numbers = #tpu.dot_dimension_numbers<[1], [0], [0], [1], [0, 0, 1, 1], [], []>} : vector<32x32xbf16>, vector<32x8xbf16>, vector<32x8xf32> -> vector<32x8xf32>
    %319 = tpu.concatenate %258, %278, %298, %318 in 1 : vector<32x8xf32>, vector<32x8xf32>, vector<32x8xf32>, vector<32x8xf32> -> vector<32x32xf32>
    %320 = arith.truncf %319 : vector<32x32xf32> to vector<32x32xbf16>
    %c1_116 = arith.constant 1 : index
    %c0_117 = arith.constant 0 : index
    %c0_118 = arith.constant 0 : index
    %321 = vector.load %arg7[%c1_116, %c0_117, %c0_118] : memref<2x32x32xbf16, #tpu.memory_space<vmem>>, vector<1x32x32xbf16>
    %322 = vector.shape_cast %321 : vector<1x32x32xbf16> to vector<32x32xbf16>
    %cst_119 = arith.constant dense<0.000000e+00> : vector<32x32xf32>
    %323 = tpu.matmul %320, %322, %cst_119 {dimension_numbers = #tpu.dot_dimension_numbers<[1], [0], [0], [1], [0, 0, 1, 1], [], []>} : vector<32x32xbf16>, vector<32x32xbf16>, vector<32x32xf32> -> vector<32x32xf32>
    %c1_120 = arith.constant 1 : index
    %c0_121 = arith.constant 0 : index
    %c0_122 = arith.constant 0 : index
    %324 = vector.load %arg8[%c1_120, %c0_121, %c0_122] : memref<2x1x32xf32, #tpu.memory_space<vmem>>, vector<1x1x32xf32>
    %325 = vector.shape_cast %324 : vector<1x1x32xf32> to vector<1x32xf32>
    %326 = vector.broadcast %325 : vector<1x32xf32> to vector<32x32xf32>
    %327 = arith.addf %323, %326 : vector<32x32xf32>
    %328 = arith.addf %221, %327 : vector<32x32xf32>
    %c1_123 = arith.constant 1 : index
    %c0_124 = arith.constant 0 : index
    %c0_125 = arith.constant 0 : index
    %329 = vector.load %arg9[%c1_123, %c0_124, %c0_125] : memref<2x1x32xf32, #tpu.memory_space<vmem>>, vector<1x1x32xf32>
    %330 = vector.shape_cast %329 : vector<1x1x32xf32> to vector<1x32xf32>
    %c1_126 = arith.constant 1 : index
    %c0_127 = arith.constant 0 : index
    %c0_128 = arith.constant 0 : index
    %331 = vector.load %arg10[%c1_126, %c0_127, %c0_128] : memref<2x1x32xf32, #tpu.memory_space<vmem>>, vector<1x1x32xf32>
    %332 = vector.shape_cast %331 : vector<1x1x32xf32> to vector<1x32xf32>
    %cst_129 = arith.constant dense<0.000000e+00> : vector<32xf32>
    %333 = vector.multi_reduction <add>, %328, %cst_129 [1] : vector<32x32xf32> to vector<32xf32>
    %334 = vector.shape_cast %333 : vector<32xf32> to vector<32x1xf32>
    %cst_130 = arith.constant 3.200000e+01 : f32
    %335 = vector.broadcast %cst_130 : f32 to vector<32x1xf32>
    %336 = arith.divf %334, %335 : vector<32x1xf32>
    %337 = vector.broadcast %336 : vector<32x1xf32> to vector<32x32xf32>
    %338 = arith.subf %328, %337 : vector<32x32xf32>
    %339 = vector.broadcast %336 : vector<32x1xf32> to vector<32x32xf32>
    %340 = arith.subf %328, %339 : vector<32x32xf32>
    %341 = arith.mulf %338, %340 : vector<32x32xf32>
    %cst_131 = arith.constant dense<0.000000e+00> : vector<32xf32>
    %342 = vector.multi_reduction <add>, %341, %cst_131 [1] : vector<32x32xf32> to vector<32xf32>
    %343 = vector.shape_cast %342 : vector<32xf32> to vector<32x1xf32>
    %cst_132 = arith.constant 3.200000e+01 : f32
    %344 = vector.broadcast %cst_132 : f32 to vector<32x1xf32>
    %345 = arith.divf %343, %344 : vector<32x1xf32>
    %346 = vector.broadcast %336 : vector<32x1xf32> to vector<32x32xf32>
    %347 = arith.subf %328, %346 : vector<32x32xf32>
    %cst_133 = arith.constant 9.99999974E-6 : f32
    %348 = vector.broadcast %cst_133 : f32 to vector<32x1xf32>
    %349 = arith.addf %345, %348 : vector<32x1xf32>
    %350 = math.rsqrt %349 : vector<32x1xf32>
    %351 = vector.broadcast %350 : vector<32x1xf32> to vector<32x32xf32>
    %352 = arith.mulf %347, %351 : vector<32x32xf32>
    %353 = vector.broadcast %330 : vector<1x32xf32> to vector<32x32xf32>
    %354 = arith.mulf %352, %353 : vector<32x32xf32>
    %355 = vector.broadcast %332 : vector<1x32xf32> to vector<32x32xf32>
    %356 = arith.addf %354, %355 : vector<32x32xf32>
    %357 = arith.truncf %356 : vector<32x32xf32> to vector<32x32xbf16>
    %c1_134 = arith.constant 1 : index
    %c0_135 = arith.constant 0 : index
    %c0_136 = arith.constant 0 : index
    %358 = vector.load %arg11[%c1_134, %c0_135, %c0_136] : memref<2x32x64xbf16, #tpu.memory_space<vmem>>, vector<1x32x64xbf16>
    %359 = vector.shape_cast %358 : vector<1x32x64xbf16> to vector<32x64xbf16>
    %cst_137 = arith.constant dense<0.000000e+00> : vector<32x64xf32>
    %360 = tpu.matmul %357, %359, %cst_137 {dimension_numbers = #tpu.dot_dimension_numbers<[1], [0], [0], [1], [0, 0, 1, 1], [], []>} : vector<32x32xbf16>, vector<32x64xbf16>, vector<32x64xf32> -> vector<32x64xf32>
    %c1_138 = arith.constant 1 : index
    %c0_139 = arith.constant 0 : index
    %c0_140 = arith.constant 0 : index
    %361 = vector.load %arg12[%c1_138, %c0_139, %c0_140] : memref<2x1x64xf32, #tpu.memory_space<vmem>>, vector<1x1x64xf32>
    %362 = vector.shape_cast %361 : vector<1x1x64xf32> to vector<1x64xf32>
    %363 = vector.broadcast %362 : vector<1x64xf32> to vector<32x64xf32>
    %364 = arith.addf %360, %363 : vector<32x64xf32>
    %cst_141 = arith.constant 0.000000e+00 : f32
    %365 = vector.broadcast %cst_141 : f32 to vector<32x64xf32>
    %366 = arith.maximumf %364, %365 : vector<32x64xf32>
    %367 = arith.truncf %366 : vector<32x64xf32> to vector<32x64xbf16>
    %c1_142 = arith.constant 1 : index
    %c0_143 = arith.constant 0 : index
    %c0_144 = arith.constant 0 : index
    %368 = vector.load %arg13[%c1_142, %c0_143, %c0_144] : memref<2x64x32xbf16, #tpu.memory_space<vmem>>, vector<1x64x32xbf16>
    %369 = vector.shape_cast %368 : vector<1x64x32xbf16> to vector<64x32xbf16>
    %cst_145 = arith.constant dense<0.000000e+00> : vector<32x32xf32>
    %370 = tpu.matmul %367, %369, %cst_145 {dimension_numbers = #tpu.dot_dimension_numbers<[1], [0], [0], [1], [0, 0, 1, 1], [], []>} : vector<32x64xbf16>, vector<64x32xbf16>, vector<32x32xf32> -> vector<32x32xf32>
    %c1_146 = arith.constant 1 : index
    %c0_147 = arith.constant 0 : index
    %c0_148 = arith.constant 0 : index
    %371 = vector.load %arg14[%c1_146, %c0_147, %c0_148] : memref<2x1x32xf32, #tpu.memory_space<vmem>>, vector<1x1x32xf32>
    %372 = vector.shape_cast %371 : vector<1x1x32xf32> to vector<1x32xf32>
    %373 = vector.broadcast %372 : vector<1x32xf32> to vector<32x32xf32>
    %374 = arith.addf %370, %373 : vector<32x32xf32>
    %375 = arith.addf %356, %374 : vector<32x32xf32>
    %c1_149 = arith.constant 1 : index
    %c0_150 = arith.constant 0 : index
    %c0_151 = arith.constant 0 : index
    %376 = vector.load %arg15[%c1_149, %c0_150, %c0_151] : memref<2x1x32xf32, #tpu.memory_space<vmem>>, vector<1x1x32xf32>
    %377 = vector.shape_cast %376 : vector<1x1x32xf32> to vector<1x32xf32>
    %c1_152 = arith.constant 1 : index
    %c0_153 = arith.constant 0 : index
    %c0_154 = arith.constant 0 : index
    %378 = vector.load %arg16[%c1_152, %c0_153, %c0_154] : memref<2x1x32xf32, #tpu.memory_space<vmem>>, vector<1x1x32xf32>
    %379 = vector.shape_cast %378 : vector<1x1x32xf32> to vector<1x32xf32>
    %cst_155 = arith.constant dense<0.000000e+00> : vector<32xf32>
    %380 = vector.multi_reduction <add>, %375, %cst_155 [1] : vector<32x32xf32> to vector<32xf32>
    %381 = vector.shape_cast %380 : vector<32xf32> to vector<32x1xf32>
    %cst_156 = arith.constant 3.200000e+01 : f32
    %382 = vector.broadcast %cst_156 : f32 to vector<32x1xf32>
    %383 = arith.divf %381, %382 : vector<32x1xf32>
    %384 = vector.broadcast %383 : vector<32x1xf32> to vector<32x32xf32>
    %385 = arith.subf %375, %384 : vector<32x32xf32>
    %386 = vector.broadcast %383 : vector<32x1xf32> to vector<32x32xf32>
    %387 = arith.subf %375, %386 : vector<32x32xf32>
    %388 = arith.mulf %385, %387 : vector<32x32xf32>
    %cst_157 = arith.constant dense<0.000000e+00> : vector<32xf32>
    %389 = vector.multi_reduction <add>, %388, %cst_157 [1] : vector<32x32xf32> to vector<32xf32>
    %390 = vector.shape_cast %389 : vector<32xf32> to vector<32x1xf32>
    %cst_158 = arith.constant 3.200000e+01 : f32
    %391 = vector.broadcast %cst_158 : f32 to vector<32x1xf32>
    %392 = arith.divf %390, %391 : vector<32x1xf32>
    %393 = vector.broadcast %383 : vector<32x1xf32> to vector<32x32xf32>
    %394 = arith.subf %375, %393 : vector<32x32xf32>
    %cst_159 = arith.constant 9.99999974E-6 : f32
    %395 = vector.broadcast %cst_159 : f32 to vector<32x1xf32>
    %396 = arith.addf %392, %395 : vector<32x1xf32>
    %397 = math.rsqrt %396 : vector<32x1xf32>
    %398 = vector.broadcast %397 : vector<32x1xf32> to vector<32x32xf32>
    %399 = arith.mulf %394, %398 : vector<32x32xf32>
    %400 = vector.broadcast %377 : vector<1x32xf32> to vector<32x32xf32>
    %401 = arith.mulf %399, %400 : vector<32x32xf32>
    %402 = vector.broadcast %379 : vector<1x32xf32> to vector<32x32xf32>
    %403 = arith.addf %401, %402 : vector<32x32xf32>
    %c0_160 = arith.constant 0 : index
    %c0_161 = arith.constant 0 : index
    %404 = vector.load %arg17[%c0_160, %c0_161] : memref<1x32xf32, #tpu.memory_space<vmem>>, vector<1x32xf32>
    %c0_162 = arith.constant 0 : index
    %c0_163 = arith.constant 0 : index
    %405 = vector.load %arg18[%c0_162, %c0_163] : memref<1x32xf32, #tpu.memory_space<vmem>>, vector<1x32xf32>
    %cst_164 = arith.constant dense<0.000000e+00> : vector<32xf32>
    %406 = vector.multi_reduction <add>, %403, %cst_164 [1] : vector<32x32xf32> to vector<32xf32>
    %407 = vector.shape_cast %406 : vector<32xf32> to vector<32x1xf32>
    %cst_165 = arith.constant 3.200000e+01 : f32
    %408 = vector.broadcast %cst_165 : f32 to vector<32x1xf32>
    %409 = arith.divf %407, %408 : vector<32x1xf32>
    %410 = vector.broadcast %409 : vector<32x1xf32> to vector<32x32xf32>
    %411 = arith.subf %403, %410 : vector<32x32xf32>
    %412 = vector.broadcast %409 : vector<32x1xf32> to vector<32x32xf32>
    %413 = arith.subf %403, %412 : vector<32x32xf32>
    %414 = arith.mulf %411, %413 : vector<32x32xf32>
    %cst_166 = arith.constant dense<0.000000e+00> : vector<32xf32>
    %415 = vector.multi_reduction <add>, %414, %cst_166 [1] : vector<32x32xf32> to vector<32xf32>
    %416 = vector.shape_cast %415 : vector<32xf32> to vector<32x1xf32>
    %cst_167 = arith.constant 3.200000e+01 : f32
    %417 = vector.broadcast %cst_167 : f32 to vector<32x1xf32>
    %418 = arith.divf %416, %417 : vector<32x1xf32>
    %419 = vector.broadcast %409 : vector<32x1xf32> to vector<32x32xf32>
    %420 = arith.subf %403, %419 : vector<32x32xf32>
    %cst_168 = arith.constant 9.99999974E-6 : f32
    %421 = vector.broadcast %cst_168 : f32 to vector<32x1xf32>
    %422 = arith.addf %418, %421 : vector<32x1xf32>
    %423 = math.rsqrt %422 : vector<32x1xf32>
    %424 = vector.broadcast %423 : vector<32x1xf32> to vector<32x32xf32>
    %425 = arith.mulf %420, %424 : vector<32x32xf32>
    %426 = vector.broadcast %404 : vector<1x32xf32> to vector<32x32xf32>
    %427 = arith.mulf %425, %426 : vector<32x32xf32>
    %428 = vector.broadcast %405 : vector<1x32xf32> to vector<32x32xf32>
    %429 = arith.addf %427, %428 : vector<32x32xf32>
    %c0_169 = arith.constant 0 : index
    %c0_170 = arith.constant 0 : index
    %430 = vector.load %arg19[%c0_169, %c0_170] : memref<32x32xf32, #tpu.memory_space<vmem>>, vector<32x32xf32>
    tpu.vector_store %arg19[%c0_169, %c0_170], %429 {strides = array<i32>} : memref<32x32xf32, #tpu.memory_space<vmem>>, vector<32x32xf32>,
    return
  }
  func.func @transform_0(%arg0: i32) -> (i32, i32) {
    %c0_i32 = arith.constant 0 : i32
    %c0_i32_0 = arith.constant 0 : i32
    %c0_i32_1 = arith.constant 0 : i32
    return %c0_i32, %c0_i32_0 : i32, i32
  }
  func.func @transform_1(%arg0: i32) -> (i32, i32) {
    %c0_i32 = arith.constant 0 : i32
    %c0_i32_0 = arith.constant 0 : i32
    %c0_i32_1 = arith.constant 0 : i32
    return %c0_i32, %c0_i32_0 : i32, i32
  }
  func.func @transform_2(%arg0: i32) -> (i32, i32, i32) {
    %c0_i32 = arith.constant 0 : i32
    %c0_i32_0 = arith.constant 0 : i32
    %c0_i32_1 = arith.constant 0 : i32
    %c0_i32_2 = arith.constant 0 : i32
    return %c0_i32, %c0_i32_0, %c0_i32_1 : i32, i32, i32
  }
  func.func @transform_3(%arg0: i32) -> (i32, i32, i32) {
    %c0_i32 = arith.constant 0 : i32
    %c0_i32_0 = arith.constant 0 : i32
    %c0_i32_1 = arith.constant 0 : i32
    %c0_i32_2 = arith.constant 0 : i32
    return %c0_i32, %c0_i32_0, %c0_i32_1 : i32, i32, i32
  }
  func.func @transform_4(%arg0: i32) -> (i32, i32, i32) {
    %c0_i32 = arith.constant 0 : i32
    %c0_i32_0 = arith.constant 0 : i32
    %c0_i32_1 = arith.constant 0 : i32
    %c0_i32_2 = arith.constant 0 : i32
    return %c0_i32, %c0_i32_0, %c0_i32_1 : i32, i32, i32
  }
  func.func @transform_5(%arg0: i32) -> (i32, i32, i32) {
    %c0_i32 = arith.constant 0 : i32
    %c0_i32_0 = arith.constant 0 : i32
    %c0_i32_1 = arith.constant 0 : i32
    %c0_i32_2 = arith.constant 0 : i32
    return %c0_i32, %c0_i32_0, %c0_i32_1 : i32, i32, i32
  }
  func.func @transform_6(%arg0: i32) -> (i32, i32, i32) {
    %c0_i32 = arith.constant 0 : i32
    %c0_i32_0 = arith.constant 0 : i32
    %c0_i32_1 = arith.constant 0 : i32
    %c0_i32_2 = arith.constant 0 : i32
    return %c0_i32, %c0_i32_0, %c0_i32_1 : i32, i32, i32
  }
  func.func @transform_7(%arg0: i32) -> (i32, i32, i32) {
    %c0_i32 = arith.constant 0 : i32
    %c0_i32_0 = arith.constant 0 : i32
    %c0_i32_1 = arith.constant 0 : i32
    %c0_i32_2 = arith.constant 0 : i32
    return %c0_i32, %c0_i32_0, %c0_i32_1 : i32, i32, i32
  }
  func.func @transform_8(%arg0: i32) -> (i32, i32, i32) {
    %c0_i32 = arith.constant 0 : i32
    %c0_i32_0 = arith.constant 0 : i32
    %c0_i32_1 = arith.constant 0 : i32
    %c0_i32_2 = arith.constant 0 : i32
    return %c0_i32, %c0_i32_0, %c0_i32_1 : i32, i32, i32
  }
  func.func @transform_9(%arg0: i32) -> (i32, i32, i32) {
    %c0_i32 = arith.constant 0 : i32
    %c0_i32_0 = arith.constant 0 : i32
    %c0_i32_1 = arith.constant 0 : i32
    %c0_i32_2 = arith.constant 0 : i32
    return %c0_i32, %c0_i32_0, %c0_i32_1 : i32, i32, i32
  }
  func.func @transform_10(%arg0: i32) -> (i32, i32, i32) {
    %c0_i32 = arith.constant 0 : i32
    %c0_i32_0 = arith.constant 0 : i32
    %c0_i32_1 = arith.constant 0 : i32
    %c0_i32_2 = arith.constant 0 : i32
    return %c0_i32, %c0_i32_0, %c0_i32_1 : i32, i32, i32
  }
  func.func @transform_11(%arg0: i32) -> (i32, i32, i32) {
    %c0_i32 = arith.constant 0 : i32
    %c0_i32_0 = arith.constant 0 : i32
    %c0_i32_1 = arith.constant 0 : i32
    %c0_i32_2 = arith.constant 0 : i32
    return %c0_i32, %c0_i32_0, %c0_i32_1 : i32, i32, i32
  }
  func.func @transform_12(%arg0: i32) -> (i32, i32, i32) {
    %c0_i32 = arith.constant 0 : i32
    %c0_i32_0 = arith.constant 0 : i32
    %c0_i32_1 = arith.constant 0 : i32
    %c0_i32_2 = arith.constant 0 : i32
    return %c0_i32, %c0_i32_0, %c0_i32_1 : i32, i32, i32
  }
  func.func @transform_13(%arg0: i32) -> (i32, i32, i32) {
    %c0_i32 = arith.constant 0 : i32
    %c0_i32_0 = arith.constant 0 : i32
    %c0_i32_1 = arith.constant 0 : i32
    %c0_i32_2 = arith.constant 0 : i32
    return %c0_i32, %c0_i32_0, %c0_i32_1 : i32, i32, i32
  }
  func.func @transform_14(%arg0: i32) -> (i32, i32, i32) {
    %c0_i32 = arith.constant 0 : i32
    %c0_i32_0 = arith.constant 0 : i32
    %c0_i32_1 = arith.constant 0 : i32
    %c0_i32_2 = arith.constant 0 : i32
    return %c0_i32, %c0_i32_0, %c0_i32_1 : i32, i32, i32
  }
  func.func @transform_15(%arg0: i32) -> (i32, i32, i32) {
    %c0_i32 = arith.constant 0 : i32
    %c0_i32_0 = arith.constant 0 : i32
    %c0_i32_1 = arith.constant 0 : i32
    %c0_i32_2 = arith.constant 0 : i32
    return %c0_i32, %c0_i32_0, %c0_i32_1 : i32, i32, i32
  }
  func.func @transform_16(%arg0: i32) -> (i32, i32) {
    %c0_i32 = arith.constant 0 : i32
    %c0_i32_0 = arith.constant 0 : i32
    %c0_i32_1 = arith.constant 0 : i32
    return %c0_i32, %c0_i32_0 : i32, i32
  }
  func.func @transform_17(%arg0: i32) -> (i32, i32) {
    %c0_i32 = arith.constant 0 : i32
    %c0_i32_0 = arith.constant 0 : i32
    %c0_i32_1 = arith.constant 0 : i32
    return %c0_i32, %c0_i32_0 : i32, i32
  }
  func.func @transform_18(%arg0: i32) -> (i32, i32) {
    %c0_i32 = arith.constant 0 : i32
    %c0_i32_0 = arith.constant 0 : i32
    %c0_i32_1 = arith.constant 0 : i32
    return %c0_i32, %c0_i32_0 : i32, i32
  }
}

</mosaic_0001>

<llo_original>
// kernel: tpu_custom_call.1
$region0: #{tpu_custom_call.1}
  #allocation0 [shape = 'u32[]', space=smem, size = 0x4, offset = 0x4, fixed_abs, tag = 'smem constant byte address 0x4 - core index']
  #allocation1 [shape = 'u32[144,128]{1,0:T(1,128)}', space=vmem, size = 0x12000, scoped, tag = 'internal scratch']
  %s0 = inlined_call_operand.vmem [shape: f32[32,32], index: 0, kind: input, shape index: {}]
  %s1 = inlined_call_operand.vmem [shape: f32[32,32], index: 1, kind: input, shape index: {}]
  %s2 = inlined_call_operand.vmem [shape: bf16[2,32,64], index: 2, kind: input, shape index: {}]
  %s3 = inlined_call_operand.vmem [shape: f32[2,1,64], index: 3, kind: input, shape index: {}]
  %s4 = inlined_call_operand.hbm [shape: bf16[2,32,32], index: 4, kind: input, shape index: {}]
  %s5 = inlined_call_operand.vmem [shape: f32[2,1,32], index: 5, kind: input, shape index: {}]
  %s6 = inlined_call_operand.hbm [shape: bf16[2,32,32], index: 6, kind: input, shape index: {}]
  %s7 = inlined_call_operand.vmem [shape: f32[2,1,32], index: 7, kind: input, shape index: {}]
  %s8 = inlined_call_operand.vmem [shape: f32[2,1,32], index: 8, kind: input, shape index: {}]
  %s9 = inlined_call_operand.vmem [shape: f32[2,1,32], index: 9, kind: input, shape index: {}]
  %s10 = inlined_call_operand.hbm [shape: bf16[2,32,64], index: 10, kind: input, shape index: {}]
  %s11 = inlined_call_operand.vmem [shape: f32[2,1,64], index: 11, kind: input, shape index: {}]
  %s12 = inlined_call_operand.vmem [shape: bf16[2,64,32], index: 12, kind: input, shape index: {}]
  %s13 = inlined_call_operand.vmem [shape: f32[2,1,32], index: 13, kind: input, shape index: {}]
  %s14 = inlined_call_operand.vmem [shape: f32[2,1,32], index: 14, kind: input, shape index: {}]
  %s15 = inlined_call_operand.vmem [shape: f32[2,1,32], index: 15, kind: input, shape index: {}]
  %s16 = inlined_call_operand.vmem [shape: f32[1,32], index: 16, kind: input, shape index: {}]
  %s17 = inlined_call_operand.vmem [shape: f32[1,32], index: 17, kind: input, shape index: {}]
  %s18 = inlined_call_operand.hbm [shape: f32[32,32], index: 18, kind: output, shape index: {}]
  %s19 = sld [smem:[#allocation0]]
  $region94: #{tpu_custom_call.1} parent=0
    _
  %s21 = ssub.s32 1, %s19
  %s22 = scalar_select 0, %s21, %s19
  $region1: #{tpu_custom_call.1} parent=0
    #allocation2 [shape = 'u8[16384]{0}', space=vmem, size = 0x4000, scoped, tag = 'input window, operand 4, single buffered']
    #allocation3 [shape = 's32[1]{0}', space=sflag, size = 0x4, scoped, tag = 'scoped memory for tpu_custom_call.1']
    #allocation4 [shape = 's32[1]{0}', space=sflag, size = 0x4, scoped, tag = 'scoped memory for tpu_custom_call.1']
    #allocation5 [shape = 'u8[16384]{0}', space=vmem, size = 0x4000, scoped, tag = 'input window, operand 6, single buffered']
    #allocation6 [shape = 's32[1]{0}', space=sflag, size = 0x4, scoped, tag = 'scoped memory for tpu_custom_call.1']
    #allocation7 [shape = 'u8[16384]{0}', space=vmem, size = 0x4000, scoped, tag = 'input window, operand 10, single buffered']
    #allocation8 [shape = 'u8[16384]{0}', space=vmem, size = 0x4000, scoped, tag = 'output window, operand 0, single buffered']
    %23 = vsyncpa [#allocation3], 0
    %24 = vsyncpa [#allocation6], 0
    %25 = vsyncpa [#allocation4], 0
    // Predicated region
    $region2: #{tpu_custom_call.1} parent=1 // pred_check
      _
    $region3: #{tpu_custom_call.1} parent=1 // pred_check_branch
      %27 = sbr.rel (0) target = $region5
    $region4: #{tpu_custom_call.1} parent=1 // pred_region
      _
    $region5: #{tpu_custom_call.1} parent=1 // pred_fallthru
      _
    // Predicated region
    $region6: #{tpu_custom_call.1} parent=1 // pred_check
      _
    $region7: #{tpu_custom_call.1} parent=1 // pred_check_branch
      %29 = sbr.rel (0) target = $region9
    $region8: #{tpu_custom_call.1} parent=1 // pred_region
      _
    $region9: #{tpu_custom_call.1} parent=1 // pred_fallthru
      _
    // Predicated region
    $region10: #{tpu_custom_call.1} parent=1 // pred_check
      _
    $region11: #{tpu_custom_call.1} parent=1 // pred_check_branch
      %31 = sbr.rel (0) target = $region13
    $region12: #{tpu_custom_call.1} parent=1 // pred_region
      _
    $region13: #{tpu_custom_call.1} parent=1 // pred_fallthru
      _
    // Predicated region
    $region14: #{tpu_custom_call.1} parent=1 // pred_check
      _
    $region15: #{tpu_custom_call.1} parent=1 // pred_check_branch
      %33 = sbr.rel (0) target = $region17
    $region16: #{tpu_custom_call.1} parent=1 // pred_region
      _
    $region17: #{tpu_custom_call.1} parent=1 // pred_fallthru
      _
    // Predicated region
    $region18: #{tpu_custom_call.1} parent=1 // pred_check
      _
    $region19: #{tpu_custom_call.1} parent=1 // pred_check_branch
      %35 = sbr.rel (0) target = $region21
    $region20: #{tpu_custom_call.1} parent=1 // pred_region
      %s37 = ssub.s32 512, 512
      %38 = vsyncadd [#allocation3], %s37
      %s39 = sshll.u32 [#allocation2], 4
      %s40 = int_to_ptr.vmem [resolvable:$true] %s39
      %45 = dma.hbm_to_vmem [thread:$0]  %s4, 512, %s40, [#allocation3], 64, 64, 4
    $region21: #{tpu_custom_call.1} parent=1 // pred_fallthru
      _
    // Predicated region
    $region22: #{tpu_custom_call.1} parent=1 // pred_check
      _
    $region23: #{tpu_custom_call.1} parent=1 // pred_check_branch
      %47 = sbr.rel (0) target = $region25
    $region24: #{tpu_custom_call.1} parent=1 // pred_region
      _
    $region25: #{tpu_custom_call.1} parent=1 // pred_fallthru
      _
    // Predicated region
    $region26: #{tpu_custom_call.1} parent=1 // pred_check
      _
    $region27: #{tpu_custom_call.1} parent=1 // pred_check_branch
      %49 = sbr.rel (0) target = $region29
    $region28: #{tpu_custom_call.1} parent=1 // pred_region
      %s51 = ssub.s32 512, 512
      %52 = vsyncadd [#allocation6], %s51
      %s53 = sshll.u32 [#allocation5], 4
      %s54 = int_to_ptr.vmem [resolvable:$true] %s53
      %59 = dma.hbm_to_vmem [thread:$0]  %s6, 512, %s54, [#allocation6], 64, 64, 4
    $region29: #{tpu_custom_call.1} parent=1 // pred_fallthru
      _
    // Predicated region
    $region30: #{tpu_custom_call.1} parent=1 // pred_check
      _
    $region31: #{tpu_custom_call.1} parent=1 // pred_check_branch
      %61 = sbr.rel (0) target = $region33
    $region32: #{tpu_custom_call.1} parent=1 // pred_region
      _
    $region33: #{tpu_custom_call.1} parent=1 // pred_fallthru
      _
    // Predicated region
    $region34: #{tpu_custom_call.1} parent=1 // pred_check
      _
    $region35: #{tpu_custom_call.1} parent=1 // pred_check_branch
      %63 = sbr.rel (0) target = $region37
    $region36: #{tpu_custom_call.1} parent=1 // pred_region
      _
    $region37: #{tpu_custom_call.1} parent=1 // pred_fallthru
      _
    // Predicated region
    $region38: #{tpu_custom_call.1} parent=1 // pred_check
      _
    $region39: #{tpu_custom_call.1} parent=1 // pred_check_branch
      %65 = sbr.rel (0) target = $region41
    $region40: #{tpu_custom_call.1} parent=1 // pred_region
      _
    $region41: #{tpu_custom_call.1} parent=1 // pred_fallthru
      _
    // Predicated region
    $region42: #{tpu_custom_call.1} parent=1 // pred_check
      _
    $region43: #{tpu_custom_call.1} parent=1 // pred_check_branch
      %67 = sbr.rel (0) target = $region45
    $region44: #{tpu_custom_call.1} parent=1 // pred_region
      %s69 = ssub.s32 512, 512
      %70 = vsyncadd [#allocation6], %s69
      %s71 = sshll.u32 [#allocation7], 4
      %s72 = int_to_ptr.vmem [resolvable:$true] %s71
      %77 = dma.hbm_to_vmem [thread:$0]  %s10, 512, %s72, [#allocation6], 64, 64, 4
    $region45: #{tpu_custom_call.1} parent=1 // pred_fallthru
      _
    // Predicated region
    $region46: #{tpu_custom_call.1} parent=1 // pred_check
      _
    $region47: #{tpu_custom_call.1} parent=1 // pred_check_branch
      %79 = sbr.rel (0) target = $region49
    $region48: #{tpu_custom_call.1} parent=1 // pred_region
      _
    $region49: #{tpu_custom_call.1} parent=1 // pred_fallthru
      _
    // Predicated region
    $region50: #{tpu_custom_call.1} parent=1 // pred_check
      _
    $region51: #{tpu_custom_call.1} parent=1 // pred_check_branch
      %81 = sbr.rel (0) target = $region53
    $region52: #{tpu_custom_call.1} parent=1 // pred_region
      _
    $region53: #{tpu_custom_call.1} parent=1 // pred_fallthru
      _
    // Predicated region
    $region54: #{tpu_custom_call.1} parent=1 // pred_check
      _
    $region55: #{tpu_custom_call.1} parent=1 // pred_check_branch
      %83 = sbr.rel (0) target = $region57
    $region56: #{tpu_custom_call.1} parent=1 // pred_region
      _
    $region57: #{tpu_custom_call.1} parent=1 // pred_fallthru
      _
    // Predicated region
    $region58: #{tpu_custom_call.1} parent=1 // pred_check
      _
    $region59: #{tpu_custom_call.1} parent=1 // pred_check_branch
      %85 = sbr.rel (0) target = $region61
    $region60: #{tpu_custom_call.1} parent=1 // pred_region
      _
    $region61: #{tpu_custom_call.1} parent=1 // pred_fallthru
      _
    // Predicated region
    $region62: #{tpu_custom_call.1} parent=1 // pred_check
      _
    $region63: #{tpu_custom_call.1} parent=1 // pred_check_branch
      %87 = sbr.rel (0) target = $region65
    $region64: #{tpu_custom_call.1} parent=1 // pred_region
      _
    $region65: #{tpu_custom_call.1} parent=1 // pred_fallthru
      _
    // Predicated region
    $region66: #{tpu_custom_call.1} parent=1 // pred_check
      _
    $region67: #{tpu_custom_call.1} parent=1 // pred_check_branch
      %89 = sbr.rel (0) target = $region69
    $region68: #{tpu_custom_call.1} parent=1 // pred_region
      _
    $region69: #{tpu_custom_call.1} parent=1 // pred_fallthru
      _
    // Predicated region
    $region70: #{tpu_custom_call.1} parent=1 // pred_check
      _
    $region71: #{tpu_custom_call.1} parent=1 // pred_check_branch
      %91 = sbr.rel (0) target = $region73
    $region72: #{tpu_custom_call.1} parent=1 // pred_region
      _
    $region73: #{tpu_custom_call.1} parent=1 // pred_fallthru
      _
    // Predicated region
    $region74: #{tpu_custom_call.1} parent=1 // pred_check
      _
    $region75: #{tpu_custom_call.1} parent=1 // pred_check_branch
      %93 = sbr.rel (0) target = $region77
    $region76: #{tpu_custom_call.1} parent=1 // pred_region
      %94 = dma.done [#allocation3], 512
    $region77: #{tpu_custom_call.1} parent=1 // pred_fallthru
      _
    // Predicated region
    $region78: #{tpu_custom_call.1} parent=1 // pred_check
      _
    $region79: #{tpu_custom_call.1} parent=1 // pred_check_branch
      %96 = sbr.rel (0) target = $region81
    $region80: #{tpu_custom_call.1} parent=1 // pred_region
      %97 = dma.done [#allocation6], 512
    $region81: #{tpu_custom_call.1} parent=1 // pred_fallthru
      _
    // Predicated region
    $region82: #{tpu_custom_call.1} parent=1 // pred_check
      _
    $region83: #{tpu_custom_call.1} parent=1 // pred_check_branch
      %99 = sbr.rel (0) target = $region85
    $region84: #{tpu_custom_call.1} parent=1 // pred_region
      %100 = dma.done [#allocation6], 512
    $region85: #{tpu_custom_call.1} parent=1 // pred_fallthru
      _
    %v102 = vld [vmem:[%s0] sm:$0xff]
    %v103 = vld [vmem:[%s0 + $0x8] sm:$0xff]
    %v104 = vld [vmem:[%s0 + $0x10] sm:$0xff]
    %v105 = vld [vmem:[%s0 + $0x18] sm:$0xff]
    %v106 = vld [vmem:[%s1] sm:$0xff]
    %v107 = vld [vmem:[%s1 + $0x8] sm:$0xff]
    %v108 = vld [vmem:[%s1 + $0x10] sm:$0xff]
    %v109 = vld [vmem:[%s1 + $0x18] sm:$0xff]
    %v110 = vlaneseq
    %v111 = vshrl.u32 %v110, 7
    %v112 = vadd.s32 %v111, 8
    %v113 = vadd.s32 %v111, 16
    %v114 = vadd.s32 %v111, 24
    %vm115 = vcmp.lt.s32.totalorder %v111, 0
    %v116 = vsub.s32 0, %v111
    %v117 = vsel %vm115, %v116, %v111
    %v118 = vshrl.u32 %v117, 1
    %v119 = vand.u32 %v117, 1
    %v120 = vsub.s32 0, %v119
    %v121 = vsel %vm115, %v120, %v119
    %vm122 = vcmp.lt.s32.totalorder %v112, 0
    %v123 = vsub.s32 0, %v112
    %v124 = vsel %vm122, %v123, %v112
    %v125 = vshrl.u32 %v124, 1
    %v126 = vand.u32 %v124, 1
    %v127 = vsub.s32 0, %v126
    %v128 = vsel %vm122, %v127, %v126
    %vm129 = vcmp.lt.s32.totalorder %v113, 0
    %v130 = vsub.s32 0, %v113
    %v131 = vsel %vm129, %v130, %v113
    %v132 = vshrl.u32 %v131, 1
    %v133 = vand.u32 %v131, 1
    %v134 = vsub.s32 0, %v133
    %v135 = vsel %vm129, %v134, %v133
    %vm136 = vcmp.lt.s32.totalorder %v114, 0
    %v137 = vsub.s32 0, %v114
    %v138 = vsel %vm136, %v137, %v114
    %v139 = vshrl.u32 %v138, 1
    %v140 = vand.u32 %v138, 1
    %v141 = vsub.s32 0, %v140
    %v142 = vsel %vm136, %v141, %v140
    %vm143 = vcmp.ne.s32.totalorder %v121, 0
    %vm144 = vcmp.ne.s32.totalorder %v128, 0
    %vm145 = vcmp.ne.s32.totalorder %v135, 0
    %vm146 = vcmp.ne.s32.totalorder %v142, 0
    %vm147 = vcmp.lt.s32.totalorder %v121, 0
    %vm148 = vcmp.lt.s32.totalorder %v128, 0
    %vm149 = vcmp.lt.s32.totalorder %v135, 0
    %vm150 = vcmp.lt.s32.totalorder %v142, 0
    %vm151 = vmand %vm147, %vm143
    %vm152 = vmand %vm148, %vm144
    %vm153 = vmand %vm149, %vm145
    %vm154 = vmand %vm150, %vm146
    %v155 = vadd.s32 %v121, 2
    %v156 = vadd.s32 %v128, 2
    %v157 = vadd.s32 %v135, 2
    %v158 = vadd.s32 %v142, 2
    %v159 = vsel %vm151, %v155, %v121
    %v160 = vsel %vm152, %v156, %v128
    %v161 = vsel %vm153, %v157, %v135
    %v162 = vsel %vm154, %v158, %v142
    %v163 = vlaneseq
    %v164 = vand.u32 %v163, 127
    %vm165 = vcmp.lt.s32.totalorder %v164, 0
    %v166 = vsub.s32 0, %v164
    %v167 = vsel %vm165, %v166, %v164
    %v168 = vshrl.u32 %v167, 1
    %v169 = vand.u32 %v167, 1
    %v170 = vsub.s32 0, %v169
    %v171 = vsel %vm165, %v170, %v169
    %vm172 = vcmp.ne.s32.totalorder %v171, 0
    %vm173 = vcmp.lt.s32.totalorder %v171, 0
    %vm174 = vmand %vm173, %vm172
    %v175 = vadd.s32 %v171, 2
    %v176 = vsel %vm174, %v175, %v171
    %vm177 = vcmp.eq.s32.totalorder %v159, %v176
    %vm178 = vcmp.eq.s32.totalorder %v160, %v176
    %vm179 = vcmp.eq.s32.totalorder %v161, %v176
    %vm180 = vcmp.eq.s32.totalorder %v162, %v176
    %v181 = vsel %vm177, 0.0, -1e+30
    %v182 = vsel %vm178, 0.0, -1e+30
    %v183 = vsel %vm179, 0.0, -1e+30
    %v184 = vsel %vm180, 0.0, -1e+30
    %v185 = vadd.f32 %v102, %v106
    %v186 = vadd.f32 %v103, %v107
    %v187 = vadd.f32 %v104, %v108
    %v188 = vadd.f32 %v105, %v109
    %v189 = vpack.c.bf16 %v186, %v185
    %v190 = vpack.c.bf16 %v188, %v187
    %v191 = vld [vmem:[%s2] sm:$0xf]
    %v192 = vld [vmem:[%s2 + $0x4] sm:$0xf]
    %v193 = vld [vmem:[%s2 + $0x8] sm:$0xf]
    %v194 = vld [vmem:[%s2 + $0xc] sm:$0xf]
    %v195 = vld [vmem:[%s3] sm:$0x1]
    %v197 = vlaneseq
    %v198 = vshrl.u32 %v197, 7
    %v199 = vsub.s32 0, %v198
    %v200 = vrot.slane %v195, %v199
    %v206 = vunpack.c.l.b16 %v191
    %v207 = vunpack.c.l.b16 %v192
    %v208 = vunpack.c.l.b16 %v193
    %v209 = vunpack.c.l.b16 %v194
    %v210 = vpack.c.b16 %v207, %v206
    %v211 = vpack.c.b16 %v209, %v208
    %vm214 = vcmask 261120
    %v216 = vsel %vm214, %v189, 0
    %v219 = vsel %vm214, %v190, 0
    %221 = vmatprep.subr.bf16.mxu0 0
    %222 = vmatpush1.bf16.msra.mxu0 %v210
    %223 = vmatprep.subr.bf16.mxu0 0
    %224 = vmatpush1.bf16.msra.mxu0 %v211
    %225 = vmatprep.subr.bf16.mxu0 0
    %226 = vmatpush1.bf16.msra.mxu0 0
    %227 = vmatprep.subr.bf16.mxu0 0
    %228 = vmatpush1.bf16.msra.mxu0 0
    %229 = vmatprep.subr.bf16.mxu0 0
    %230 = vmatpush1.bf16.msra.mxu0 0
    %231 = vmatprep.subr.bf16.mxu0 0
    %232 = vmatpush1.bf16.msra.mxu0 0
    %233 = vmatprep.subr.bf16.mxu0 0
    %234 = vmatpush1.bf16.msra.mxu0 0
    %235 = vmatprep.subr.bf16.mxu0 0
    %236 = vmatpush1.bf16.msra.mxu0 0
    %237 = vmatprep.subr.bf16.mxu0 0
    %238 = vmatpush1.bf16.msra.mxu0 0
    %239 = vmatprep.subr.bf16.mxu0 0
    %240 = vmatpush1.bf16.msra.mxu0 0
    %241 = vmatprep.subr.bf16.mxu0 0
    %242 = vmatpush1.bf16.msra.mxu0 0
    %243 = vmatprep.subr.bf16.mxu0 0
    %244 = vmatpush1.bf16.msra.mxu0 0
    %245 = vmatprep.subr.bf16.mxu0 0
    %246 = vmatpush1.bf16.msra.mxu0 0
    %247 = vmatprep.subr.bf16.mxu0 0
    %248 = vmatpush1.bf16.msra.mxu0 0
    %249 = vmatprep.subr.bf16.mxu0 0
    %250 = vmatpush1.bf16.msra.mxu0 0
    %251 = vmatprep.subr.bf16.mxu0 0
    %252 = vmatpush1.bf16.msra.mxu0 0
    %253 = vmatprep.mubr.bf16.mxu0 0
    %254 = vmatmul.mubr.bf16.gmra.mrb[0].mxu0 %v216
    %v255 = vpop.f32.mrb[0].mxu0
    %v256 = vadd.f32 %v200, %v255
    %v257 = vpop.f32.mrb[0].mxu0
    %v258 = vpop.f32.mrb[0].mxu0
    %v259 = vadd.f32 %v200, %v258
    %v260 = vpop.f32.mrb[0].mxu0
    %261 = vmatprep.mubr.bf16.mxu0 0
    %262 = vmatmul.mubr.bf16.gmra.mrb[0].mxu0 %v219
    %v263 = vpop.f32.mrb[0].mxu0
    %v264 = vadd.f32 %v200, %v263
    %v265 = vpop.f32.mrb[0].mxu0
    %v266 = vpop.f32.mrb[0].mxu0
    %v267 = vadd.f32 %v200, %v266
    %v268 = vpop.f32.mrb[0].mxu0
    %269 = vdwg.mxu0
    %v270 = vpack.c.bf16 %v103, %v102
    %v271 = vpack.c.bf16 %v105, %v104
    %v272 = vld [vmem:[#allocation2] sm:$0xf]
    %v273 = vld [vmem:[#allocation2 + $0x4] sm:$0xf]
    %v274 = vld [vmem:[#allocation2 + $0x8] sm:$0xf]
    %v275 = vld [vmem:[#allocation2 + $0xc] sm:$0xf]
    %v276 = vld [vmem:[%s5] sm:$0x1]
    %v278 = vlaneseq
    %v279 = vshrl.u32 %v278, 7
    %v280 = vsub.s32 0, %v279
    %v281 = vrot.slane %v276, %v280
    %v287 = vunpack.c.l.b16 %v272
    %v288 = vunpack.c.l.b16 %v273
    %v289 = vunpack.c.l.b16 %v274
    %v290 = vunpack.c.l.b16 %v275
    %v291 = vpack.c.b16 %v288, %v287
    %v292 = vpack.c.b16 %v290, %v289
    %v296 = vsel %vm214, %v270, 0
    %v299 = vsel %vm214, %v271, 0
    %301 = vmatprep.subr.bf16.mxu0 0
    %302 = vmatpush1.bf16.msra.mxu0 %v291
    %303 = vmatprep.subr.bf16.mxu0 0
    %304 = vmatpush1.bf16.msra.mxu0 %v292
    %305 = vmatprep.subr.bf16.mxu0 0
    %306 = vmatpush1.bf16.msra.mxu0 0
    %307 = vmatprep.subr.bf16.mxu0 0
    %308 = vmatpush1.bf16.msra.mxu0 0
    %309 = vmatprep.subr.bf16.mxu0 0
    %310 = vmatpush1.bf16.msra.mxu0 0
    %311 = vmatprep.subr.bf16.mxu0 0
    %312 = vmatpush1.bf16.msra.mxu0 0
    %313 = vmatprep.subr.bf16.mxu0 0
    %314 = vmatpush1.bf16.msra.mxu0 0
    %315 = vmatprep.subr.bf16.mxu0 0
    %316 = vmatpush1.bf16.msra.mxu0 0
    %317 = vmatprep.subr.bf16.mxu0 0
    %318 = vmatpush1.bf16.msra.mxu0 0
    %319 = vmatprep.subr.bf16.mxu0 0
    %320 = vmatpush1.bf16.msra.mxu0 0
    %321 = vmatprep.subr.bf16.mxu0 0
    %322 = vmatpush1.bf16.msra.mxu0 0
    %323 = vmatprep.subr.bf16.mxu0 0
    %324 = vmatpush1.bf16.msra.mxu0 0
    %325 = vmatprep.subr.bf16.mxu0 0
    %326 = vmatpush1.bf16.msra.mxu0 0
    %327 = vmatprep.subr.bf16.mxu0 0
    %328 = vmatpush1.bf16.msra.mxu0 0
    %329 = vmatprep.subr.bf16.mxu0 0
    %330 = vmatpush1.bf16.msra.mxu0 0
    %331 = vmatprep.subr.bf16.mxu0 0
    %332 = vmatpush1.bf16.msra.mxu0 0
    %333 = vmatprep.mubr.bf16.mxu0 0
    %334 = vmatmul.mubr.bf16.gmra.mrb[0].mxu0 %v296
    %v335 = vpop.f32.mrb[0].mxu0
    %v336 = vadd.f32 %v281, %v335
    %v337 = vpop.f32.mrb[0].mxu0
    %v338 = vpop.f32.mrb[0].mxu0
    %v339 = vadd.f32 %v281, %v338
    %v340 = vpop.f32.mrb[0].mxu0
    %341 = vmatprep.mubr.bf16.mxu0 0
    %342 = vmatmul.mubr.bf16.gmra.mrb[0].mxu0 %v299
    %v343 = vpop.f32.mrb[0].mxu0
    %v344 = vadd.f32 %v281, %v343
    %v345 = vpop.f32.mrb[0].mxu0
    %v346 = vpop.f32.mrb[0].mxu0
    %v347 = vadd.f32 %v281, %v346
    %v348 = vpop.f32.mrb[0].mxu0
    %349 = vdwg.mxu0
    %v350 = vpack.c.bf16 %v259, %v256
    %v351 = vpack.c.bf16 %v267, %v264
    %v352 = vpack.c.bf16 %v339, %v336
    %v353 = vpack.c.bf16 %v347, %v344
    %356 = vrot.lane.b32.xlu0 %v350, 96
    %v357 = vpop.permute.xlu0 %356
    %358 = vrot.lane.b32.xlu0 %v351, 96
    %v359 = vpop.permute.xlu0 %358
    %vm360 = vcmask 64512
    %v362 = vsel %vm360, %v350, 0
    %v365 = vsel %vm360, %v351, 0
    %v368 = vsel %vm360, %v357, 0
    %v371 = vsel %vm360, %v359, 0
    %373 = vmatprep.subr.bf16.mxu0 0
    %374 = vmatpush1.bf16.xpose.msra.mxu0 %v368
    %375 = vmatprep.subr.bf16.mxu0 0
    %376 = vmatpush1.bf16.xpose.msra.mxu0 %v371
    %377 = vmatprep.subr.bf16.mxu0 0
    %378 = vmatpush1.bf16.xpose.msra.mxu0 0
    %379 = vmatprep.subr.bf16.mxu0 0
    %380 = vmatpush1.bf16.xpose.msra.mxu0 0
    %381 = vmatprep.subr.bf16.mxu0 0
    %382 = vmatpush1.bf16.xpose.msra.mxu0 0
    %383 = vmatprep.subr.bf16.mxu0 0
    %384 = vmatpush1.bf16.xpose.msra.mxu0 0
    %385 = vmatprep.subr.bf16.mxu0 0
    %386 = vmatpush1.bf16.xpose.msra.mxu0 0
    %387 = vmatprep.subr.bf16.mxu0 0
    %388 = vmatpush1.bf16.xpose.msra.mxu0 0
    %389 = vmatprep.subr.bf16.mxu0 0
    %390 = vmatpush1.bf16.xpose.msra.mxu0 0
    %391 = vmatprep.subr.bf16.mxu0 0
    %392 = vmatpush1.bf16.xpose.msra.mxu0 0
    %393 = vmatprep.subr.bf16.mxu0 0
    %394 = vmatpush1.bf16.xpose.msra.mxu0 0
    %395 = vmatprep.subr.bf16.mxu0 0
    %396 = vmatpush1.bf16.xpose.msra.mxu0 0
    %397 = vmatprep.subr.bf16.mxu0 0
    %398 = vmatpush1.bf16.xpose.msra.mxu0 0
    %399 = vmatprep.subr.bf16.mxu0 0
    %400 = vmatpush1.bf16.xpose.msra.mxu0 0
    %401 = vmatprep.subr.bf16.mxu0 0
    %402 = vmatpush1.bf16.xpose.msra.mxu0 0
    %403 = vmatprep.subr.bf16.mxu0 0
    %404 = vmatpush1.bf16.xpose.msra.mxu0 0
    %405 = vmatprep.mubr.bf16.mxu0 0
    %406 = vmatmul.mubr.bf16.gmra.mrb[0].mxu0 %v362
    %v407 = vpop.f32.mrb[0].mxu0
    %v408 = vadd.f32 %v181, %v407
    %v409 = vpop.f32.mrb[0].mxu0
    %v410 = vpop.f32.mrb[0].mxu0
    %v411 = vadd.f32 %v182, %v410
    %v412 = vpop.f32.mrb[0].mxu0
    %413 = vmatprep.mubr.bf16.mxu0 0
    %414 = vmatmul.mubr.bf16.gmra.mrb[0].mxu0 %v365
    %v415 = vpop.f32.mrb[0].mxu0
    %v416 = vadd.f32 %v183, %v415
    %v417 = vpop.f32.mrb[0].mxu0
    %v418 = vpop.f32.mrb[0].mxu0
    %v419 = vadd.f32 %v184, %v418
    %v420 = vpop.f32.mrb[0].mxu0
    %421 = vdwg.mxu0
    %v422 = vsel %vm214, %v408, -inf
    %423 = vmax.xlane.f32.xlu0 %v422
    %v424 = vpop.xlane.xlu0 %423
    %v425 = vsel %vm214, %v411, -inf
    %426 = vmax.xlane.f32.xlu0 %v425
    %v427 = vpop.xlane.xlu0 %426
    %v428 = vsel %vm214, %v416, -inf
    %429 = vmax.xlane.f32.xlu0 %v428
    %v430 = vpop.xlane.xlu0 %429
    %v431 = vsel %vm214, %v419, -inf
    %432 = vmax.xlane.f32.xlu0 %v431
    %v433 = vpop.xlane.xlu0 %432
    %v434 = vsub.f32 %v408, %v424
    %v435 = vsub.f32 %v411, %v427
    %v436 = vsub.f32 %v416, %v430
    %v437 = vsub.f32 %v419, %v433
    %v438 = vmul.f32 %v434, 1.442695
    %v439 = vpow.pop %v438
    %v440 = vmul.f32 %v435, 1.442695
    %v441 = vpow.pop %v440
    %v442 = vmul.f32 %v436, 1.442695
    %v443 = vpow.pop %v442
    %v444 = vmul.f32 %v437, 1.442695
    %v445 = vpow.pop %v444
    %v446 = vsel %vm214, %v439, 0.0
    %447 = vadd.xlane.f32.xlu0 %v446
    %v448 = vpop.xlane.xlu0 %447
    %v449 = vsel %vm214, %v441, 0.0
    %450 = vadd.xlane.f32.xlu0 %v449
    %v451 = vpop.xlane.xlu0 %450
    %v452 = vsel %vm214, %v443, 0.0
    %453 = vadd.xlane.f32.xlu0 %v452
    %v454 = vpop.xlane.xlu0 %453
    %v455 = vsel %vm214, %v445, 0.0
    %456 = vadd.xlane.f32.xlu0 %v455
    %v457 = vpop.xlane.xlu0 %456
    %v458 = vrcp.pop %v448
    %v459 = vrcp.pop %v451
    %v460 = vrcp.pop %v454
    %v461 = vrcp.pop %v457
    %v462 = vmul.f32 %v439, %v458
    %v463 = vmul.f32 %v441, %v459
    %v464 = vmul.f32 %v443, %v460
    %v465 = vmul.f32 %v445, %v461
    %v466 = vpack.c.bf16 %v463, %v462
    %v467 = vpack.c.bf16 %v465, %v464
    %v469 = vsel %vm214, %v466, 0
    %v472 = vsel %vm214, %v467, 0
    %474 = vmatprep.subr.bf16.mxu0 0
    %475 = vmatpush1.bf16.msra.mxu0 %v352
    %476 = vmatprep.subr.bf16.mxu0 0
    %477 = vmatpush1.bf16.msra.mxu0 %v353
    %478 = vmatprep.subr.bf16.mxu0 0
    %479 = vmatpush1.bf16.msra.mxu0 0
    %480 = vmatprep.subr.bf16.mxu0 0
    %481 = vmatpush1.bf16.msra.mxu0 0
    %482 = vmatprep.subr.bf16.mxu0 0
    %483 = vmatpush1.bf16.msra.mxu0 0
    %484 = vmatprep.subr.bf16.mxu0 0
    %485 = vmatpush1.bf16.msra.mxu0 0
    %486 = vmatprep.subr.bf16.mxu0 0
    %487 = vmatpush1.bf16.msra.mxu0 0
    %488 = vmatprep.subr.bf16.mxu0 0
    %489 = vmatpush1.bf16.msra.mxu0 0
    %490 = vmatprep.subr.bf16.mxu0 0
    %491 = vmatpush1.bf16.msra.mxu0 0
    %492 = vmatprep.subr.bf16.mxu0 0
    %493 = vmatpush1.bf16.msra.mxu0 0
    %494 = vmatprep.subr.bf16.mxu0 0
    %495 = vmatpush1.bf16.msra.mxu0 0
    %496 = vmatprep.subr.bf16.mxu0 0
    %497 = vmatpush1.bf16.msra.mxu0 0
    %498 = vmatprep.subr.bf16.mxu0 0
    %499 = vmatpush1.bf16.msra.mxu0 0
    %500 = vmatprep.subr.bf16.mxu0 0
    %501 = vmatpush1.bf16.msra.mxu0 0
    %502 = vmatprep.subr.bf16.mxu0 0
    %503 = vmatpush1.bf16.msra.mxu0 0
    %504 = vmatprep.subr.bf16.mxu0 0
    %505 = vmatpush1.bf16.msra.mxu0 0
    %506 = vmatprep.mubr.bf16.mxu0 0
    %507 = vmatmul.mubr.bf16.gmra.mrb[0].mxu0 %v469
    %v508 = vpop.f32.mrb[0].mxu0
    %v509 = vadd.f32 0.0, %v508
    %v510 = vpop.f32.mrb[0].mxu0
    %v511 = vpop.f32.mrb[0].mxu0
    %v512 = vadd.f32 0.0, %v511
    %v513 = vpop.f32.mrb[0].mxu0
    %514 = vmatprep.mubr.bf16.mxu0 0
    %515 = vmatmul.mubr.bf16.gmra.mrb[0].mxu0 %v472
    %v516 = vpop.f32.mrb[0].mxu0
    %v517 = vadd.f32 0.0, %v516
    %v518 = vpop.f32.mrb[0].mxu0
    %v519 = vpop.f32.mrb[0].mxu0
    %v520 = vadd.f32 0.0, %v519
    %v521 = vpop.f32.mrb[0].mxu0
    %522 = vdwg.mxu0
    %523 = vrot.lane.b32.xlu0 %v350, 120
    %v524 = vpop.permute.xlu0 %523
    %525 = vrot.lane.b32.xlu0 %v351, 120
    %v526 = vpop.permute.xlu0 %525
    %527 = vrot.lane.b32.xlu0 %v350, 88
    %v528 = vpop.permute.xlu0 %527
    %529 = vrot.lane.b32.xlu0 %v351, 88
    %v530 = vpop.permute.xlu0 %529
    %v532 = vsel %vm360, %v524, 0
    %v535 = vsel %vm360, %v526, 0
    %v538 = vsel %vm360, %v528, 0
    %v541 = vsel %vm360, %v530, 0
    %543 = vmatprep.subr.bf16.mxu0 0
    %544 = vmatpush1.bf16.xpose.msra.mxu0 %v538
    %545 = vmatprep.subr.bf16.mxu0 0
    %546 = vmatpush1.bf16.xpose.msra.mxu0 %v541
    %547 = vmatprep.subr.bf16.mxu0 0
    %548 = vmatpush1.bf16.xpose.msra.mxu0 0
    %549 = vmatprep.subr.bf16.mxu0 0
    %550 = vmatpush1.bf16.xpose.msra.mxu0 0
    %551 = vmatprep.subr.bf16.mxu0 0
    %552 = vmatpush1.bf16.xpose.msra.mxu0 0
    %553 = vmatprep.subr.bf16.mxu0 0
    %554 = vmatpush1.bf16.xpose.msra.mxu0 0
    %555 = vmatprep.subr.bf16.mxu0 0
    %556 = vmatpush1.bf16.xpose.msra.mxu0 0
    %557 = vmatprep.subr.bf16.mxu0 0
    %558 = vmatpush1.bf16.xpose.msra.mxu0 0
    %559 = vmatprep.subr.bf16.mxu0 0
    %560 = vmatpush1.bf16.xpose.msra.mxu0 0
    %561 = vmatprep.subr.bf16.mxu0 0
    %562 = vmatpush1.bf16.xpose.msra.mxu0 0
    %563 = vmatprep.subr.bf16.mxu0 0
    %564 = vmatpush1.bf16.xpose.msra.mxu0 0
    %565 = vmatprep.subr.bf16.mxu0 0
    %566 = vmatpush1.bf16.xpose.msra.mxu0 0
    %567 = vmatprep.subr.bf16.mxu0 0
    %568 = vmatpush1.bf16.xpose.msra.mxu0 0
    %569 = vmatprep.subr.bf16.mxu0 0
    %570 = vmatpush1.bf16.xpose.msra.mxu0 0
    %571 = vmatprep.subr.bf16.mxu0 0
    %572 = vmatpush1.bf16.xpose.msra.mxu0 0
    %573 = vmatprep.subr.bf16.mxu0 0
    %574 = vmatpush1.bf16.xpose.msra.mxu0 0
    %575 = vmatprep.mubr.bf16.mxu0 0
    %576 = vmatmul.mubr.bf16.gmra.mrb[0].mxu0 %v532
    %v577 = vpop.f32.mrb[0].mxu0
    %v578 = vadd.f32 %v181, %v577
    %v579 = vpop.f32.mrb[0].mxu0
    %v580 = vpop.f32.mrb[0].mxu0
    %v581 = vadd.f32 %v182, %v580
    %v582 = vpop.f32.mrb[0].mxu0
    %583 = vmatprep.mubr.bf16.mxu0 0
    %584 = vmatmul.mubr.bf16.gmra.mrb[0].mxu0 %v535
    %v585 = vpop.f32.mrb[0].mxu0
    %v586 = vadd.f32 %v183, %v585
    %v587 = vpop.f32.mrb[0].mxu0
    %v588 = vpop.f32.mrb[0].mxu0
    %v589 = vadd.f32 %v184, %v588
    %v590 = vpop.f32.mrb[0].mxu0
    %591 = vdwg.mxu0
    %v592 = vsel %vm214, %v578, -inf
    %593 = vmax.xlane.f32.xlu0 %v592
    %v594 = vpop.xlane.xlu0 %593
    %v595 = vsel %vm214, %v581, -inf
    %596 = vmax.xlane.f32.xlu0 %v595
    %v597 = vpop.xlane.xlu0 %596
    %v598 = vsel %vm214, %v586, -inf
    %599 = vmax.xlane.f32.xlu0 %v598
    %v600 = vpop.xlane.xlu0 %599
    %v601 = vsel %vm214, %v589, -inf
    %602 = vmax.xlane.f32.xlu0 %v601
    %v603 = vpop.xlane.xlu0 %602
    %v604 = vsub.f32 %v578, %v594
    %v605 = vsub.f32 %v581, %v597
    %v606 = vsub.f32 %v586, %v600
    %v607 = vsub.f32 %v589, %v603
    %v608 = vmul.f32 %v604, 1.442695
    %v609 = vpow.pop %v608
    %v610 = vmul.f32 %v605, 1.442695
    %v611 = vpow.pop %v610
    %v612 = vmul.f32 %v606, 1.442695
    %v613 = vpow.pop %v612
    %v614 = vmul.f32 %v607, 1.442695
    %v615 = vpow.pop %v614
    %v616 = vsel %vm214, %v609, 0.0
    %617 = vadd.xlane.f32.xlu0 %v616
    %v618 = vpop.xlane.xlu0 %617
    %v619 = vsel %vm214, %v611, 0.0
    %620 = vadd.xlane.f32.xlu0 %v619
    %v621 = vpop.xlane.xlu0 %620
    %v622 = vsel %vm214, %v613, 0.0
    %623 = vadd.xlane.f32.xlu0 %v622
    %v624 = vpop.xlane.xlu0 %623
    %v625 = vsel %vm214, %v615, 0.0
    %626 = vadd.xlane.f32.xlu0 %v625
    %v627 = vpop.xlane.xlu0 %626
    %v628 = vrcp.pop %v618
    %v629 = vrcp.pop %v621
    %v630 = vrcp.pop %v624
    %v631 = vrcp.pop %v627
    %v632 = vmul.f32 %v609, %v628
    %v633 = vmul.f32 %v611, %v629
    %v634 = vmul.f32 %v613, %v630
    %v635 = vmul.f32 %v615, %v631
    %v636 = vpack.c.bf16 %v633, %v632
    %v637 = vpack.c.bf16 %v635, %v634
    %640 = vrot.lane.b32.xlu0 %v352, 120
    %v641 = vpop.permute.xlu0 %640
    %642 = vrot.lane.b32.xlu0 %v353, 120
    %v643 = vpop.permute.xlu0 %642
    %v647 = vsel %vm214, %v636, 0
    %v650 = vsel %vm214, %v637, 0
    %652 = vmatprep.subr.bf16.mxu0 0
    %653 = vmatpush1.bf16.msra.mxu0 %v641
    %654 = vmatprep.subr.bf16.mxu0 0
    %655 = vmatpush1.bf16.msra.mxu0 %v643
    %656 = vmatprep.subr.bf16.mxu0 0
    %657 = vmatpush1.bf16.msra.mxu0 0
    %658 = vmatprep.subr.bf16.mxu0 0
    %659 = vmatpush1.bf16.msra.mxu0 0
    %660 = vmatprep.subr.bf16.mxu0 0
    %661 = vmatpush1.bf16.msra.mxu0 0
    %662 = vmatprep.subr.bf16.mxu0 0
    %663 = vmatpush1.bf16.msra.mxu0 0
    %664 = vmatprep.subr.bf16.mxu0 0
    %665 = vmatpush1.bf16.msra.mxu0 0
    %666 = vmatprep.subr.bf16.mxu0 0
    %667 = vmatpush1.bf16.msra.mxu0 0
    %668 = vmatprep.subr.bf16.mxu0 0
    %669 = vmatpush1.bf16.msra.mxu0 0
    %670 = vmatprep.subr.bf16.mxu0 0
    %671 = vmatpush1.bf16.msra.mxu0 0
    %672 = vmatprep.subr.bf16.mxu0 0
    %673 = vmatpush1.bf16.msra.mxu0 0
    %674 = vmatprep.subr.bf16.mxu0 0
    %675 = vmatpush1.bf16.msra.mxu0 0
    %676 = vmatprep.subr.bf16.mxu0 0
    %677 = vmatpush1.bf16.msra.mxu0 0
    %678 = vmatprep.subr.bf16.mxu0 0
    %679 = vmatpush1.bf16.msra.mxu0 0
    %680 = vmatprep.subr.bf16.mxu0 0
    %681 = vmatpush1.bf16.msra.mxu0 0
    %682 = vmatprep.subr.bf16.mxu0 0
    %683 = vmatpush1.bf16.msra.mxu0 0
    %684 = vmatprep.mubr.bf16.mxu0 0
    %685 = vmatmul.mubr.bf16.gmra.mrb[0].mxu0 %v647
    %v686 = vpop.f32.mrb[0].mxu0
    %v687 = vadd.f32 0.0, %v686
    %v688 = vpop.f32.mrb[0].mxu0
    %v689 = vpop.f32.mrb[0].mxu0
    %v690 = vadd.f32 0.0, %v689
    %v691 = vpop.f32.mrb[0].mxu0
    %692 = vmatprep.mubr.bf16.mxu0 0
    %693 = vmatmul.mubr.bf16.gmra.mrb[0].mxu0 %v650
    %v694 = vpop.f32.mrb[0].mxu0
    %v695 = vadd.f32 0.0, %v694
    %v696 = vpop.f32.mrb[0].mxu0
    %v697 = vpop.f32.mrb[0].mxu0
    %v698 = vadd.f32 0.0, %v697
    %v699 = vpop.f32.mrb[0].mxu0
    %700 = vdwg.mxu0
    %701 = vrot.lane.b32.xlu0 %v350, 112
    %v702 = vpop.permute.xlu0 %701
    %703 = vrot.lane.b32.xlu0 %v351, 112
    %v704 = vpop.permute.xlu0 %703
    %705 = vrot.lane.b32.xlu0 %v350, 80
    %v706 = vpop.permute.xlu0 %705
    %707 = vrot.lane.b32.xlu0 %v351, 80
    %v708 = vpop.permute.xlu0 %707
    %v710 = vsel %vm360, %v702, 0
    %v713 = vsel %vm360, %v704, 0
    %v716 = vsel %vm360, %v706, 0
    %v719 = vsel %vm360, %v708, 0
    %721 = vmatprep.subr.bf16.mxu0 0
    %722 = vmatpush1.bf16.xpose.msra.mxu0 %v716
    %723 = vmatprep.subr.bf16.mxu0 0
    %724 = vmatpush1.bf16.xpose.msra.mxu0 %v719
    %725 = vmatprep.subr.bf16.mxu0 0
    %726 = vmatpush1.bf16.xpose.msra.mxu0 0
    %727 = vmatprep.subr.bf16.mxu0 0
    %728 = vmatpush1.bf16.xpose.msra.mxu0 0
    %729 = vmatprep.subr.bf16.mxu0 0
    %730 = vmatpush1.bf16.xpose.msra.mxu0 0
    %731 = vmatprep.subr.bf16.mxu0 0
    %732 = vmatpush1.bf16.xpose.msra.mxu0 0
    %733 = vmatprep.subr.bf16.mxu0 0
    %734 = vmatpush1.bf16.xpose.msra.mxu0 0
    %735 = vmatprep.subr.bf16.mxu0 0
    %736 = vmatpush1.bf16.xpose.msra.mxu0 0
    %737 = vmatprep.subr.bf16.mxu0 0
    %738 = vmatpush1.bf16.xpose.msra.mxu0 0
    %739 = vmatprep.subr.bf16.mxu0 0
    %740 = vmatpush1.bf16.xpose.msra.mxu0 0
    %741 = vmatprep.subr.bf16.mxu0 0
    %742 = vmatpush1.bf16.xpose.msra.mxu0 0
    %743 = vmatprep.subr.bf16.mxu0 0
    %744 = vmatpush1.bf16.xpose.msra.mxu0 0
    %745 = vmatprep.subr.bf16.mxu0 0
    %746 = vmatpush1.bf16.xpose.msra.mxu0 0
    %747 = vmatprep.subr.bf16.mxu0 0
    %748 = vmatpush1.bf16.xpose.msra.mxu0 0
    %749 = vmatprep.subr.bf16.mxu0 0
    %750 = vmatpush1.bf16.xpose.msra.mxu0 0
    %751 = vmatprep.subr.bf16.mxu0 0
    %752 = vmatpush1.bf16.xpose.msra.mxu0 0
    %753 = vmatprep.mubr.bf16.mxu0 0
    %754 = vmatmul.mubr.bf16.gmra.mrb[0].mxu0 %v710
    %v755 = vpop.f32.mrb[0].mxu0
    %v756 = vadd.f32 %v181, %v755
    %v757 = vpop.f32.mrb[0].mxu0
    %v758 = vpop.f32.mrb[0].mxu0
    %v759 = vadd.f32 %v182, %v758
    %v760 = vpop.f32.mrb[0].mxu0
    %761 = vmatprep.mubr.bf16.mxu0 0
    %762 = vmatmul.mubr.bf16.gmra.mrb[0].mxu0 %v713
    %v763 = vpop.f32.mrb[0].mxu0
    %v764 = vadd.f32 %v183, %v763
    %v765 = vpop.f32.mrb[0].mxu0
    %v766 = vpop.f32.mrb[0].mxu0
    %v767 = vadd.f32 %v184, %v766
    %v768 = vpop.f32.mrb[0].mxu0
    %769 = vdwg.mxu0
    %v770 = vsel %vm214, %v756, -inf
    %771 = vmax.xlane.f32.xlu0 %v770
    %v772 = vpop.xlane.xlu0 %771
    %v773 = vsel %vm214, %v759, -inf
    %774 = vmax.xlane.f32.xlu0 %v773
    %v775 = vpop.xlane.xlu0 %774
    %v776 = vsel %vm214, %v764, -inf
    %777 = vmax.xlane.f32.xlu0 %v776
    %v778 = vpop.xlane.xlu0 %777
    %v779 = vsel %vm214, %v767, -inf
    %780 = vmax.xlane.f32.xlu0 %v779
    %v781 = vpop.xlane.xlu0 %780
    %v782 = vsub.f32 %v756, %v772
    %v783 = vsub.f32 %v759, %v775
    %v784 = vsub.f32 %v764, %v778
    %v785 = vsub.f32 %v767, %v781
    %v786 = vmul.f32 %v782, 1.442695
    %v787 = vpow.pop %v786
    %v788 = vmul.f32 %v783, 1.442695
    %v789 = vpow.pop %v788
    %v790 = vmul.f32 %v784, 1.442695
    %v791 = vpow.pop %v790
    %v792 = vmul.f32 %v785, 1.442695
    %v793 = vpow.pop %v792
    %v794 = vsel %vm214, %v787, 0.0
    %795 = vadd.xlane.f32.xlu0 %v794
    %v796 = vpop.xlane.xlu0 %795
    %v797 = vsel %vm214, %v789, 0.0
    %798 = vadd.xlane.f32.xlu0 %v797
    %v799 = vpop.xlane.xlu0 %798
    %v800 = vsel %vm214, %v791, 0.0
    %801 = vadd.xlane.f32.xlu0 %v800
    %v802 = vpop.xlane.xlu0 %801
    %v803 = vsel %vm214, %v793, 0.0
    %804 = vadd.xlane.f32.xlu0 %v803
    %v805 = vpop.xlane.xlu0 %804
    %v806 = vrcp.pop %v796
    %v807 = vrcp.pop %v799
    %v808 = vrcp.pop %v802
    %v809 = vrcp.pop %v805
    %v810 = vmul.f32 %v787, %v806
    %v811 = vmul.f32 %v789, %v807
    %v812 = vmul.f32 %v791, %v808
    %v813 = vmul.f32 %v793, %v809
    %v814 = vpack.c.bf16 %v811, %v810
    %v815 = vpack.c.bf16 %v813, %v812
    %816 = vrot.lane.b32.xlu0 %v352, 112
    %v817 = vpop.permute.xlu0 %816
    %818 = vrot.lane.b32.xlu0 %v353, 112
    %v819 = vpop.permute.xlu0 %818
    %v823 = vsel %vm214, %v814, 0
    %v826 = vsel %vm214, %v815, 0
    %828 = vmatprep.subr.bf16.mxu0 0
    %829 = vmatpush1.bf16.msra.mxu0 %v817
    %830 = vmatprep.subr.bf16.mxu0 0
    %831 = vmatpush1.bf16.msra.mxu0 %v819
    %832 = vmatprep.subr.bf16.mxu0 0
    %833 = vmatpush1.bf16.msra.mxu0 0
    %834 = vmatprep.subr.bf16.mxu0 0
    %835 = vmatpush1.bf16.msra.mxu0 0
    %836 = vmatprep.subr.bf16.mxu0 0
    %837 = vmatpush1.bf16.msra.mxu0 0
    %838 = vmatprep.subr.bf16.mxu0 0
    %839 = vmatpush1.bf16.msra.mxu0 0
    %840 = vmatprep.subr.bf16.mxu0 0
    %841 = vmatpush1.bf16.msra.mxu0 0
    %842 = vmatprep.subr.bf16.mxu0 0
    %843 = vmatpush1.bf16.msra.mxu0 0
    %844 = vmatprep.subr.bf16.mxu0 0
    %845 = vmatpush1.bf16.msra.mxu0 0
    %846 = vmatprep.subr.bf16.mxu0 0
    %847 = vmatpush1.bf16.msra.mxu0 0
    %848 = vmatprep.subr.bf16.mxu0 0
    %849 = vmatpush1.bf16.msra.mxu0 0
    %850 = vmatprep.subr.bf16.mxu0 0
    %851 = vmatpush1.bf16.msra.mxu0 0
    %852 = vmatprep.subr.bf16.mxu0 0
    %853 = vmatpush1.bf16.msra.mxu0 0
    %854 = vmatprep.subr.bf16.mxu0 0
    %855 = vmatpush1.bf16.msra.mxu0 0
    %856 = vmatprep.subr.bf16.mxu0 0
    %857 = vmatpush1.bf16.msra.mxu0 0
    %858 = vmatprep.subr.bf16.mxu0 0
    %859 = vmatpush1.bf16.msra.mxu0 0
    %860 = vmatprep.mubr.bf16.mxu0 0
    %861 = vmatmul.mubr.bf16.gmra.mrb[0].mxu0 %v823
    %v862 = vpop.f32.mrb[0].mxu0
    %v863 = vadd.f32 0.0, %v862
    %v864 = vpop.f32.mrb[0].mxu0
    %v865 = vpop.f32.mrb[0].mxu0
    %v866 = vadd.f32 0.0, %v865
    %v867 = vpop.f32.mrb[0].mxu0
    %868 = vmatprep.mubr.bf16.mxu0 0
    %869 = vmatmul.mubr.bf16.gmra.mrb[0].mxu0 %v826
    %v870 = vpop.f32.mrb[0].mxu0
    %v871 = vadd.f32 0.0, %v870
    %v872 = vpop.f32.mrb[0].mxu0
    %v873 = vpop.f32.mrb[0].mxu0
    %v874 = vadd.f32 0.0, %v873
    %v875 = vpop.f32.mrb[0].mxu0
    %876 = vdwg.mxu0
    %877 = vrot.lane.b32.xlu0 %v350, 104
    %v878 = vpop.permute.xlu0 %877
    %879 = vrot.lane.b32.xlu0 %v351, 104
    %v880 = vpop.permute.xlu0 %879
    %881 = vrot.lane.b32.xlu0 %v350, 72
    %v882 = vpop.permute.xlu0 %881
    %883 = vrot.lane.b32.xlu0 %v351, 72
    %v884 = vpop.permute.xlu0 %883
    %v886 = vsel %vm360, %v878, 0
    %v889 = vsel %vm360, %v880, 0
    %v892 = vsel %vm360, %v882, 0
    %v895 = vsel %vm360, %v884, 0
    %897 = vmatprep.subr.bf16.mxu0 0
    %898 = vmatpush1.bf16.xpose.msra.mxu0 %v892
    %899 = vmatprep.subr.bf16.mxu0 0
    %900 = vmatpush1.bf16.xpose.msra.mxu0 %v895
    %901 = vmatprep.subr.bf16.mxu0 0
    %902 = vmatpush1.bf16.xpose.msra.mxu0 0
    %903 = vmatprep.subr.bf16.mxu0 0
    %904 = vmatpush1.bf16.xpose.msra.mxu0 0
    %905 = vmatprep.subr.bf16.mxu0 0
    %906 = vmatpush1.bf16.xpose.msra.mxu0 0
    %907 = vmatprep.subr.bf16.mxu0 0
    %908 = vmatpush1.bf16.xpose.msra.mxu0 0
    %909 = vmatprep.subr.bf16.mxu0 0
    %910 = vmatpush1.bf16.xpose.msra.mxu0 0
    %911 = vmatprep.subr.bf16.mxu0 0
    %912 = vmatpush1.bf16.xpose.msra.mxu0 0
    %913 = vmatprep.subr.bf16.mxu0 0
    %914 = vmatpush1.bf16.xpose.msra.mxu0 0
    %915 = vmatprep.subr.bf16.mxu0 0
    %916 = vmatpush1.bf16.xpose.msra.mxu0 0
    %917 = vmatprep.subr.bf16.mxu0 0
    %918 = vmatpush1.bf16.xpose.msra.mxu0 0
    %919 = vmatprep.subr.bf16.mxu0 0
    %920 = vmatpush1.bf16.xpose.msra.mxu0 0
    %921 = vmatprep.subr.bf16.mxu0 0
    %922 = vmatpush1.bf16.xpose.msra.mxu0 0
    %923 = vmatprep.subr.bf16.mxu0 0
    %924 = vmatpush1.bf16.xpose.msra.mxu0 0
    %925 = vmatprep.subr.bf16.mxu0 0
    %926 = vmatpush1.bf16.xpose.msra.mxu0 0
    %927 = vmatprep.subr.bf16.mxu0 0
    %928 = vmatpush1.bf16.xpose.msra.mxu0 0
    %929 = vmatprep.mubr.bf16.mxu0 0
    %930 = vmatmul.mubr.bf16.gmra.mrb[0].mxu0 %v886
    %v931 = vpop.f32.mrb[0].mxu0
    %v932 = vadd.f32 %v181, %v931
    %v933 = vpop.f32.mrb[0].mxu0
    %v934 = vpop.f32.mrb[0].mxu0
    %v935 = vadd.f32 %v182, %v934
    %v936 = vpop.f32.mrb[0].mxu0
    %937 = vmatprep.mubr.bf16.mxu0 0
    %938 = vmatmul.mubr.bf16.gmra.mrb[0].mxu0 %v889
    %v939 = vpop.f32.mrb[0].mxu0
    %v940 = vadd.f32 %v183, %v939
    %v941 = vpop.f32.mrb[0].mxu0
    %v942 = vpop.f32.mrb[0].mxu0
    %v943 = vadd.f32 %v184, %v942
    %v944 = vpop.f32.mrb[0].mxu0
    %945 = vdwg.mxu0
    %v946 = vsel %vm214, %v932, -inf
    %947 = vmax.xlane.f32.xlu0 %v946
    %v948 = vpop.xlane.xlu0 %947
    %v949 = vsel %vm214, %v935, -inf
    %950 = vmax.xlane.f32.xlu0 %v949
    %v951 = vpop.xlane.xlu0 %950
    %v952 = vsel %vm214, %v940, -inf
    %953 = vmax.xlane.f32.xlu0 %v952
    %v954 = vpop.xlane.xlu0 %953
    %v955 = vsel %vm214, %v943, -inf
    %956 = vmax.xlane.f32.xlu0 %v955
    %v957 = vpop.xlane.xlu0 %956
    %v958 = vsub.f32 %v932, %v948
    %v959 = vsub.f32 %v935, %v951
    %v960 = vsub.f32 %v940, %v954
    %v961 = vsub.f32 %v943, %v957
    %v962 = vmul.f32 %v958, 1.442695
    %v963 = vpow.pop %v962
    %v964 = vmul.f32 %v959, 1.442695
    %v965 = vpow.pop %v964
    %v966 = vmul.f32 %v960, 1.442695
    %v967 = vpow.pop %v966
    %v968 = vmul.f32 %v961, 1.442695
    %v969 = vpow.pop %v968
    %v970 = vsel %vm214, %v963, 0.0
    %971 = vadd.xlane.f32.xlu0 %v970
    %v972 = vpop.xlane.xlu0 %971
    %v973 = vsel %vm214, %v965, 0.0
    %974 = vadd.xlane.f32.xlu0 %v973
    %v975 = vpop.xlane.xlu0 %974
    %v976 = vsel %vm214, %v967, 0.0
    %977 = vadd.xlane.f32.xlu0 %v976
    %v978 = vpop.xlane.xlu0 %977
    %v979 = vsel %vm214, %v969, 0.0
    %980 = vadd.xlane.f32.xlu0 %v979
    %v981 = vpop.xlane.xlu0 %980
    %v982 = vrcp.pop %v972
    %v983 = vrcp.pop %v975
    %v984 = vrcp.pop %v978
    %v985 = vrcp.pop %v981
    %v986 = vmul.f32 %v963, %v982
    %v987 = vmul.f32 %v965, %v983
    %v988 = vmul.f32 %v967, %v984
    %v989 = vmul.f32 %v969, %v985
    %v990 = vpack.c.bf16 %v987, %v986
    %v991 = vpack.c.bf16 %v989, %v988
    %992 = vrot.lane.b32.xlu0 %v352, 104
    %v993 = vpop.permute.xlu0 %992
    %994 = vrot.lane.b32.xlu0 %v353, 104
    %v995 = vpop.permute.xlu0 %994
    %v999 = vsel %vm214, %v990, 0
    %v1002 = vsel %vm214, %v991, 0
    %1004 = vmatprep.subr.bf16.mxu0 0
    %1005 = vmatpush1.bf16.msra.mxu0 %v993
    %1006 = vmatprep.subr.bf16.mxu0 0
    %1007 = vmatpush1.bf16.msra.mxu0 %v995
    %1008 = vmatprep.subr.bf16.mxu0 0
    %1009 = vmatpush1.bf16.msra.mxu0 0
    %1010 = vmatprep.subr.bf16.mxu0 0
    %1011 = vmatpush1.bf16.msra.mxu0 0
    %1012 = vmatprep.subr.bf16.mxu0 0
    %1013 = vmatpush1.bf16.msra.mxu0 0
    %1014 = vmatprep.subr.bf16.mxu0 0
    %1015 = vmatpush1.bf16.msra.mxu0 0
    %1016 = vmatprep.subr.bf16.mxu0 0
    %1017 = vmatpush1.bf16.msra.mxu0 0
    %1018 = vmatprep.subr.bf16.mxu0 0
    %1019 = vmatpush1.bf16.msra.mxu0 0
    %1020 = vmatprep.subr.bf16.mxu0 0
    %1021 = vmatpush1.bf16.msra.mxu0 0
    %1022 = vmatprep.subr.bf16.mxu0 0
    %1023 = vmatpush1.bf16.msra.mxu0 0
    %1024 = vmatprep.subr.bf16.mxu0 0
    %1025 = vmatpush1.bf16.msra.mxu0 0
    %1026 = vmatprep.subr.bf16.mxu0 0
    %1027 = vmatpush1.bf16.msra.mxu0 0
    %1028 = vmatprep.subr.bf16.mxu0 0
    %1029 = vmatpush1.bf16.msra.mxu0 0
    %1030 = vmatprep.subr.bf16.mxu0 0
    %1031 = vmatpush1.bf16.msra.mxu0 0
    %1032 = vmatprep.subr.bf16.mxu0 0
    %1033 = vmatpush1.bf16.msra.mxu0 0
    %1034 = vmatprep.subr.bf16.mxu0 0
    %1035 = vmatpush1.bf16.msra.mxu0 0
    %1036 = vmatprep.mubr.bf16.mxu0 0
    %1037 = vmatmul.mubr.bf16.gmra.mrb[0].mxu0 %v999
    %v1038 = vpop.f32.mrb[0].mxu0
    %v1039 = vadd.f32 0.0, %v1038
    %v1040 = vpop.f32.mrb[0].mxu0
    %v1041 = vpop.f32.mrb[0].mxu0
    %v1042 = vadd.f32 0.0, %v1041
    %v1043 = vpop.f32.mrb[0].mxu0
    %1044 = vmatprep.mubr.bf16.mxu0 0
    %1045 = vmatmul.mubr.bf16.gmra.mrb[0].mxu0 %v1002
    %v1046 = vpop.f32.mrb[0].mxu0
    %v1047 = vadd.f32 0.0, %v1046
    %v1048 = vpop.f32.mrb[0].mxu0
    %v1049 = vpop.f32.mrb[0].mxu0
    %v1050 = vadd.f32 0.0, %v1049
    %v1051 = vpop.f32.mrb[0].mxu0
    %1052 = vdwg.mxu0
    %1057 = vrot.lane.b32.xlu0 %v687, 8
    %v1058 = vpop.permute.xlu0 %1057
    %1059 = vrot.lane.b32.xlu0 %v690, 8
    %v1060 = vpop.permute.xlu0 %1059
    %1061 = vrot.lane.b32.xlu0 %v695, 8
    %v1062 = vpop.permute.xlu0 %1061
    %1063 = vrot.lane.b32.xlu0 %v698, 8
    %v1064 = vpop.permute.xlu0 %1063
    %1073 = vrot.lane.b32.xlu0 %v863, 16
    %v1074 = vpop.permute.xlu0 %1073
    %1075 = vrot.lane.b32.xlu0 %v866, 16
    %v1076 = vpop.permute.xlu0 %1075
    %1077 = vrot.lane.b32.xlu0 %v871, 16
    %v1078 = vpop.permute.xlu0 %1077
    %1079 = vrot.lane.b32.xlu0 %v874, 16
    %v1080 = vpop.permute.xlu0 %1079
    %1089 = vrot.lane.b32.xlu0 %v1039, 24
    %v1090 = vpop.permute.xlu0 %1089
    %1091 = vrot.lane.b32.xlu0 %v1042, 24
    %v1092 = vpop.permute.xlu0 %1091
    %1093 = vrot.lane.b32.xlu0 %v1047, 24
    %v1094 = vpop.permute.xlu0 %1093
    %1095 = vrot.lane.b32.xlu0 %v1050, 24
    %v1096 = vpop.permute.xlu0 %1095
    %v1101 = vsel %vm360, %v509, %v1058
    %v1102 = vsel %vm360, %v512, %v1060
    %v1103 = vsel %vm360, %v517, %v1062
    %v1104 = vsel %vm360, %v520, %v1064
    %vm1105 = vcmask 130048
    %v1106 = vsel %vm1105, %v1101, %v1074
    %v1107 = vsel %vm1105, %v1102, %v1076
    %v1108 = vsel %vm1105, %v1103, %v1078
    %v1109 = vsel %vm1105, %v1104, %v1080
    %vm1110 = vcmask 195584
    %v1111 = vsel %vm1110, %v1106, %v1090
    %v1112 = vsel %vm1110, %v1107, %v1092
    %v1113 = vsel %vm1110, %v1108, %v1094
    %v1114 = vsel %vm1110, %v1109, %v1096
    %v1115 = vpack.c.bf16 %v1112, %v1111
    %v1116 = vpack.c.bf16 %v1114, %v1113
    %v1117 = vld [vmem:[#allocation5] sm:$0xf]
    %v1118 = vld [vmem:[#allocation5 + $0x4] sm:$0xf]
    %v1119 = vld [vmem:[#allocation5 + $0x8] sm:$0xf]
    %v1120 = vld [vmem:[#allocation5 + $0xc] sm:$0xf]
    %v1121 = vld [vmem:[%s7] sm:$0x1]
    %v1123 = vlaneseq
    %v1124 = vshrl.u32 %v1123, 7
    %v1125 = vsub.s32 0, %v1124
    %v1126 = vrot.slane %v1121, %v1125
    %v1132 = vunpack.c.l.b16 %v1117
    %v1133 = vunpack.c.l.b16 %v1118
    %v1134 = vunpack.c.l.b16 %v1119
    %v1135 = vunpack.c.l.b16 %v1120
    %v1136 = vpack.c.b16 %v1133, %v1132
    %v1137 = vpack.c.b16 %v1135, %v1134
    %v1141 = vsel %vm214, %v1115, 0
    %v1144 = vsel %vm214, %v1116, 0
    %1146 = vmatprep.subr.bf16.mxu0 0
    %1147 = vmatpush1.bf16.msra.mxu0 %v1136
    %1148 = vmatprep.subr.bf16.mxu0 0
    %1149 = vmatpush1.bf16.msra.mxu0 %v1137
    %1150 = vmatprep.subr.bf16.mxu0 0
    %1151 = vmatpush1.bf16.msra.mxu0 0
    %1152 = vmatprep.subr.bf16.mxu0 0
    %1153 = vmatpush1.bf16.msra.mxu0 0
    %1154 = vmatprep.subr.bf16.mxu0 0
    %1155 = vmatpush1.bf16.msra.mxu0 0
    %1156 = vmatprep.subr.bf16.mxu0 0
    %1157 = vmatpush1.bf16.msra.mxu0 0
    %1158 = vmatprep.subr.bf16.mxu0 0
    %1159 = vmatpush1.bf16.msra.mxu0 0
    %1160 = vmatprep.subr.bf16.mxu0 0
    %1161 = vmatpush1.bf16.msra.mxu0 0
    %1162 = vmatprep.subr.bf16.mxu0 0
    %1163 = vmatpush1.bf16.msra.mxu0 0
    %1164 = vmatprep.subr.bf16.mxu0 0
    %1165 = vmatpush1.bf16.msra.mxu0 0
    %1166 = vmatprep.subr.bf16.mxu0 0
    %1167 = vmatpush1.bf16.msra.mxu0 0
    %1168 = vmatprep.subr.bf16.mxu0 0
    %1169 = vmatpush1.bf16.msra.mxu0 0
    %1170 = vmatprep.subr.bf16.mxu0 0
    %1171 = vmatpush1.bf16.msra.mxu0 0
    %1172 = vmatprep.subr.bf16.mxu0 0
    %1173 = vmatpush1.bf16.msra.mxu0 0
    %1174 = vmatprep.subr.bf16.mxu0 0
    %1175 = vmatpush1.bf16.msra.mxu0 0
    %1176 = vmatprep.subr.bf16.mxu0 0
    %1177 = vmatpush1.bf16.msra.mxu0 0
    %1178 = vmatprep.mubr.bf16.mxu0 0
    %1179 = vmatmul.mubr.bf16.gmra.mrb[0].mxu0 %v1141
    %v1180 = vpop.f32.mrb[0].mxu0
    %v1181 = vadd.f32 %v1126, %v1180
    %v1182 = vpop.f32.mrb[0].mxu0
    %v1183 = vpop.f32.mrb[0].mxu0
    %v1184 = vadd.f32 %v1126, %v1183
    %v1185 = vpop.f32.mrb[0].mxu0
    %1186 = vmatprep.mubr.bf16.mxu0 0
    %1187 = vmatmul.mubr.bf16.gmra.mrb[0].mxu0 %v1144
    %v1188 = vpop.f32.mrb[0].mxu0
    %v1189 = vadd.f32 %v1126, %v1188
    %v1190 = vpop.f32.mrb[0].mxu0
    %v1191 = vpop.f32.mrb[0].mxu0
    %v1192 = vadd.f32 %v1126, %v1191
    %v1193 = vpop.f32.mrb[0].mxu0
    %1194 = vdwg.mxu0
    %v1195 = vadd.f32 %v102, %v1181
    %v1196 = vadd.f32 %v103, %v1184
    %v1197 = vadd.f32 %v104, %v1189
    %v1198 = vadd.f32 %v105, %v1192
    %v1199 = vld [vmem:[%s8] sm:$0x1]
    %v1200 = vld [vmem:[%s9] sm:$0x1]
    %v1201 = vsel %vm214, %v1195, 0.0
    %1202 = vadd.xlane.f32.xlu0 %v1201
    %v1203 = vpop.xlane.xlu0 %1202
    %v1204 = vsel %vm214, %v1196, 0.0
    %1205 = vadd.xlane.f32.xlu0 %v1204
    %v1206 = vpop.xlane.xlu0 %1205
    %v1207 = vsel %vm214, %v1197, 0.0
    %1208 = vadd.xlane.f32.xlu0 %v1207
    %v1209 = vpop.xlane.xlu0 %1208
    %v1210 = vsel %vm214, %v1198, 0.0
    %1211 = vadd.xlane.f32.xlu0 %v1210
    %v1212 = vpop.xlane.xlu0 %1211
    %v1213 = vrcp.pop 32.0
    %v1214 = vmul.f32 %v1203, %v1213
    %v1215 = vmul.f32 %v1206, %v1213
    %v1216 = vmul.f32 %v1209, %v1213
    %v1217 = vmul.f32 %v1212, %v1213
    %v1218 = vsub.f32 %v1195, %v1214
    %v1219 = vsub.f32 %v1196, %v1215
    %v1220 = vsub.f32 %v1197, %v1216
    %v1221 = vsub.f32 %v1198, %v1217
    %v1222 = vmul.f32 %v1218, %v1218
    %v1223 = vmul.f32 %v1219, %v1219
    %v1224 = vmul.f32 %v1220, %v1220
    %v1225 = vmul.f32 %v1221, %v1221
    %v1226 = vsel %vm214, %v1222, 0.0
    %1227 = vadd.xlane.f32.xlu0 %v1226
    %v1228 = vpop.xlane.xlu0 %1227
    %v1229 = vsel %vm214, %v1223, 0.0
    %1230 = vadd.xlane.f32.xlu0 %v1229
    %v1231 = vpop.xlane.xlu0 %1230
    %v1232 = vsel %vm214, %v1224, 0.0
    %1233 = vadd.xlane.f32.xlu0 %v1232
    %v1234 = vpop.xlane.xlu0 %1233
    %v1235 = vsel %vm214, %v1225, 0.0
    %1236 = vadd.xlane.f32.xlu0 %v1235
    %v1237 = vpop.xlane.xlu0 %1236
    %v1238 = vmul.f32 %v1228, %v1213
    %v1239 = vmul.f32 %v1231, %v1213
    %v1240 = vmul.f32 %v1234, %v1213
    %v1241 = vmul.f32 %v1237, %v1213
    %v1242 = vadd.f32 %v1238, 1e-05
    %v1243 = vadd.f32 %v1239, 1e-05
    %v1244 = vadd.f32 %v1240, 1e-05
    %v1245 = vadd.f32 %v1241, 1e-05
    %v1246 = vrsqrt.pop %v1242
    %v1247 = vrsqrt.pop %v1243
    %v1248 = vrsqrt.pop %v1244
    %v1249 = vrsqrt.pop %v1245
    %v1250 = vmul.f32 %v1218, %v1246
    %v1251 = vmul.f32 %v1219, %v1247
    %v1252 = vmul.f32 %v1220, %v1248
    %v1253 = vmul.f32 %v1221, %v1249
    %v1255 = vlaneseq
    %v1256 = vshrl.u32 %v1255, 7
    %v1257 = vsub.s32 0, %v1256
    %v1258 = vrot.slane %v1199, %v1257
    %v1260 = vmul.f32 %v1250, %v1258
    %v1261 = vmul.f32 %v1251, %v1258
    %v1262 = vmul.f32 %v1252, %v1258
    %v1263 = vmul.f32 %v1253, %v1258
    %v1265 = vlaneseq
    %v1266 = vshrl.u32 %v1265, 7
    %v1267 = vsub.s32 0, %v1266
    %v1268 = vrot.slane %v1200, %v1267
    %v1270 = vadd.f32 %v1260, %v1268
    %v1271 = vadd.f32 %v1261, %v1268
    %v1272 = vadd.f32 %v1262, %v1268
    %v1273 = vadd.f32 %v1263, %v1268
    %v1274 = vpack.c.bf16 %v1271, %v1270
    %v1275 = vpack.c.bf16 %v1273, %v1272
    %v1276 = vld [vmem:[#allocation7] sm:$0xf]
    %v1277 = vld [vmem:[#allocation7 + $0x4] sm:$0xf]
    %v1278 = vld [vmem:[#allocation7 + $0x8] sm:$0xf]
    %v1279 = vld [vmem:[#allocation7 + $0xc] sm:$0xf]
    %v1280 = vld [vmem:[%s11] sm:$0x1]
    %v1282 = vlaneseq
    %v1283 = vshrl.u32 %v1282, 7
    %v1284 = vsub.s32 0, %v1283
    %v1285 = vrot.slane %v1280, %v1284
    %v1291 = vunpack.c.l.b16 %v1276
    %v1292 = vunpack.c.l.b16 %v1277
    %v1293 = vunpack.c.l.b16 %v1278
    %v1294 = vunpack.c.l.b16 %v1279
    %v1295 = vpack.c.b16 %v1292, %v1291
    %v1296 = vpack.c.b16 %v1294, %v1293
    %v1300 = vsel %vm214, %v1274, 0
    %v1303 = vsel %vm214, %v1275, 0
    %1305 = vmatprep.subr.bf16.mxu0 0
    %1306 = vmatpush1.bf16.msra.mxu0 %v1295
    %1307 = vmatprep.subr.bf16.mxu0 0
    %1308 = vmatpush1.bf16.msra.mxu0 %v1296
    %1309 = vmatprep.subr.bf16.mxu0 0
    %1310 = vmatpush1.bf16.msra.mxu0 0
    %1311 = vmatprep.subr.bf16.mxu0 0
    %1312 = vmatpush1.bf16.msra.mxu0 0
    %1313 = vmatprep.subr.bf16.mxu0 0
    %1314 = vmatpush1.bf16.msra.mxu0 0
    %1315 = vmatprep.subr.bf16.mxu0 0
    %1316 = vmatpush1.bf16.msra.mxu0 0
    %1317 = vmatprep.subr.bf16.mxu0 0
    %1318 = vmatpush1.bf16.msra.mxu0 0
    %1319 = vmatprep.subr.bf16.mxu0 0
    %1320 = vmatpush1.bf16.msra.mxu0 0
    %1321 = vmatprep.subr.bf16.mxu0 0
    %1322 = vmatpush1.bf16.msra.mxu0 0
    %1323 = vmatprep.subr.bf16.mxu0 0
    %1324 = vmatpush1.bf16.msra.mxu0 0
    %1325 = vmatprep.subr.bf16.mxu0 0
    %1326 = vmatpush1.bf16.msra.mxu0 0
    %1327 = vmatprep.subr.bf16.mxu0 0
    %1328 = vmatpush1.bf16.msra.mxu0 0
    %1329 = vmatprep.subr.bf16.mxu0 0
    %1330 = vmatpush1.bf16.msra.mxu0 0
    %1331 = vmatprep.subr.bf16.mxu0 0
    %1332 = vmatpush1.bf16.msra.mxu0 0
    %1333 = vmatprep.subr.bf16.mxu0 0
    %1334 = vmatpush1.bf16.msra.mxu0 0
    %1335 = vmatprep.subr.bf16.mxu0 0
    %1336 = vmatpush1.bf16.msra.mxu0 0
    %1337 = vmatprep.mubr.bf16.mxu0 0
    %1338 = vmatmul.mubr.bf16.gmra.mrb[0].mxu0 %v1300
    %v1339 = vpop.f32.mrb[0].mxu0
    %v1340 = vadd.f32 %v1285, %v1339
    %v1341 = vpop.f32.mrb[0].mxu0
    %v1342 = vpop.f32.mrb[0].mxu0
    %v1343 = vadd.f32 %v1285, %v1342
    %v1344 = vpop.f32.mrb[0].mxu0
    %1345 = vmatprep.mubr.bf16.mxu0 0
    %1346 = vmatmul.mubr.bf16.gmra.mrb[0].mxu0 %v1303
    %v1347 = vpop.f32.mrb[0].mxu0
    %v1348 = vadd.f32 %v1285, %v1347
    %v1349 = vpop.f32.mrb[0].mxu0
    %v1350 = vpop.f32.mrb[0].mxu0
    %v1351 = vadd.f32 %v1285, %v1350
    %v1352 = vpop.f32.mrb[0].mxu0
    %1353 = vdwg.mxu0
    %v1354 = vmax.f32 %v1340, 0.0
    %v1355 = vmax.f32 %v1343, 0.0
    %v1356 = vmax.f32 %v1348, 0.0
    %v1357 = vmax.f32 %v1351, 0.0
    %v1358 = vpack.c.bf16 %v1355, %v1354
    %v1359 = vpack.c.bf16 %v1357, %v1356
    %v1360 = vld [vmem:[%s12] sm:$0xf]
    %v1361 = vld [vmem:[%s12 + $0x4] sm:$0xf]
    %v1362 = vld [vmem:[%s12 + $0x8] sm:$0xf]
    %v1363 = vld [vmem:[%s12 + $0xc] sm:$0xf]
    %v1364 = vld [vmem:[%s12 + $0x10] sm:$0xf]
    %v1365 = vld [vmem:[%s12 + $0x14] sm:$0xf]
    %v1366 = vld [vmem:[%s12 + $0x18] sm:$0xf]
    %v1367 = vld [vmem:[%s12 + $0x1c] sm:$0xf]
    %v1368 = vld [vmem:[%s13] sm:$0x1]
    %v1370 = vlaneseq
    %v1371 = vshrl.u32 %v1370, 7
    %v1372 = vsub.s32 0, %v1371
    %v1373 = vrot.slane %v1368, %v1372
    %v1383 = vunpack.c.l.b16 %v1360
    %v1384 = vunpack.c.l.b16 %v1361
    %v1385 = vunpack.c.l.b16 %v1362
    %v1386 = vunpack.c.l.b16 %v1363
    %v1387 = vunpack.c.l.b16 %v1364
    %v1388 = vunpack.c.l.b16 %v1365
    %v1389 = vunpack.c.l.b16 %v1366
    %v1390 = vunpack.c.l.b16 %v1367
    %v1391 = vpack.c.b16 %v1384, %v1383
    %v1392 = vpack.c.b16 %v1386, %v1385
    %v1393 = vpack.c.b16 %v1388, %v1387
    %v1394 = vpack.c.b16 %v1390, %v1389
    %vm1399 = vcmask 523264
    %v1401 = vsel %vm1399, %v1358, 0
    %v1404 = vsel %vm1399, %v1359, 0
    %1406 = vmatprep.subr.bf16.mxu0 0
    %1407 = vmatpush1.bf16.msra.mxu0 %v1391
    %1408 = vmatprep.subr.bf16.mxu0 0
    %1409 = vmatpush1.bf16.msra.mxu0 %v1392
    %1410 = vmatprep.subr.bf16.mxu0 0
    %1411 = vmatpush1.bf16.msra.mxu0 %v1393
    %1412 = vmatprep.subr.bf16.mxu0 0
    %1413 = vmatpush1.bf16.msra.mxu0 %v1394
    %1414 = vmatprep.subr.bf16.mxu0 0
    %1415 = vmatpush1.bf16.msra.mxu0 0
    %1416 = vmatprep.subr.bf16.mxu0 0
    %1417 = vmatpush1.bf16.msra.mxu0 0
    %1418 = vmatprep.subr.bf16.mxu0 0
    %1419 = vmatpush1.bf16.msra.mxu0 0
    %1420 = vmatprep.subr.bf16.mxu0 0
    %1421 = vmatpush1.bf16.msra.mxu0 0
    %1422 = vmatprep.subr.bf16.mxu0 0
    %1423 = vmatpush1.bf16.msra.mxu0 0
    %1424 = vmatprep.subr.bf16.mxu0 0
    %1425 = vmatpush1.bf16.msra.mxu0 0
    %1426 = vmatprep.subr.bf16.mxu0 0
    %1427 = vmatpush1.bf16.msra.mxu0 0
    %1428 = vmatprep.subr.bf16.mxu0 0
    %1429 = vmatpush1.bf16.msra.mxu0 0
    %1430 = vmatprep.subr.bf16.mxu0 0
    %1431 = vmatpush1.bf16.msra.mxu0 0
    %1432 = vmatprep.subr.bf16.mxu0 0
    %1433 = vmatpush1.bf16.msra.mxu0 0
    %1434 = vmatprep.subr.bf16.mxu0 0
    %1435 = vmatpush1.bf16.msra.mxu0 0
    %1436 = vmatprep.subr.bf16.mxu0 0
    %1437 = vmatpush1.bf16.msra.mxu0 0
    %1438 = vmatprep.mubr.bf16.mxu0 0
    %1439 = vmatmul.mubr.bf16.gmra.mrb[0].mxu0 %v1401
    %v1440 = vpop.f32.mrb[0].mxu0
    %v1441 = vadd.f32 %v1373, %v1440
    %v1442 = vpop.f32.mrb[0].mxu0
    %v1443 = vpop.f32.mrb[0].mxu0
    %v1444 = vadd.f32 %v1373, %v1443
    %v1445 = vpop.f32.mrb[0].mxu0
    %1446 = vmatprep.mubr.bf16.mxu0 0
    %1447 = vmatmul.mubr.bf16.gmra.mrb[0].mxu0 %v1404
    %v1448 = vpop.f32.mrb[0].mxu0
    %v1449 = vadd.f32 %v1373, %v1448
    %v1450 = vpop.f32.mrb[0].mxu0
    %v1451 = vpop.f32.mrb[0].mxu0
    %v1452 = vadd.f32 %v1373, %v1451
    %v1453 = vpop.f32.mrb[0].mxu0
    %1454 = vdwg.mxu0
    %v1455 = vadd.f32 %v1270, %v1441
    %v1456 = vadd.f32 %v1271, %v1444
    %v1457 = vadd.f32 %v1272, %v1449
    %v1458 = vadd.f32 %v1273, %v1452
    %v1459 = vld [vmem:[%s14] sm:$0x1]
    %v1460 = vld [vmem:[%s15] sm:$0x1]
    %v1461 = vsel %vm214, %v1455, 0.0
    %1462 = vadd.xlane.f32.xlu0 %v1461
    %v1463 = vpop.xlane.xlu0 %1462
    %v1464 = vsel %vm214, %v1456, 0.0
    %1465 = vadd.xlane.f32.xlu0 %v1464
    %v1466 = vpop.xlane.xlu0 %1465
    %v1467 = vsel %vm214, %v1457, 0.0
    %1468 = vadd.xlane.f32.xlu0 %v1467
    %v1469 = vpop.xlane.xlu0 %1468
    %v1470 = vsel %vm214, %v1458, 0.0
    %1471 = vadd.xlane.f32.xlu0 %v1470
    %v1472 = vpop.xlane.xlu0 %1471
    %v1473 = vmul.f32 %v1463, %v1213
    %v1474 = vmul.f32 %v1466, %v1213
    %v1475 = vmul.f32 %v1469, %v1213
    %v1476 = vmul.f32 %v1472, %v1213
    %v1477 = vsub.f32 %v1455, %v1473
    %v1478 = vsub.f32 %v1456, %v1474
    %v1479 = vsub.f32 %v1457, %v1475
    %v1480 = vsub.f32 %v1458, %v1476
    %v1481 = vmul.f32 %v1477, %v1477
    %v1482 = vmul.f32 %v1478, %v1478
    %v1483 = vmul.f32 %v1479, %v1479
    %v1484 = vmul.f32 %v1480, %v1480
    %v1485 = vsel %vm214, %v1481, 0.0
    %1486 = vadd.xlane.f32.xlu0 %v1485
    %v1487 = vpop.xlane.xlu0 %1486
    %v1488 = vsel %vm214, %v1482, 0.0
    %1489 = vadd.xlane.f32.xlu0 %v1488
    %v1490 = vpop.xlane.xlu0 %1489
    %v1491 = vsel %vm214, %v1483, 0.0
    %1492 = vadd.xlane.f32.xlu0 %v1491
    %v1493 = vpop.xlane.xlu0 %1492
    %v1494 = vsel %vm214, %v1484, 0.0
    %1495 = vadd.xlane.f32.xlu0 %v1494
    %v1496 = vpop.xlane.xlu0 %1495
    %v1497 = vmul.f32 %v1487, %v1213
    %v1498 = vmul.f32 %v1490, %v1213
    %v1499 = vmul.f32 %v1493, %v1213
    %v1500 = vmul.f32 %v1496, %v1213
    %v1501 = vadd.f32 %v1497, 1e-05
    %v1502 = vadd.f32 %v1498, 1e-05
    %v1503 = vadd.f32 %v1499, 1e-05
    %v1504 = vadd.f32 %v1500, 1e-05
    %v1505 = vrsqrt.pop %v1501
    %v1506 = vrsqrt.pop %v1502
    %v1507 = vrsqrt.pop %v1503
    %v1508 = vrsqrt.pop %v1504
    %v1509 = vmul.f32 %v1477, %v1505
    %v1510 = vmul.f32 %v1478, %v1506
    %v1511 = vmul.f32 %v1479, %v1507
    %v1512 = vmul.f32 %v1480, %v1508
    %v1514 = vlaneseq
    %v1515 = vshrl.u32 %v1514, 7
    %v1516 = vsub.s32 0, %v1515
    %v1517 = vrot.slane %v1459, %v1516
    %v1519 = vmul.f32 %v1509, %v1517
    %v1520 = vmul.f32 %v1510, %v1517
    %v1521 = vmul.f32 %v1511, %v1517
    %v1522 = vmul.f32 %v1512, %v1517
    %v1524 = vlaneseq
    %v1525 = vshrl.u32 %v1524, 7
    %v1526 = vsub.s32 0, %v1525
    %v1527 = vrot.slane %v1460, %v1526
    %v1529 = vadd.f32 %v1519, %v1527
    %v1530 = vadd.f32 %v1520, %v1527
    %v1531 = vadd.f32 %v1521, %v1527
    %v1532 = vadd.f32 %v1522, %v1527
    %v1533 = vadd.f32 %v1529, %v106
    %v1534 = vadd.f32 %v1530, %v107
    %v1535 = vadd.f32 %v1531, %v108
    %v1536 = vadd.f32 %v1532, %v109
    %v1537 = vpack.c.bf16 %v1534, %v1533
    %v1538 = vpack.c.bf16 %v1536, %v1535
    %s1539 = scalar_lea.vmem %s2, 16
    %v1540 = vld [vmem:[%s1539] sm:$0xf]
    %v1541 = vld [vmem:[%s1539 + $0x4] sm:$0xf]
    %v1542 = vld [vmem:[%s1539 + $0x8] sm:$0xf]
    %v1543 = vld [vmem:[%s1539 + $0xc] sm:$0xf]
    %s1544 = scalar_lea.vmem %s3, 1
    %v1545 = vld [vmem:[%s1544] sm:$0x1]
    %v1547 = vlaneseq
    %v1548 = vshrl.u32 %v1547, 7
    %v1549 = vsub.s32 0, %v1548
    %v1550 = vrot.slane %v1545, %v1549
    %v1556 = vunpack.c.l.b16 %v1540
    %v1557 = vunpack.c.l.b16 %v1541
    %v1558 = vunpack.c.l.b16 %v1542
    %v1559 = vunpack.c.l.b16 %v1543
    %v1560 = vpack.c.b16 %v1557, %v1556
    %v1561 = vpack.c.b16 %v1559, %v1558
    %v1565 = vsel %vm214, %v1537, 0
    %v1568 = vsel %vm214, %v1538, 0
    %1570 = vmatprep.subr.bf16.mxu0 0
    %1571 = vmatpush1.bf16.msra.mxu0 %v1560
    %1572 = vmatprep.subr.bf16.mxu0 0
    %1573 = vmatpush1.bf16.msra.mxu0 %v1561
    %1574 = vmatprep.subr.bf16.mxu0 0
    %1575 = vmatpush1.bf16.msra.mxu0 0
    %1576 = vmatprep.subr.bf16.mxu0 0
    %1577 = vmatpush1.bf16.msra.mxu0 0
    %1578 = vmatprep.subr.bf16.mxu0 0
    %1579 = vmatpush1.bf16.msra.mxu0 0
    %1580 = vmatprep.subr.bf16.mxu0 0
    %1581 = vmatpush1.bf16.msra.mxu0 0
    %1582 = vmatprep.subr.bf16.mxu0 0
    %1583 = vmatpush1.bf16.msra.mxu0 0
    %1584 = vmatprep.subr.bf16.mxu0 0
    %1585 = vmatpush1.bf16.msra.mxu0 0
    %1586 = vmatprep.subr.bf16.mxu0 0
    %1587 = vmatpush1.bf16.msra.mxu0 0
    %1588 = vmatprep.subr.bf16.mxu0 0
    %1589 = vmatpush1.bf16.msra.mxu0 0
    %1590 = vmatprep.subr.bf16.mxu0 0
    %1591 = vmatpush1.bf16.msra.mxu0 0
    %1592 = vmatprep.subr.bf16.mxu0 0
    %1593 = vmatpush1.bf16.msra.mxu0 0
    %1594 = vmatprep.subr.bf16.mxu0 0
    %1595 = vmatpush1.bf16.msra.mxu0 0
    %1596 = vmatprep.subr.bf16.mxu0 0
    %1597 = vmatpush1.bf16.msra.mxu0 0
    %1598 = vmatprep.subr.bf16.mxu0 0
    %1599 = vmatpush1.bf16.msra.mxu0 0
    %1600 = vmatprep.subr.bf16.mxu0 0
    %1601 = vmatpush1.bf16.msra.mxu0 0
    %1602 = vmatprep.mubr.bf16.mxu0 0
    %1603 = vmatmul.mubr.bf16.gmra.mrb[0].mxu0 %v1565
    %v1604 = vpop.f32.mrb[0].mxu0
    %v1605 = vadd.f32 %v1550, %v1604
    %v1606 = vpop.f32.mrb[0].mxu0
    %v1607 = vpop.f32.mrb[0].mxu0
    %v1608 = vadd.f32 %v1550, %v1607
    %v1609 = vpop.f32.mrb[0].mxu0
    %1610 = vmatprep.mubr.bf16.mxu0 0
    %1611 = vmatmul.mubr.bf16.gmra.mrb[0].mxu0 %v1568
    %v1612 = vpop.f32.mrb[0].mxu0
    %v1613 = vadd.f32 %v1550, %v1612
    %v1614 = vpop.f32.mrb[0].mxu0
    %v1615 = vpop.f32.mrb[0].mxu0
    %v1616 = vadd.f32 %v1550, %v1615
    %v1617 = vpop.f32.mrb[0].mxu0
    %1618 = vdwg.mxu0
    %v1619 = vpack.c.bf16 %v1530, %v1529
    %v1620 = vpack.c.bf16 %v1532, %v1531
    %s1621 = scalar_lea.vmem [#allocation2], 16
    %v1622 = vld [vmem:[%s1621] sm:$0xf]
    %v1623 = vld [vmem:[%s1621 + $0x4] sm:$0xf]
    %v1624 = vld [vmem:[%s1621 + $0x8] sm:$0xf]
    %v1625 = vld [vmem:[%s1621 + $0xc] sm:$0xf]
    %s1626 = scalar_lea.vmem %s5, 1
    %v1627 = vld [vmem:[%s1626] sm:$0x1]
    %v1629 = vlaneseq
    %v1630 = vshrl.u32 %v1629, 7
    %v1631 = vsub.s32 0, %v1630
    %v1632 = vrot.slane %v1627, %v1631
    %v1638 = vunpack.c.l.b16 %v1622
    %v1639 = vunpack.c.l.b16 %v1623
    %v1640 = vunpack.c.l.b16 %v1624
    %v1641 = vunpack.c.l.b16 %v1625
    %v1642 = vpack.c.b16 %v1639, %v1638
    %v1643 = vpack.c.b16 %v1641, %v1640
    %v1647 = vsel %vm214, %v1619, 0
    %v1650 = vsel %vm214, %v1620, 0
    %1652 = vmatprep.subr.bf16.mxu0 0
    %1653 = vmatpush1.bf16.msra.mxu0 %v1642
    %1654 = vmatprep.subr.bf16.mxu0 0
    %1655 = vmatpush1.bf16.msra.mxu0 %v1643
    %1656 = vmatprep.subr.bf16.mxu0 0
    %1657 = vmatpush1.bf16.msra.mxu0 0
    %1658 = vmatprep.subr.bf16.mxu0 0
    %1659 = vmatpush1.bf16.msra.mxu0 0
    %1660 = vmatprep.subr.bf16.mxu0 0
    %1661 = vmatpush1.bf16.msra.mxu0 0
    %1662 = vmatprep.subr.bf16.mxu0 0
    %1663 = vmatpush1.bf16.msra.mxu0 0
    %1664 = vmatprep.subr.bf16.mxu0 0
    %1665 = vmatpush1.bf16.msra.mxu0 0
    %1666 = vmatprep.subr.bf16.mxu0 0
    %1667 = vmatpush1.bf16.msra.mxu0 0
    %1668 = vmatprep.subr.bf16.mxu0 0
    %1669 = vmatpush1.bf16.msra.mxu0 0
    %1670 = vmatprep.subr.bf16.mxu0 0
    %1671 = vmatpush1.bf16.msra.mxu0 0
    %1672 = vmatprep.subr.bf16.mxu0 0
    %1673 = vmatpush1.bf16.msra.mxu0 0
    %1674 = vmatprep.subr.bf16.mxu0 0
    %1675 = vmatpush1.bf16.msra.mxu0 0
    %1676 = vmatprep.subr.bf16.mxu0 0
    %1677 = vmatpush1.bf16.msra.mxu0 0
    %1678 = vmatprep.subr.bf16.mxu0 0
    %1679 = vmatpush1.bf16.msra.mxu0 0
    %1680 = vmatprep.subr.bf16.mxu0 0
    %1681 = vmatpush1.bf16.msra.mxu0 0
    %1682 = vmatprep.subr.bf16.mxu0 0
    %1683 = vmatpush1.bf16.msra.mxu0 0
    %1684 = vmatprep.mubr.bf16.mxu0 0
    %1685 = vmatmul.mubr.bf16.gmra.mrb[0].mxu0 %v1647
    %v1686 = vpop.f32.mrb[0].mxu0
    %v1687 = vadd.f32 %v1632, %v1686
    %v1688 = vpop.f32.mrb[0].mxu0
    %v1689 = vpop.f32.mrb[0].mxu0
    %v1690 = vadd.f32 %v1632, %v1689
    %v1691 = vpop.f32.mrb[0].mxu0
    %1692 = vmatprep.mubr.bf16.mxu0 0
    %1693 = vmatmul.mubr.bf16.gmra.mrb[0].mxu0 %v1650
    %v1694 = vpop.f32.mrb[0].mxu0
    %v1695 = vadd.f32 %v1632, %v1694
    %v1696 = vpop.f32.mrb[0].mxu0
    %v1697 = vpop.f32.mrb[0].mxu0
    %v1698 = vadd.f32 %v1632, %v1697
    %v1699 = vpop.f32.mrb[0].mxu0
    %1700 = vdwg.mxu0
    %v1701 = vpack.c.bf16 %v1608, %v1605
    %v1702 = vpack.c.bf16 %v1616, %v1613
    %v1703 = vpack.c.bf16 %v1690, %v1687
    %v1704 = vpack.c.bf16 %v1698, %v1695
    %1707 = vrot.lane.b32.xlu0 %v1701, 96
    %v1708 = vpop.permute.xlu0 %1707
    %1709 = vrot.lane.b32.xlu0 %v1702, 96
    %v1710 = vpop.permute.xlu0 %1709
    %v1712 = vsel %vm360, %v1701, 0
    %v1715 = vsel %vm360, %v1702, 0
    %v1718 = vsel %vm360, %v1708, 0
    %v1721 = vsel %vm360, %v1710, 0
    %1723 = vmatprep.subr.bf16.mxu0 0
    %1724 = vmatpush1.bf16.xpose.msra.mxu0 %v1718
    %1725 = vmatprep.subr.bf16.mxu0 0
    %1726 = vmatpush1.bf16.xpose.msra.mxu0 %v1721
    %1727 = vmatprep.subr.bf16.mxu0 0
    %1728 = vmatpush1.bf16.xpose.msra.mxu0 0
    %1729 = vmatprep.subr.bf16.mxu0 0
    %1730 = vmatpush1.bf16.xpose.msra.mxu0 0
    %1731 = vmatprep.subr.bf16.mxu0 0
    %1732 = vmatpush1.bf16.xpose.msra.mxu0 0
    %1733 = vmatprep.subr.bf16.mxu0 0
    %1734 = vmatpush1.bf16.xpose.msra.mxu0 0
    %1735 = vmatprep.subr.bf16.mxu0 0
    %1736 = vmatpush1.bf16.xpose.msra.mxu0 0
    %1737 = vmatprep.subr.bf16.mxu0 0
    %1738 = vmatpush1.bf16.xpose.msra.mxu0 0
    %1739 = vmatprep.subr.bf16.mxu0 0
    %1740 = vmatpush1.bf16.xpose.msra.mxu0 0
    %1741 = vmatprep.subr.bf16.mxu0 0
    %1742 = vmatpush1.bf16.xpose.msra.mxu0 0
    %1743 = vmatprep.subr.bf16.mxu0 0
    %1744 = vmatpush1.bf16.xpose.msra.mxu0 0
    %1745 = vmatprep.subr.bf16.mxu0 0
    %1746 = vmatpush1.bf16.xpose.msra.mxu0 0
    %1747 = vmatprep.subr.bf16.mxu0 0
    %1748 = vmatpush1.bf16.xpose.msra.mxu0 0
    %1749 = vmatprep.subr.bf16.mxu0 0
    %1750 = vmatpush1.bf16.xpose.msra.mxu0 0
    %1751 = vmatprep.subr.bf16.mxu0 0
    %1752 = vmatpush1.bf16.xpose.msra.mxu0 0
    %1753 = vmatprep.subr.bf16.mxu0 0
    %1754 = vmatpush1.bf16.xpose.msra.mxu0 0
    %1755 = vmatprep.mubr.bf16.mxu0 0
    %1756 = vmatmul.mubr.bf16.gmra.mrb[0].mxu0 %v1712
    %v1757 = vpop.f32.mrb[0].mxu0
    %v1758 = vadd.f32 %v181, %v1757
    %v1759 = vpop.f32.mrb[0].mxu0
    %v1760 = vpop.f32.mrb[0].mxu0
    %v1761 = vadd.f32 %v182, %v1760
    %v1762 = vpop.f32.mrb[0].mxu0
    %1763 = vmatprep.mubr.bf16.mxu0 0
    %1764 = vmatmul.mubr.bf16.gmra.mrb[0].mxu0 %v1715
    %v1765 = vpop.f32.mrb[0].mxu0
    %v1766 = vadd.f32 %v183, %v1765
    %v1767 = vpop.f32.mrb[0].mxu0
    %v1768 = vpop.f32.mrb[0].mxu0
    %v1769 = vadd.f32 %v184, %v1768
    %v1770 = vpop.f32.mrb[0].mxu0
    %1771 = vdwg.mxu0
    %v1772 = vsel %vm214, %v1758, -inf
    %1773 = vmax.xlane.f32.xlu0 %v1772
    %v1774 = vpop.xlane.xlu0 %1773
    %v1775 = vsel %vm214, %v1761, -inf
    %1776 = vmax.xlane.f32.xlu0 %v1775
    %v1777 = vpop.xlane.xlu0 %1776
    %v1778 = vsel %vm214, %v1766, -inf
    %1779 = vmax.xlane.f32.xlu0 %v1778
    %v1780 = vpop.xlane.xlu0 %1779
    %v1781 = vsel %vm214, %v1769, -inf
    %1782 = vmax.xlane.f32.xlu0 %v1781
    %v1783 = vpop.xlane.xlu0 %1782
    %v1784 = vsub.f32 %v1758, %v1774
    %v1785 = vsub.f32 %v1761, %v1777
    %v1786 = vsub.f32 %v1766, %v1780
    %v1787 = vsub.f32 %v1769, %v1783
    %v1788 = vmul.f32 %v1784, 1.442695
    %v1789 = vpow.pop %v1788
    %v1790 = vmul.f32 %v1785, 1.442695
    %v1791 = vpow.pop %v1790
    %v1792 = vmul.f32 %v1786, 1.442695
    %v1793 = vpow.pop %v1792
    %v1794 = vmul.f32 %v1787, 1.442695
    %v1795 = vpow.pop %v1794
    %v1796 = vsel %vm214, %v1789, 0.0
    %1797 = vadd.xlane.f32.xlu0 %v1796
    %v1798 = vpop.xlane.xlu0 %1797
    %v1799 = vsel %vm214, %v1791, 0.0
    %1800 = vadd.xlane.f32.xlu0 %v1799
    %v1801 = vpop.xlane.xlu0 %1800
    %v1802 = vsel %vm214, %v1793, 0.0
    %1803 = vadd.xlane.f32.xlu0 %v1802
    %v1804 = vpop.xlane.xlu0 %1803
    %v1805 = vsel %vm214, %v1795, 0.0
    %1806 = vadd.xlane.f32.xlu0 %v1805
    %v1807 = vpop.xlane.xlu0 %1806
    %v1808 = vrcp.pop %v1798
    %v1809 = vrcp.pop %v1801
    %v1810 = vrcp.pop %v1804
    %v1811 = vrcp.pop %v1807
    %v1812 = vmul.f32 %v1789, %v1808
    %v1813 = vmul.f32 %v1791, %v1809
    %v1814 = vmul.f32 %v1793, %v1810
    %v1815 = vmul.f32 %v1795, %v1811
    %v1816 = vpack.c.bf16 %v1813, %v1812
    %v1817 = vpack.c.bf16 %v1815, %v1814
    %v1819 = vsel %vm214, %v1816, 0
    %v1822 = vsel %vm214, %v1817, 0
    %1824 = vmatprep.subr.bf16.mxu0 0
    %1825 = vmatpush1.bf16.msra.mxu0 %v1703
    %1826 = vmatprep.subr.bf16.mxu0 0
    %1827 = vmatpush1.bf16.msra.mxu0 %v1704
    %1828 = vmatprep.subr.bf16.mxu0 0
    %1829 = vmatpush1.bf16.msra.mxu0 0
    %1830 = vmatprep.subr.bf16.mxu0 0
    %1831 = vmatpush1.bf16.msra.mxu0 0
    %1832 = vmatprep.subr.bf16.mxu0 0
    %1833 = vmatpush1.bf16.msra.mxu0 0
    %1834 = vmatprep.subr.bf16.mxu0 0
    %1835 = vmatpush1.bf16.msra.mxu0 0
    %1836 = vmatprep.subr.bf16.mxu0 0
    %1837 = vmatpush1.bf16.msra.mxu0 0
    %1838 = vmatprep.subr.bf16.mxu0 0
    %1839 = vmatpush1.bf16.msra.mxu0 0
    %1840 = vmatprep.subr.bf16.mxu0 0
    %1841 = vmatpush1.bf16.msra.mxu0 0
    %1842 = vmatprep.subr.bf16.mxu0 0
    %1843 = vmatpush1.bf16.msra.mxu0 0
    %1844 = vmatprep.subr.bf16.mxu0 0
    %1845 = vmatpush1.bf16.msra.mxu0 0
    %1846 = vmatprep.subr.bf16.mxu0 0
    %1847 = vmatpush1.bf16.msra.mxu0 0
    %1848 = vmatprep.subr.bf16.mxu0 0
    %1849 = vmatpush1.bf16.msra.mxu0 0
    %1850 = vmatprep.subr.bf16.mxu0 0
    %1851 = vmatpush1.bf16.msra.mxu0 0
    %1852 = vmatprep.subr.bf16.mxu0 0
    %1853 = vmatpush1.bf16.msra.mxu0 0
    %1854 = vmatprep.subr.bf16.mxu0 0
    %1855 = vmatpush1.bf16.msra.mxu0 0
    %1856 = vmatprep.mubr.bf16.mxu0 0
    %1857 = vmatmul.mubr.bf16.gmra.mrb[0].mxu0 %v1819
    %v1858 = vpop.f32.mrb[0].mxu0
    %v1859 = vadd.f32 0.0, %v1858
    %v1860 = vpop.f32.mrb[0].mxu0
    %v1861 = vpop.f32.mrb[0].mxu0
    %v1862 = vadd.f32 0.0, %v1861
    %v1863 = vpop.f32.mrb[0].mxu0
    %1864 = vmatprep.mubr.bf16.mxu0 0
    %1865 = vmatmul.mubr.bf16.gmra.mrb[0].mxu0 %v1822
    %v1866 = vpop.f32.mrb[0].mxu0
    %v1867 = vadd.f32 0.0, %v1866
    %v1868 = vpop.f32.mrb[0].mxu0
    %v1869 = vpop.f32.mrb[0].mxu0
    %v1870 = vadd.f32 0.0, %v1869
    %v1871 = vpop.f32.mrb[0].mxu0
    %1872 = vdwg.mxu0
    %1873 = vrot.lane.b32.xlu0 %v1701, 120
    %v1874 = vpop.permute.xlu0 %1873
    %1875 = vrot.lane.b32.xlu0 %v1702, 120
    %v1876 = vpop.permute.xlu0 %1875
    %1877 = vrot.lane.b32.xlu0 %v1701, 88
    %v1878 = vpop.permute.xlu0 %1877
    %1879 = vrot.lane.b32.xlu0 %v1702, 88
    %v1880 = vpop.permute.xlu0 %1879
    %v1882 = vsel %vm360, %v1874, 0
    %v1885 = vsel %vm360, %v1876, 0
    %v1888 = vsel %vm360, %v1878, 0
    %v1891 = vsel %vm360, %v1880, 0
    %1893 = vmatprep.subr.bf16.mxu0 0
    %1894 = vmatpush1.bf16.xpose.msra.mxu0 %v1888
    %1895 = vmatprep.subr.bf16.mxu0 0
    %1896 = vmatpush1.bf16.xpose.msra.mxu0 %v1891
    %1897 = vmatprep.subr.bf16.mxu0 0
    %1898 = vmatpush1.bf16.xpose.msra.mxu0 0
    %1899 = vmatprep.subr.bf16.mxu0 0
    %1900 = vmatpush1.bf16.xpose.msra.mxu0 0
    %1901 = vmatprep.subr.bf16.mxu0 0
    %1902 = vmatpush1.bf16.xpose.msra.mxu0 0
    %1903 = vmatprep.subr.bf16.mxu0 0
    %1904 = vmatpush1.bf16.xpose.msra.mxu0 0
    %1905 = vmatprep.subr.bf16.mxu0 0
    %1906 = vmatpush1.bf16.xpose.msra.mxu0 0
    %1907 = vmatprep.subr.bf16.mxu0 0
    %1908 = vmatpush1.bf16.xpose.msra.mxu0 0
    %1909 = vmatprep.subr.bf16.mxu0 0
    %1910 = vmatpush1.bf16.xpose.msra.mxu0 0
    %1911 = vmatprep.subr.bf16.mxu0 0
    %1912 = vmatpush1.bf16.xpose.msra.mxu0 0
    %1913 = vmatprep.subr.bf16.mxu0 0
    %1914 = vmatpush1.bf16.xpose.msra.mxu0 0
    %1915 = vmatprep.subr.bf16.mxu0 0
    %1916 = vmatpush1.bf16.xpose.msra.mxu0 0
    %1917 = vmatprep.subr.bf16.mxu0 0
    %1918 = vmatpush1.bf16.xpose.msra.mxu0 0
    %1919 = vmatprep.subr.bf16.mxu0 0
    %1920 = vmatpush1.bf16.xpose.msra.mxu0 0
    %1921 = vmatprep.subr.bf16.mxu0 0
    %1922 = vmatpush1.bf16.xpose.msra.mxu0 0
    %1923 = vmatprep.subr.bf16.mxu0 0
    %1924 = vmatpush1.bf16.xpose.msra.mxu0 0
    %1925 = vmatprep.mubr.bf16.mxu0 0
    %1926 = vmatmul.mubr.bf16.gmra.mrb[0].mxu0 %v1882
    %v1927 = vpop.f32.mrb[0].mxu0
    %v1928 = vadd.f32 %v181, %v1927
    %v1929 = vpop.f32.mrb[0].mxu0
    %v1930 = vpop.f32.mrb[0].mxu0
    %v1931 = vadd.f32 %v182, %v1930
    %v1932 = vpop.f32.mrb[0].mxu0
    %1933 = vmatprep.mubr.bf16.mxu0 0
    %1934 = vmatmul.mubr.bf16.gmra.mrb[0].mxu0 %v1885
    %v1935 = vpop.f32.mrb[0].mxu0
    %v1936 = vadd.f32 %v183, %v1935
    %v1937 = vpop.f32.mrb[0].mxu0
    %v1938 = vpop.f32.mrb[0].mxu0
    %v1939 = vadd.f32 %v184, %v1938
    %v1940 = vpop.f32.mrb[0].mxu0
    %1941 = vdwg.mxu0
    %v1942 = vsel %vm214, %v1928, -inf
    %1943 = vmax.xlane.f32.xlu0 %v1942
    %v1944 = vpop.xlane.xlu0 %1943
    %v1945 = vsel %vm214, %v1931, -inf
    %1946 = vmax.xlane.f32.xlu0 %v1945
    %v1947 = vpop.xlane.xlu0 %1946
    %v1948 = vsel %vm214, %v1936, -inf
    %1949 = vmax.xlane.f32.xlu0 %v1948
    %v1950 = vpop.xlane.xlu0 %1949
    %v1951 = vsel %vm214, %v1939, -inf
    %1952 = vmax.xlane.f32.xlu0 %v1951
    %v1953 = vpop.xlane.xlu0 %1952
    %v1954 = vsub.f32 %v1928, %v1944
    %v1955 = vsub.f32 %v1931, %v1947
    %v1956 = vsub.f32 %v1936, %v1950
    %v1957 = vsub.f32 %v1939, %v1953
    %v1958 = vmul.f32 %v1954, 1.442695
    %v1959 = vpow.pop %v1958
    %v1960 = vmul.f32 %v1955, 1.442695
    %v1961 = vpow.pop %v1960
    %v1962 = vmul.f32 %v1956, 1.442695
    %v1963 = vpow.pop %v1962
    %v1964 = vmul.f32 %v1957, 1.442695
    %v1965 = vpow.pop %v1964
    %v1966 = vsel %vm214, %v1959, 0.0
    %1967 = vadd.xlane.f32.xlu0 %v1966
    %v1968 = vpop.xlane.xlu0 %1967
    %v1969 = vsel %vm214, %v1961, 0.0
    %1970 = vadd.xlane.f32.xlu0 %v1969
    %v1971 = vpop.xlane.xlu0 %1970
    %v1972 = vsel %vm214, %v1963, 0.0
    %1973 = vadd.xlane.f32.xlu0 %v1972
    %v1974 = vpop.xlane.xlu0 %1973
    %v1975 = vsel %vm214, %v1965, 0.0
    %1976 = vadd.xlane.f32.xlu0 %v1975
    %v1977 = vpop.xlane.xlu0 %1976
    %v1978 = vrcp.pop %v1968
    %v1979 = vrcp.pop %v1971
    %v1980 = vrcp.pop %v1974
    %v1981 = vrcp.pop %v1977
    %v1982 = vmul.f32 %v1959, %v1978
    %v1983 = vmul.f32 %v1961, %v1979
    %v1984 = vmul.f32 %v1963, %v1980
    %v1985 = vmul.f32 %v1965, %v1981
    %v1986 = vpack.c.bf16 %v1983, %v1982
    %v1987 = vpack.c.bf16 %v1985, %v1984
    %1990 = vrot.lane.b32.xlu0 %v1703, 120
    %v1991 = vpop.permute.xlu0 %1990
    %1992 = vrot.lane.b32.xlu0 %v1704, 120
    %v1993 = vpop.permute.xlu0 %1992
    %v1997 = vsel %vm214, %v1986, 0
    %v2000 = vsel %vm214, %v1987, 0
    %2002 = vmatprep.subr.bf16.mxu0 0
    %2003 = vmatpush1.bf16.msra.mxu0 %v1991
    %2004 = vmatprep.subr.bf16.mxu0 0
    %2005 = vmatpush1.bf16.msra.mxu0 %v1993
    %2006 = vmatprep.subr.bf16.mxu0 0
    %2007 = vmatpush1.bf16.msra.mxu0 0
    %2008 = vmatprep.subr.bf16.mxu0 0
    %2009 = vmatpush1.bf16.msra.mxu0 0
    %2010 = vmatprep.subr.bf16.mxu0 0
    %2011 = vmatpush1.bf16.msra.mxu0 0
    %2012 = vmatprep.subr.bf16.mxu0 0
    %2013 = vmatpush1.bf16.msra.mxu0 0
    %2014 = vmatprep.subr.bf16.mxu0 0
    %2015 = vmatpush1.bf16.msra.mxu0 0
    %2016 = vmatprep.subr.bf16.mxu0 0
    %2017 = vmatpush1.bf16.msra.mxu0 0
    %2018 = vmatprep.subr.bf16.mxu0 0
    %2019 = vmatpush1.bf16.msra.mxu0 0
    %2020 = vmatprep.subr.bf16.mxu0 0
    %2021 = vmatpush1.bf16.msra.mxu0 0
    %2022 = vmatprep.subr.bf16.mxu0 0
    %2023 = vmatpush1.bf16.msra.mxu0 0
    %2024 = vmatprep.subr.bf16.mxu0 0
    %2025 = vmatpush1.bf16.msra.mxu0 0
    %2026 = vmatprep.subr.bf16.mxu0 0
    %2027 = vmatpush1.bf16.msra.mxu0 0
    %2028 = vmatprep.subr.bf16.mxu0 0
    %2029 = vmatpush1.bf16.msra.mxu0 0
    %2030 = vmatprep.subr.bf16.mxu0 0
    %2031 = vmatpush1.bf16.msra.mxu0 0
    %2032 = vmatprep.subr.bf16.mxu0 0
    %2033 = vmatpush1.bf16.msra.mxu0 0
    %2034 = vmatprep.mubr.bf16.mxu0 0
    %2035 = vmatmul.mubr.bf16.gmra.mrb[0].mxu0 %v1997
    %v2036 = vpop.f32.mrb[0].mxu0
    %v2037 = vadd.f32 0.0, %v2036
    %v2038 = vpop.f32.mrb[0].mxu0
    %v2039 = vpop.f32.mrb[0].mxu0
    %v2040 = vadd.f32 0.0, %v2039
    %v2041 = vpop.f32.mrb[0].mxu0
    %2042 = vmatprep.mubr.bf16.mxu0 0
    %2043 = vmatmul.mubr.bf16.gmra.mrb[0].mxu0 %v2000
    %v2044 = vpop.f32.mrb[0].mxu0
    %v2045 = vadd.f32 0.0, %v2044
    %v2046 = vpop.f32.mrb[0].mxu0
    %v2047 = vpop.f32.mrb[0].mxu0
    %v2048 = vadd.f32 0.0, %v2047
    %v2049 = vpop.f32.mrb[0].mxu0
    %2050 = vdwg.mxu0
    %2051 = vrot.lane.b32.xlu0 %v1701, 112
    %v2052 = vpop.permute.xlu0 %2051
    %2053 = vrot.lane.b32.xlu0 %v1702, 112
    %v2054 = vpop.permute.xlu0 %2053
    %2055 = vrot.lane.b32.xlu0 %v1701, 80
    %v2056 = vpop.permute.xlu0 %2055
    %2057 = vrot.lane.b32.xlu0 %v1702, 80
    %v2058 = vpop.permute.xlu0 %2057
    %v2060 = vsel %vm360, %v2052, 0
    %v2063 = vsel %vm360, %v2054, 0
    %v2066 = vsel %vm360, %v2056, 0
    %v2069 = vsel %vm360, %v2058, 0
    %2071 = vmatprep.subr.bf16.mxu0 0
    %2072 = vmatpush1.bf16.xpose.msra.mxu0 %v2066
    %2073 = vmatprep.subr.bf16.mxu0 0
    %2074 = vmatpush1.bf16.xpose.msra.mxu0 %v2069
    %2075 = vmatprep.subr.bf16.mxu0 0
    %2076 = vmatpush1.bf16.xpose.msra.mxu0 0
    %2077 = vmatprep.subr.bf16.mxu0 0
    %2078 = vmatpush1.bf16.xpose.msra.mxu0 0
    %2079 = vmatprep.subr.bf16.mxu0 0
    %2080 = vmatpush1.bf16.xpose.msra.mxu0 0
    %2081 = vmatprep.subr.bf16.mxu0 0
    %2082 = vmatpush1.bf16.xpose.msra.mxu0 0
    %2083 = vmatprep.subr.bf16.mxu0 0
    %2084 = vmatpush1.bf16.xpose.msra.mxu0 0
    %2085 = vmatprep.subr.bf16.mxu0 0
    %2086 = vmatpush1.bf16.xpose.msra.mxu0 0
    %2087 = vmatprep.subr.bf16.mxu0 0
    %2088 = vmatpush1.bf16.xpose.msra.mxu0 0
    %2089 = vmatprep.subr.bf16.mxu0 0
    %2090 = vmatpush1.bf16.xpose.msra.mxu0 0
    %2091 = vmatprep.subr.bf16.mxu0 0
    %2092 = vmatpush1.bf16.xpose.msra.mxu0 0
    %2093 = vmatprep.subr.bf16.mxu0 0
    %2094 = vmatpush1.bf16.xpose.msra.mxu0 0
    %2095 = vmatprep.subr.bf16.mxu0 0
    %2096 = vmatpush1.bf16.xpose.msra.mxu0 0
    %2097 = vmatprep.subr.bf16.mxu0 0
    %2098 = vmatpush1.bf16.xpose.msra.mxu0 0
    %2099 = vmatprep.subr.bf16.mxu0 0
    %2100 = vmatpush1.bf16.xpose.msra.mxu0 0
    %2101 = vmatprep.subr.bf16.mxu0 0
    %2102 = vmatpush1.bf16.xpose.msra.mxu0 0
    %2103 = vmatprep.mubr.bf16.mxu0 0
    %2104 = vmatmul.mubr.bf16.gmra.mrb[0].mxu0 %v2060
    %v2105 = vpop.f32.mrb[0].mxu0
    %v2106 = vadd.f32 %v181, %v2105
    %v2107 = vpop.f32.mrb[0].mxu0
    %v2108 = vpop.f32.mrb[0].mxu0
    %v2109 = vadd.f32 %v182, %v2108
    %v2110 = vpop.f32.mrb[0].mxu0
    %2111 = vmatprep.mubr.bf16.mxu0 0
    %2112 = vmatmul.mubr.bf16.gmra.mrb[0].mxu0 %v2063
    %v2113 = vpop.f32.mrb[0].mxu0
    %v2114 = vadd.f32 %v183, %v2113
    %v2115 = vpop.f32.mrb[0].mxu0
    %v2116 = vpop.f32.mrb[0].mxu0
    %v2117 = vadd.f32 %v184, %v2116
    %v2118 = vpop.f32.mrb[0].mxu0
    %2119 = vdwg.mxu0
    %v2120 = vsel %vm214, %v2106, -inf
    %2121 = vmax.xlane.f32.xlu0 %v2120
    %v2122 = vpop.xlane.xlu0 %2121
    %v2123 = vsel %vm214, %v2109, -inf
    %2124 = vmax.xlane.f32.xlu0 %v2123
    %v2125 = vpop.xlane.xlu0 %2124
    %v2126 = vsel %vm214, %v2114, -inf
    %2127 = vmax.xlane.f32.xlu0 %v2126
    %v2128 = vpop.xlane.xlu0 %2127
    %v2129 = vsel %vm214, %v2117, -inf
    %2130 = vmax.xlane.f32.xlu0 %v2129
    %v2131 = vpop.xlane.xlu0 %2130
    %v2132 = vsub.f32 %v2106, %v2122
    %v2133 = vsub.f32 %v2109, %v2125
    %v2134 = vsub.f32 %v2114, %v2128
    %v2135 = vsub.f32 %v2117, %v2131
    %v2136 = vmul.f32 %v2132, 1.442695
    %v2137 = vpow.pop %v2136
    %v2138 = vmul.f32 %v2133, 1.442695
    %v2139 = vpow.pop %v2138
    %v2140 = vmul.f32 %v2134, 1.442695
    %v2141 = vpow.pop %v2140
    %v2142 = vmul.f32 %v2135, 1.442695
    %v2143 = vpow.pop %v2142
    %v2144 = vsel %vm214, %v2137, 0.0
    %2145 = vadd.xlane.f32.xlu0 %v2144
    %v2146 = vpop.xlane.xlu0 %2145
    %v2147 = vsel %vm214, %v2139, 0.0
    %2148 = vadd.xlane.f32.xlu0 %v2147
    %v2149 = vpop.xlane.xlu0 %2148
    %v2150 = vsel %vm214, %v2141, 0.0
    %2151 = vadd.xlane.f32.xlu0 %v2150
    %v2152 = vpop.xlane.xlu0 %2151
    %v2153 = vsel %vm214, %v2143, 0.0
    %2154 = vadd.xlane.f32.xlu0 %v2153
    %v2155 = vpop.xlane.xlu0 %2154
    %v2156 = vrcp.pop %v2146
    %v2157 = vrcp.pop %v2149
    %v2158 = vrcp.pop %v2152
    %v2159 = vrcp.pop %v2155
    %v2160 = vmul.f32 %v2137, %v2156
    %v2161 = vmul.f32 %v2139, %v2157
    %v2162 = vmul.f32 %v2141, %v2158
    %v2163 = vmul.f32 %v2143, %v2159
    %v2164 = vpack.c.bf16 %v2161, %v2160
    %v2165 = vpack.c.bf16 %v2163, %v2162
    %2166 = vrot.lane.b32.xlu0 %v1703, 112
    %v2167 = vpop.permute.xlu0 %2166
    %2168 = vrot.lane.b32.xlu0 %v1704, 112
    %v2169 = vpop.permute.xlu0 %2168
    %v2173 = vsel %vm214, %v2164, 0
    %v2176 = vsel %vm214, %v2165, 0
    %2178 = vmatprep.subr.bf16.mxu0 0
    %2179 = vmatpush1.bf16.msra.mxu0 %v2167
    %2180 = vmatprep.subr.bf16.mxu0 0
    %2181 = vmatpush1.bf16.msra.mxu0 %v2169
    %2182 = vmatprep.subr.bf16.mxu0 0
    %2183 = vmatpush1.bf16.msra.mxu0 0
    %2184 = vmatprep.subr.bf16.mxu0 0
    %2185 = vmatpush1.bf16.msra.mxu0 0
    %2186 = vmatprep.subr.bf16.mxu0 0
    %2187 = vmatpush1.bf16.msra.mxu0 0
    %2188 = vmatprep.subr.bf16.mxu0 0
    %2189 = vmatpush1.bf16.msra.mxu0 0
    %2190 = vmatprep.subr.bf16.mxu0 0
    %2191 = vmatpush1.bf16.msra.mxu0 0
    %2192 = vmatprep.subr.bf16.mxu0 0
    %2193 = vmatpush1.bf16.msra.mxu0 0
    %2194 = vmatprep.subr.bf16.mxu0 0
    %2195 = vmatpush1.bf16.msra.mxu0 0
    %2196 = vmatprep.subr.bf16.mxu0 0
    %2197 = vmatpush1.bf16.msra.mxu0 0
    %2198 = vmatprep.subr.bf16.mxu0 0
    %2199 = vmatpush1.bf16.msra.mxu0 0
    %2200 = vmatprep.subr.bf16.mxu0 0
    %2201 = vmatpush1.bf16.msra.mxu0 0
    %2202 = vmatprep.subr.bf16.mxu0 0
    %2203 = vmatpush1.bf16.msra.mxu0 0
    %2204 = vmatprep.subr.bf16.mxu0 0
    %2205 = vmatpush1.bf16.msra.mxu0 0
    %2206 = vmatprep.subr.bf16.mxu0 0
    %2207 = vmatpush1.bf16.msra.mxu0 0
    %2208 = vmatprep.subr.bf16.mxu0 0
    %2209 = vmatpush1.bf16.msra.mxu0 0
    %2210 = vmatprep.mubr.bf16.mxu0 0
    %2211 = vmatmul.mubr.bf16.gmra.mrb[0].mxu0 %v2173
    %v2212 = vpop.f32.mrb[0].mxu0
    %v2213 = vadd.f32 0.0, %v2212
    %v2214 = vpop.f32.mrb[0].mxu0
    %v2215 = vpop.f32.mrb[0].mxu0
    %v2216 = vadd.f32 0.0, %v2215
    %v2217 = vpop.f32.mrb[0].mxu0
    %2218 = vmatprep.mubr.bf16.mxu0 0
    %2219 = vmatmul.mubr.bf16.gmra.mrb[0].mxu0 %v2176
    %v2220 = vpop.f32.mrb[0].mxu0
    %v2221 = vadd.f32 0.0, %v2220
    %v2222 = vpop.f32.mrb[0].mxu0
    %v2223 = vpop.f32.mrb[0].mxu0
    %v2224 = vadd.f32 0.0, %v2223
    %v2225 = vpop.f32.mrb[0].mxu0
    %2226 = vdwg.mxu0
    %2227 = vrot.lane.b32.xlu0 %v1701, 104
    %v2228 = vpop.permute.xlu0 %2227
    %2229 = vrot.lane.b32.xlu0 %v1702, 104
    %v2230 = vpop.permute.xlu0 %2229
    %2231 = vrot.lane.b32.xlu0 %v1701, 72
    %v2232 = vpop.permute.xlu0 %2231
    %2233 = vrot.lane.b32.xlu0 %v1702, 72
    %v2234 = vpop.permute.xlu0 %2233
    %v2236 = vsel %vm360, %v2228, 0
    %v2239 = vsel %vm360, %v2230, 0
    %v2242 = vsel %vm360, %v2232, 0
    %v2245 = vsel %vm360, %v2234, 0
    %2247 = vmatprep.subr.bf16.mxu0 0
    %2248 = vmatpush1.bf16.xpose.msra.mxu0 %v2242
    %2249 = vmatprep.subr.bf16.mxu0 0
    %2250 = vmatpush1.bf16.xpose.msra.mxu0 %v2245
    %2251 = vmatprep.subr.bf16.mxu0 0
    %2252 = vmatpush1.bf16.xpose.msra.mxu0 0
    %2253 = vmatprep.subr.bf16.mxu0 0
    %2254 = vmatpush1.bf16.xpose.msra.mxu0 0
    %2255 = vmatprep.subr.bf16.mxu0 0
    %2256 = vmatpush1.bf16.xpose.msra.mxu0 0
    %2257 = vmatprep.subr.bf16.mxu0 0
    %2258 = vmatpush1.bf16.xpose.msra.mxu0 0
    %2259 = vmatprep.subr.bf16.mxu0 0
    %2260 = vmatpush1.bf16.xpose.msra.mxu0 0
    %2261 = vmatprep.subr.bf16.mxu0 0
    %2262 = vmatpush1.bf16.xpose.msra.mxu0 0
    %2263 = vmatprep.subr.bf16.mxu0 0
    %2264 = vmatpush1.bf16.xpose.msra.mxu0 0
    %2265 = vmatprep.subr.bf16.mxu0 0
    %2266 = vmatpush1.bf16.xpose.msra.mxu0 0
    %2267 = vmatprep.subr.bf16.mxu0 0
    %2268 = vmatpush1.bf16.xpose.msra.mxu0 0
    %2269 = vmatprep.subr.bf16.mxu0 0
    %2270 = vmatpush1.bf16.xpose.msra.mxu0 0
    %2271 = vmatprep.subr.bf16.mxu0 0
    %2272 = vmatpush1.bf16.xpose.msra.mxu0 0
    %2273 = vmatprep.subr.bf16.mxu0 0
    %2274 = vmatpush1.bf16.xpose.msra.mxu0 0
    %2275 = vmatprep.subr.bf16.mxu0 0
    %2276 = vmatpush1.bf16.xpose.msra.mxu0 0
    %2277 = vmatprep.subr.bf16.mxu0 0
    %2278 = vmatpush1.bf16.xpose.msra.mxu0 0
    %2279 = vmatprep.mubr.bf16.mxu0 0
    %2280 = vmatmul.mubr.bf16.gmra.mrb[0].mxu0 %v2236
    %v2281 = vpop.f32.mrb[0].mxu0
    %v2282 = vadd.f32 %v181, %v2281
    %v2283 = vpop.f32.mrb[0].mxu0
    %v2284 = vpop.f32.mrb[0].mxu0
    %v2285 = vadd.f32 %v182, %v2284
    %v2286 = vpop.f32.mrb[0].mxu0
    %2287 = vmatprep.mubr.bf16.mxu0 0
    %2288 = vmatmul.mubr.bf16.gmra.mrb[0].mxu0 %v2239
    %v2289 = vpop.f32.mrb[0].mxu0
    %v2290 = vadd.f32 %v183, %v2289
    %v2291 = vpop.f32.mrb[0].mxu0
    %v2292 = vpop.f32.mrb[0].mxu0
    %v2293 = vadd.f32 %v184, %v2292
    %v2294 = vpop.f32.mrb[0].mxu0
    %2295 = vdwg.mxu0
    %v2296 = vsel %vm214, %v2282, -inf
    %2297 = vmax.xlane.f32.xlu0 %v2296
    %v2298 = vpop.xlane.xlu0 %2297
    %v2299 = vsel %vm214, %v2285, -inf
    %2300 = vmax.xlane.f32.xlu0 %v2299
    %v2301 = vpop.xlane.xlu0 %2300
    %v2302 = vsel %vm214, %v2290, -inf
    %2303 = vmax.xlane.f32.xlu0 %v2302
    %v2304 = vpop.xlane.xlu0 %2303
    %v2305 = vsel %vm214, %v2293, -inf
    %2306 = vmax.xlane.f32.xlu0 %v2305
    %v2307 = vpop.xlane.xlu0 %2306
    %v2308 = vsub.f32 %v2282, %v2298
    %v2309 = vsub.f32 %v2285, %v2301
    %v2310 = vsub.f32 %v2290, %v2304
    %v2311 = vsub.f32 %v2293, %v2307
    %v2312 = vmul.f32 %v2308, 1.442695
    %v2313 = vpow.pop %v2312
    %v2314 = vmul.f32 %v2309, 1.442695
    %v2315 = vpow.pop %v2314
    %v2316 = vmul.f32 %v2310, 1.442695
    %v2317 = vpow.pop %v2316
    %v2318 = vmul.f32 %v2311, 1.442695
    %v2319 = vpow.pop %v2318
    %v2320 = vsel %vm214, %v2313, 0.0
    %2321 = vadd.xlane.f32.xlu0 %v2320
    %v2322 = vpop.xlane.xlu0 %2321
    %v2323 = vsel %vm214, %v2315, 0.0
    %2324 = vadd.xlane.f32.xlu0 %v2323
    %v2325 = vpop.xlane.xlu0 %2324
    %v2326 = vsel %vm214, %v2317, 0.0
    %2327 = vadd.xlane.f32.xlu0 %v2326
    %v2328 = vpop.xlane.xlu0 %2327
    %v2329 = vsel %vm214, %v2319, 0.0
    %2330 = vadd.xlane.f32.xlu0 %v2329
    %v2331 = vpop.xlane.xlu0 %2330
    %v2332 = vrcp.pop %v2322
    %v2333 = vrcp.pop %v2325
    %v2334 = vrcp.pop %v2328
    %v2335 = vrcp.pop %v2331
    %v2336 = vmul.f32 %v2313, %v2332
    %v2337 = vmul.f32 %v2315, %v2333
    %v2338 = vmul.f32 %v2317, %v2334
    %v2339 = vmul.f32 %v2319, %v2335
    %v2340 = vpack.c.bf16 %v2337, %v2336
    %v2341 = vpack.c.bf16 %v2339, %v2338
    %2342 = vrot.lane.b32.xlu0 %v1703, 104
    %v2343 = vpop.permute.xlu0 %2342
    %2344 = vrot.lane.b32.xlu0 %v1704, 104
    %v2345 = vpop.permute.xlu0 %2344
    %v2349 = vsel %vm214, %v2340, 0
    %v2352 = vsel %vm214, %v2341, 0
    %2354 = vmatprep.subr.bf16.mxu0 0
    %2355 = vmatpush1.bf16.msra.mxu0 %v2343
    %2356 = vmatprep.subr.bf16.mxu0 0
    %2357 = vmatpush1.bf16.msra.mxu0 %v2345
    %2358 = vmatprep.subr.bf16.mxu0 0
    %2359 = vmatpush1.bf16.msra.mxu0 0
    %2360 = vmatprep.subr.bf16.mxu0 0
    %2361 = vmatpush1.bf16.msra.mxu0 0
    %2362 = vmatprep.subr.bf16.mxu0 0
    %2363 = vmatpush1.bf16.msra.mxu0 0
    %2364 = vmatprep.subr.bf16.mxu0 0
    %2365 = vmatpush1.bf16.msra.mxu0 0
    %2366 = vmatprep.subr.bf16.mxu0 0
    %2367 = vmatpush1.bf16.msra.mxu0 0
    %2368 = vmatprep.subr.bf16.mxu0 0
    %2369 = vmatpush1.bf16.msra.mxu0 0
    %2370 = vmatprep.subr.bf16.mxu0 0
    %2371 = vmatpush1.bf16.msra.mxu0 0
    %2372 = vmatprep.subr.bf16.mxu0 0
    %2373 = vmatpush1.bf16.msra.mxu0 0
    %2374 = vmatprep.subr.bf16.mxu0 0
    %2375 = vmatpush1.bf16.msra.mxu0 0
    %2376 = vmatprep.subr.bf16.mxu0 0
    %2377 = vmatpush1.bf16.msra.mxu0 0
    %2378 = vmatprep.subr.bf16.mxu0 0
    %2379 = vmatpush1.bf16.msra.mxu0 0
    %2380 = vmatprep.subr.bf16.mxu0 0
    %2381 = vmatpush1.bf16.msra.mxu0 0
    %2382 = vmatprep.subr.bf16.mxu0 0
    %2383 = vmatpush1.bf16.msra.mxu0 0
    %2384 = vmatprep.subr.bf16.mxu0 0
    %2385 = vmatpush1.bf16.msra.mxu0 0
    %2386 = vmatprep.mubr.bf16.mxu0 0
    %2387 = vmatmul.mubr.bf16.gmra.mrb[0].mxu0 %v2349
    %v2388 = vpop.f32.mrb[0].mxu0
    %v2389 = vadd.f32 0.0, %v2388
    %v2390 = vpop.f32.mrb[0].mxu0
    %v2391 = vpop.f32.mrb[0].mxu0
    %v2392 = vadd.f32 0.0, %v2391
    %v2393 = vpop.f32.mrb[0].mxu0
    %2394 = vmatprep.mubr.bf16.mxu0 0
    %2395 = vmatmul.mubr.bf16.gmra.mrb[0].mxu0 %v2352
    %v2396 = vpop.f32.mrb[0].mxu0
    %v2397 = vadd.f32 0.0, %v2396
    %v2398 = vpop.f32.mrb[0].mxu0
    %v2399 = vpop.f32.mrb[0].mxu0
    %v2400 = vadd.f32 0.0, %v2399
    %v2401 = vpop.f32.mrb[0].mxu0
    %2402 = vdwg.mxu0
    %2407 = vrot.lane.b32.xlu0 %v2037, 8
    %v2408 = vpop.permute.xlu0 %2407
    %2409 = vrot.lane.b32.xlu0 %v2040, 8
    %v2410 = vpop.permute.xlu0 %2409
    %2411 = vrot.lane.b32.xlu0 %v2045, 8
    %v2412 = vpop.permute.xlu0 %2411
    %2413 = vrot.lane.b32.xlu0 %v2048, 8
    %v2414 = vpop.permute.xlu0 %2413
    %2423 = vrot.lane.b32.xlu0 %v2213, 16
    %v2424 = vpop.permute.xlu0 %2423
    %2425 = vrot.lane.b32.xlu0 %v2216, 16
    %v2426 = vpop.permute.xlu0 %2425
    %2427 = vrot.lane.b32.xlu0 %v2221, 16
    %v2428 = vpop.permute.xlu0 %2427
    %2429 = vrot.lane.b32.xlu0 %v2224, 16
    %v2430 = vpop.permute.xlu0 %2429
    %2439 = vrot.lane.b32.xlu0 %v2389, 24
    %v2440 = vpop.permute.xlu0 %2439
    %2441 = vrot.lane.b32.xlu0 %v2392, 24
    %v2442 = vpop.permute.xlu0 %2441
    %2443 = vrot.lane.b32.xlu0 %v2397, 24
    %v2444 = vpop.permute.xlu0 %2443
    %2445 = vrot.lane.b32.xlu0 %v2400, 24
    %v2446 = vpop.permute.xlu0 %2445
    %v2451 = vsel %vm360, %v1859, %v2408
    %v2452 = vsel %vm360, %v1862, %v2410
    %v2453 = vsel %vm360, %v1867, %v2412
    %v2454 = vsel %vm360, %v1870, %v2414
    %v2455 = vsel %vm1105, %v2451, %v2424
    %v2456 = vsel %vm1105, %v2452, %v2426
    %v2457 = vsel %vm1105, %v2453, %v2428
    %v2458 = vsel %vm1105, %v2454, %v2430
    %v2459 = vsel %vm1110, %v2455, %v2440
    %v2460 = vsel %vm1110, %v2456, %v2442
    %v2461 = vsel %vm1110, %v2457, %v2444
    %v2462 = vsel %vm1110, %v2458, %v2446
    %v2463 = vpack.c.bf16 %v2460, %v2459
    %v2464 = vpack.c.bf16 %v2462, %v2461
    %s2465 = scalar_lea.vmem [#allocation5], 16
    %v2466 = vld [vmem:[%s2465] sm:$0xf]
    %v2467 = vld [vmem:[%s2465 + $0x4] sm:$0xf]
    %v2468 = vld [vmem:[%s2465 + $0x8] sm:$0xf]
    %v2469 = vld [vmem:[%s2465 + $0xc] sm:$0xf]
    %s2470 = scalar_lea.vmem %s7, 1
    %v2471 = vld [vmem:[%s2470] sm:$0x1]
    %v2473 = vlaneseq
    %v2474 = vshrl.u32 %v2473, 7
    %v2475 = vsub.s32 0, %v2474
    %v2476 = vrot.slane %v2471, %v2475
    %v2482 = vunpack.c.l.b16 %v2466
    %v2483 = vunpack.c.l.b16 %v2467
    %v2484 = vunpack.c.l.b16 %v2468
    %v2485 = vunpack.c.l.b16 %v2469
    %v2486 = vpack.c.b16 %v2483, %v2482
    %v2487 = vpack.c.b16 %v2485, %v2484
    %v2491 = vsel %vm214, %v2463, 0
    %v2494 = vsel %vm214, %v2464, 0
    %2496 = vmatprep.subr.bf16.mxu0 0
    %2497 = vmatpush1.bf16.msra.mxu0 %v2486
    %2498 = vmatprep.subr.bf16.mxu0 0
    %2499 = vmatpush1.bf16.msra.mxu0 %v2487
    %2500 = vmatprep.subr.bf16.mxu0 0
    %2501 = vmatpush1.bf16.msra.mxu0 0
    %2502 = vmatprep.subr.bf16.mxu0 0
    %2503 = vmatpush1.bf16.msra.mxu0 0
    %2504 = vmatprep.subr.bf16.mxu0 0
    %2505 = vmatpush1.bf16.msra.mxu0 0
    %2506 = vmatprep.subr.bf16.mxu0 0
    %2507 = vmatpush1.bf16.msra.mxu0 0
    %2508 = vmatprep.subr.bf16.mxu0 0
    %2509 = vmatpush1.bf16.msra.mxu0 0
    %2510 = vmatprep.subr.bf16.mxu0 0
    %2511 = vmatpush1.bf16.msra.mxu0 0
    %2512 = vmatprep.subr.bf16.mxu0 0
    %2513 = vmatpush1.bf16.msra.mxu0 0
    %2514 = vmatprep.subr.bf16.mxu0 0
    %2515 = vmatpush1.bf16.msra.mxu0 0
    %2516 = vmatprep.subr.bf16.mxu0 0
    %2517 = vmatpush1.bf16.msra.mxu0 0
    %2518 = vmatprep.subr.bf16.mxu0 0
    %2519 = vmatpush1.bf16.msra.mxu0 0
    %2520 = vmatprep.subr.bf16.mxu0 0
    %2521 = vmatpush1.bf16.msra.mxu0 0
    %2522 = vmatprep.subr.bf16.mxu0 0
    %2523 = vmatpush1.bf16.msra.mxu0 0
    %2524 = vmatprep.subr.bf16.mxu0 0
    %2525 = vmatpush1.bf16.msra.mxu0 0
    %2526 = vmatprep.subr.bf16.mxu0 0
    %2527 = vmatpush1.bf16.msra.mxu0 0
    %2528 = vmatprep.mubr.bf16.mxu0 0
    %2529 = vmatmul.mubr.bf16.gmra.mrb[0].mxu0 %v2491
    %v2530 = vpop.f32.mrb[0].mxu0
    %v2531 = vadd.f32 %v2476, %v2530
    %v2532 = vpop.f32.mrb[0].mxu0
    %v2533 = vpop.f32.mrb[0].mxu0
    %v2534 = vadd.f32 %v2476, %v2533
    %v2535 = vpop.f32.mrb[0].mxu0
    %2536 = vmatprep.mubr.bf16.mxu0 0
    %2537 = vmatmul.mubr.bf16.gmra.mrb[0].mxu0 %v2494
    %v2538 = vpop.f32.mrb[0].mxu0
    %v2539 = vadd.f32 %v2476, %v2538
    %v2540 = vpop.f32.mrb[0].mxu0
    %v2541 = vpop.f32.mrb[0].mxu0
    %v2542 = vadd.f32 %v2476, %v2541
    %v2543 = vpop.f32.mrb[0].mxu0
    %2544 = vdwg.mxu0
    %v2545 = vadd.f32 %v1529, %v2531
    %v2546 = vadd.f32 %v1530, %v2534
    %v2547 = vadd.f32 %v1531, %v2539
    %v2548 = vadd.f32 %v1532, %v2542
    %s2549 = scalar_lea.vmem %s8, 1
    %v2550 = vld [vmem:[%s2549] sm:$0x1]
    %s2551 = scalar_lea.vmem %s9, 1
    %v2552 = vld [vmem:[%s2551] sm:$0x1]
    %v2553 = vsel %vm214, %v2545, 0.0
    %2554 = vadd.xlane.f32.xlu0 %v2553
    %v2555 = vpop.xlane.xlu0 %2554
    %v2556 = vsel %vm214, %v2546, 0.0
    %2557 = vadd.xlane.f32.xlu0 %v2556
    %v2558 = vpop.xlane.xlu0 %2557
    %v2559 = vsel %vm214, %v2547, 0.0
    %2560 = vadd.xlane.f32.xlu0 %v2559
    %v2561 = vpop.xlane.xlu0 %2560
    %v2562 = vsel %vm214, %v2548, 0.0
    %2563 = vadd.xlane.f32.xlu0 %v2562
    %v2564 = vpop.xlane.xlu0 %2563
    %v2565 = vmul.f32 %v2555, %v1213
    %v2566 = vmul.f32 %v2558, %v1213
    %v2567 = vmul.f32 %v2561, %v1213
    %v2568 = vmul.f32 %v2564, %v1213
    %v2569 = vsub.f32 %v2545, %v2565
    %v2570 = vsub.f32 %v2546, %v2566
    %v2571 = vsub.f32 %v2547, %v2567
    %v2572 = vsub.f32 %v2548, %v2568
    %v2573 = vmul.f32 %v2569, %v2569
    %v2574 = vmul.f32 %v2570, %v2570
    %v2575 = vmul.f32 %v2571, %v2571
    %v2576 = vmul.f32 %v2572, %v2572
    %v2577 = vsel %vm214, %v2573, 0.0
    %2578 = vadd.xlane.f32.xlu0 %v2577
    %v2579 = vpop.xlane.xlu0 %2578
    %v2580 = vsel %vm214, %v2574, 0.0
    %2581 = vadd.xlane.f32.xlu0 %v2580
    %v2582 = vpop.xlane.xlu0 %2581
    %v2583 = vsel %vm214, %v2575, 0.0
    %2584 = vadd.xlane.f32.xlu0 %v2583
    %v2585 = vpop.xlane.xlu0 %2584
    %v2586 = vsel %vm214, %v2576, 0.0
    %2587 = vadd.xlane.f32.xlu0 %v2586
    %v2588 = vpop.xlane.xlu0 %2587
    %v2589 = vmul.f32 %v2579, %v1213
    %v2590 = vmul.f32 %v2582, %v1213
    %v2591 = vmul.f32 %v2585, %v1213
    %v2592 = vmul.f32 %v2588, %v1213
    %v2593 = vadd.f32 %v2589, 1e-05
    %v2594 = vadd.f32 %v2590, 1e-05
    %v2595 = vadd.f32 %v2591, 1e-05
    %v2596 = vadd.f32 %v2592, 1e-05
    %v2597 = vrsqrt.pop %v2593
    %v2598 = vrsqrt.pop %v2594
    %v2599 = vrsqrt.pop %v2595
    %v2600 = vrsqrt.pop %v2596
    %v2601 = vmul.f32 %v2569, %v2597
    %v2602 = vmul.f32 %v2570, %v2598
    %v2603 = vmul.f32 %v2571, %v2599
    %v2604 = vmul.f32 %v2572, %v2600
    %v2606 = vlaneseq
    %v2607 = vshrl.u32 %v2606, 7
    %v2608 = vsub.s32 0, %v2607
    %v2609 = vrot.slane %v2550, %v2608
    %v2611 = vmul.f32 %v2601, %v2609
    %v2612 = vmul.f32 %v2602, %v2609
    %v2613 = vmul.f32 %v2603, %v2609
    %v2614 = vmul.f32 %v2604, %v2609
    %v2616 = vlaneseq
    %v2617 = vshrl.u32 %v2616, 7
    %v2618 = vsub.s32 0, %v2617
    %v2619 = vrot.slane %v2552, %v2618
    %v2621 = vadd.f32 %v2611, %v2619
    %v2622 = vadd.f32 %v2612, %v2619
    %v2623 = vadd.f32 %v2613, %v2619
    %v2624 = vadd.f32 %v2614, %v2619
    %v2625 = vpack.c.bf16 %v2622, %v2621
    %v2626 = vpack.c.bf16 %v2624, %v2623
    %s2627 = scalar_lea.vmem [#allocation7], 16
    %v2628 = vld [vmem:[%s2627] sm:$0xf]
    %v2629 = vld [vmem:[%s2627 + $0x4] sm:$0xf]
    %v2630 = vld [vmem:[%s2627 + $0x8] sm:$0xf]
    %v2631 = vld [vmem:[%s2627 + $0xc] sm:$0xf]
    %s2632 = scalar_lea.vmem %s11, 1
    %v2633 = vld [vmem:[%s2632] sm:$0x1]
    %v2635 = vlaneseq
    %v2636 = vshrl.u32 %v2635, 7
    %v2637 = vsub.s32 0, %v2636
    %v2638 = vrot.slane %v2633, %v2637
    %v2644 = vunpack.c.l.b16 %v2628
    %v2645 = vunpack.c.l.b16 %v2629
    %v2646 = vunpack.c.l.b16 %v2630
    %v2647 = vunpack.c.l.b16 %v2631
    %v2648 = vpack.c.b16 %v2645, %v2644
    %v2649 = vpack.c.b16 %v2647, %v2646
    %v2653 = vsel %vm214, %v2625, 0
    %v2656 = vsel %vm214, %v2626, 0
    %2658 = vmatprep.subr.bf16.mxu0 0
    %2659 = vmatpush1.bf16.msra.mxu0 %v2648
    %2660 = vmatprep.subr.bf16.mxu0 0
    %2661 = vmatpush1.bf16.msra.mxu0 %v2649
    %2662 = vmatprep.subr.bf16.mxu0 0
    %2663 = vmatpush1.bf16.msra.mxu0 0
    %2664 = vmatprep.subr.bf16.mxu0 0
    %2665 = vmatpush1.bf16.msra.mxu0 0
    %2666 = vmatprep.subr.bf16.mxu0 0
    %2667 = vmatpush1.bf16.msra.mxu0 0
    %2668 = vmatprep.subr.bf16.mxu0 0
    %2669 = vmatpush1.bf16.msra.mxu0 0
    %2670 = vmatprep.subr.bf16.mxu0 0
    %2671 = vmatpush1.bf16.msra.mxu0 0
    %2672 = vmatprep.subr.bf16.mxu0 0
    %2673 = vmatpush1.bf16.msra.mxu0 0
    %2674 = vmatprep.subr.bf16.mxu0 0
    %2675 = vmatpush1.bf16.msra.mxu0 0
    %2676 = vmatprep.subr.bf16.mxu0 0
    %2677 = vmatpush1.bf16.msra.mxu0 0
    %2678 = vmatprep.subr.bf16.mxu0 0
    %2679 = vmatpush1.bf16.msra.mxu0 0
    %2680 = vmatprep.subr.bf16.mxu0 0
    %2681 = vmatpush1.bf16.msra.mxu0 0
    %2682 = vmatprep.subr.bf16.mxu0 0
    %2683 = vmatpush1.bf16.msra.mxu0 0
    %2684 = vmatprep.subr.bf16.mxu0 0
    %2685 = vmatpush1.bf16.msra.mxu0 0
    %2686 = vmatprep.subr.bf16.mxu0 0
    %2687 = vmatpush1.bf16.msra.mxu0 0
    %2688 = vmatprep.subr.bf16.mxu0 0
    %2689 = vmatpush1.bf16.msra.mxu0 0
    %2690 = vmatprep.mubr.bf16.mxu0 0
    %2691 = vmatmul.mubr.bf16.gmra.mrb[0].mxu0 %v2653
    %v2692 = vpop.f32.mrb[0].mxu0
    %v2693 = vadd.f32 %v2638, %v2692
    %v2694 = vpop.f32.mrb[0].mxu0
    %v2695 = vpop.f32.mrb[0].mxu0
    %v2696 = vadd.f32 %v2638, %v2695
    %v2697 = vpop.f32.mrb[0].mxu0
    %2698 = vmatprep.mubr.bf16.mxu0 0
    %2699 = vmatmul.mubr.bf16.gmra.mrb[0].mxu0 %v2656
    %v2700 = vpop.f32.mrb[0].mxu0
    %v2701 = vadd.f32 %v2638, %v2700
    %v2702 = vpop.f32.mrb[0].mxu0
    %v2703 = vpop.f32.mrb[0].mxu0
    %v2704 = vadd.f32 %v2638, %v2703
    %v2705 = vpop.f32.mrb[0].mxu0
    %2706 = vdwg.mxu0
    %v2707 = vmax.f32 %v2693, 0.0
    %v2708 = vmax.f32 %v2696, 0.0
    %v2709 = vmax.f32 %v2701, 0.0
    %v2710 = vmax.f32 %v2704, 0.0
    %v2711 = vpack.c.bf16 %v2708, %v2707
    %v2712 = vpack.c.bf16 %v2710, %v2709
    %s2713 = scalar_lea.vmem %s12, 32
    %v2714 = vld [vmem:[%s2713] sm:$0xf]
    %v2715 = vld [vmem:[%s2713 + $0x4] sm:$0xf]
    %v2716 = vld [vmem:[%s2713 + $0x8] sm:$0xf]
    %v2717 = vld [vmem:[%s2713 + $0xc] sm:$0xf]
    %v2718 = vld [vmem:[%s2713 + $0x10] sm:$0xf]
    %v2719 = vld [vmem:[%s2713 + $0x14] sm:$0xf]
    %v2720 = vld [vmem:[%s2713 + $0x18] sm:$0xf]
    %v2721 = vld [vmem:[%s2713 + $0x1c] sm:$0xf]
    %s2722 = scalar_lea.vmem %s13, 1
    %v2723 = vld [vmem:[%s2722] sm:$0x1]
    %v2725 = vlaneseq
    %v2726 = vshrl.u32 %v2725, 7
    %v2727 = vsub.s32 0, %v2726
    %v2728 = vrot.slane %v2723, %v2727
    %v2738 = vunpack.c.l.b16 %v2714
    %v2739 = vunpack.c.l.b16 %v2715
    %v2740 = vunpack.c.l.b16 %v2716
    %v2741 = vunpack.c.l.b16 %v2717
    %v2742 = vunpack.c.l.b16 %v2718
    %v2743 = vunpack.c.l.b16 %v2719
    %v2744 = vunpack.c.l.b16 %v2720
    %v2745 = vunpack.c.l.b16 %v2721
    %v2746 = vpack.c.b16 %v2739, %v2738
    %v2747 = vpack.c.b16 %v2741, %v2740
    %v2748 = vpack.c.b16 %v2743, %v2742
    %v2749 = vpack.c.b16 %v2745, %v2744
    %v2755 = vsel %vm1399, %v2711, 0
    %v2758 = vsel %vm1399, %v2712, 0
    %2760 = vmatprep.subr.bf16.mxu0 0
    %2761 = vmatpush1.bf16.msra.mxu0 %v2746
    %2762 = vmatprep.subr.bf16.mxu0 0
    %2763 = vmatpush1.bf16.msra.mxu0 %v2747
    %2764 = vmatprep.subr.bf16.mxu0 0
    %2765 = vmatpush1.bf16.msra.mxu0 %v2748
    %2766 = vmatprep.subr.bf16.mxu0 0
    %2767 = vmatpush1.bf16.msra.mxu0 %v2749
    %2768 = vmatprep.subr.bf16.mxu0 0
    %2769 = vmatpush1.bf16.msra.mxu0 0
    %2770 = vmatprep.subr.bf16.mxu0 0
    %2771 = vmatpush1.bf16.msra.mxu0 0
    %2772 = vmatprep.subr.bf16.mxu0 0
    %2773 = vmatpush1.bf16.msra.mxu0 0
    %2774 = vmatprep.subr.bf16.mxu0 0
    %2775 = vmatpush1.bf16.msra.mxu0 0
    %2776 = vmatprep.subr.bf16.mxu0 0
    %2777 = vmatpush1.bf16.msra.mxu0 0
    %2778 = vmatprep.subr.bf16.mxu0 0
    %2779 = vmatpush1.bf16.msra.mxu0 0
    %2780 = vmatprep.subr.bf16.mxu0 0
    %2781 = vmatpush1.bf16.msra.mxu0 0
    %2782 = vmatprep.subr.bf16.mxu0 0
    %2783 = vmatpush1.bf16.msra.mxu0 0
    %2784 = vmatprep.subr.bf16.mxu0 0
    %2785 = vmatpush1.bf16.msra.mxu0 0
    %2786 = vmatprep.subr.bf16.mxu0 0
    %2787 = vmatpush1.bf16.msra.mxu0 0
    %2788 = vmatprep.subr.bf16.mxu0 0
    %2789 = vmatpush1.bf16.msra.mxu0 0
    %2790 = vmatprep.subr.bf16.mxu0 0
    %2791 = vmatpush1.bf16.msra.mxu0 0
    %2792 = vmatprep.mubr.bf16.mxu0 0
    %2793 = vmatmul.mubr.bf16.gmra.mrb[0].mxu0 %v2755
    %v2794 = vpop.f32.mrb[0].mxu0
    %v2795 = vadd.f32 %v2728, %v2794
    %v2796 = vpop.f32.mrb[0].mxu0
    %v2797 = vpop.f32.mrb[0].mxu0
    %v2798 = vadd.f32 %v2728, %v2797
    %v2799 = vpop.f32.mrb[0].mxu0
    %2800 = vmatprep.mubr.bf16.mxu0 0
    %2801 = vmatmul.mubr.bf16.gmra.mrb[0].mxu0 %v2758
    %v2802 = vpop.f32.mrb[0].mxu0
    %v2803 = vadd.f32 %v2728, %v2802
    %v2804 = vpop.f32.mrb[0].mxu0
    %v2805 = vpop.f32.mrb[0].mxu0
    %v2806 = vadd.f32 %v2728, %v2805
    %v2807 = vpop.f32.mrb[0].mxu0
    %2808 = vdwg.mxu0
    %v2809 = vadd.f32 %v2621, %v2795
    %v2810 = vadd.f32 %v2622, %v2798
    %v2811 = vadd.f32 %v2623, %v2803
    %v2812 = vadd.f32 %v2624, %v2806
    %s2813 = scalar_lea.vmem %s14, 1
    %v2814 = vld [vmem:[%s2813] sm:$0x1]
    %s2815 = scalar_lea.vmem %s15, 1
    %v2816 = vld [vmem:[%s2815] sm:$0x1]
    %v2817 = vsel %vm214, %v2809, 0.0
    %2818 = vadd.xlane.f32.xlu0 %v2817
    %v2819 = vpop.xlane.xlu0 %2818
    %v2820 = vsel %vm214, %v2810, 0.0
    %2821 = vadd.xlane.f32.xlu0 %v2820
    %v2822 = vpop.xlane.xlu0 %2821
    %v2823 = vsel %vm214, %v2811, 0.0
    %2824 = vadd.xlane.f32.xlu0 %v2823
    %v2825 = vpop.xlane.xlu0 %2824
    %v2826 = vsel %vm214, %v2812, 0.0
    %2827 = vadd.xlane.f32.xlu0 %v2826
    %v2828 = vpop.xlane.xlu0 %2827
    %v2829 = vmul.f32 %v2819, %v1213
    %v2830 = vmul.f32 %v2822, %v1213
    %v2831 = vmul.f32 %v2825, %v1213
    %v2832 = vmul.f32 %v2828, %v1213
    %v2833 = vsub.f32 %v2809, %v2829
    %v2834 = vsub.f32 %v2810, %v2830
    %v2835 = vsub.f32 %v2811, %v2831
    %v2836 = vsub.f32 %v2812, %v2832
    %v2837 = vmul.f32 %v2833, %v2833
    %v2838 = vmul.f32 %v2834, %v2834
    %v2839 = vmul.f32 %v2835, %v2835
    %v2840 = vmul.f32 %v2836, %v2836
    %v2841 = vsel %vm214, %v2837, 0.0
    %2842 = vadd.xlane.f32.xlu0 %v2841
    %v2843 = vpop.xlane.xlu0 %2842
    %v2844 = vsel %vm214, %v2838, 0.0
    %2845 = vadd.xlane.f32.xlu0 %v2844
    %v2846 = vpop.xlane.xlu0 %2845
    %v2847 = vsel %vm214, %v2839, 0.0
    %2848 = vadd.xlane.f32.xlu0 %v2847
    %v2849 = vpop.xlane.xlu0 %2848
    %v2850 = vsel %vm214, %v2840, 0.0
    %2851 = vadd.xlane.f32.xlu0 %v2850
    %v2852 = vpop.xlane.xlu0 %2851
    %v2853 = vmul.f32 %v2843, %v1213
    %v2854 = vmul.f32 %v2846, %v1213
    %v2855 = vmul.f32 %v2849, %v1213
    %v2856 = vmul.f32 %v2852, %v1213
    %v2857 = vadd.f32 %v2853, 1e-05
    %v2858 = vadd.f32 %v2854, 1e-05
    %v2859 = vadd.f32 %v2855, 1e-05
    %v2860 = vadd.f32 %v2856, 1e-05
    %v2861 = vrsqrt.pop %v2857
    %v2862 = vrsqrt.pop %v2858
    %v2863 = vrsqrt.pop %v2859
    %v2864 = vrsqrt.pop %v2860
    %v2865 = vmul.f32 %v2833, %v2861
    %v2866 = vmul.f32 %v2834, %v2862
    %v2867 = vmul.f32 %v2835, %v2863
    %v2868 = vmul.f32 %v2836, %v2864
    %v2870 = vlaneseq
    %v2871 = vshrl.u32 %v2870, 7
    %v2872 = vsub.s32 0, %v2871
    %v2873 = vrot.slane %v2814, %v2872
    %v2875 = vmul.f32 %v2865, %v2873
    %v2876 = vmul.f32 %v2866, %v2873
    %v2877 = vmul.f32 %v2867, %v2873
    %v2878 = vmul.f32 %v2868, %v2873
    %v2880 = vlaneseq
    %v2881 = vshrl.u32 %v2880, 7
    %v2882 = vsub.s32 0, %v2881
    %v2883 = vrot.slane %v2816, %v2882
    %v2885 = vadd.f32 %v2875, %v2883
    %v2886 = vadd.f32 %v2876, %v2883
    %v2887 = vadd.f32 %v2877, %v2883
    %v2888 = vadd.f32 %v2878, %v2883
    %v2889 = vld [vmem:[%s16] sm:$0x1]
    %v2890 = vld [vmem:[%s17] sm:$0x1]
    %v2891 = vsel %vm214, %v2885, 0.0
    %2892 = vadd.xlane.f32.xlu0 %v2891
    %v2893 = vpop.xlane.xlu0 %2892
    %v2894 = vsel %vm214, %v2886, 0.0
    %2895 = vadd.xlane.f32.xlu0 %v2894
    %v2896 = vpop.xlane.xlu0 %2895
    %v2897 = vsel %vm214, %v2887, 0.0
    %2898 = vadd.xlane.f32.xlu0 %v2897
    %v2899 = vpop.xlane.xlu0 %2898
    %v2900 = vsel %vm214, %v2888, 0.0
    %2901 = vadd.xlane.f32.xlu0 %v2900
    %v2902 = vpop.xlane.xlu0 %2901
    %v2903 = vmul.f32 %v2893, %v1213
    %v2904 = vmul.f32 %v2896, %v1213
    %v2905 = vmul.f32 %v2899, %v1213
    %v2906 = vmul.f32 %v2902, %v1213
    %v2907 = vsub.f32 %v2885, %v2903
    %v2908 = vsub.f32 %v2886, %v2904
    %v2909 = vsub.f32 %v2887, %v2905
    %v2910 = vsub.f32 %v2888, %v2906
    %v2911 = vmul.f32 %v2907, %v2907
    %v2912 = vmul.f32 %v2908, %v2908
    %v2913 = vmul.f32 %v2909, %v2909
    %v2914 = vmul.f32 %v2910, %v2910
    %v2915 = vsel %vm214, %v2911, 0.0
    %2916 = vadd.xlane.f32.xlu0 %v2915
    %v2917 = vpop.xlane.xlu0 %2916
    %v2918 = vsel %vm214, %v2912, 0.0
    %2919 = vadd.xlane.f32.xlu0 %v2918
    %v2920 = vpop.xlane.xlu0 %2919
    %v2921 = vsel %vm214, %v2913, 0.0
    %2922 = vadd.xlane.f32.xlu0 %v2921
    %v2923 = vpop.xlane.xlu0 %2922
    %v2924 = vsel %vm214, %v2914, 0.0
    %2925 = vadd.xlane.f32.xlu0 %v2924
    %v2926 = vpop.xlane.xlu0 %2925
    %v2927 = vmul.f32 %v2917, %v1213
    %v2928 = vmul.f32 %v2920, %v1213
    %v2929 = vmul.f32 %v2923, %v1213
    %v2930 = vmul.f32 %v2926, %v1213
    %v2931 = vadd.f32 %v2927, 1e-05
    %v2932 = vadd.f32 %v2928, 1e-05
    %v2933 = vadd.f32 %v2929, 1e-05
    %v2934 = vadd.f32 %v2930, 1e-05
    %v2935 = vrsqrt.pop %v2931
    %v2936 = vrsqrt.pop %v2932
    %v2937 = vrsqrt.pop %v2933
    %v2938 = vrsqrt.pop %v2934
    %v2939 = vmul.f32 %v2907, %v2935
    %v2940 = vmul.f32 %v2908, %v2936
    %v2941 = vmul.f32 %v2909, %v2937
    %v2942 = vmul.f32 %v2910, %v2938
    %v2944 = vlaneseq
    %v2945 = vshrl.u32 %v2944, 7
    %v2946 = vsub.s32 0, %v2945
    %v2947 = vrot.slane %v2889, %v2946
    %v2949 = vmul.f32 %v2939, %v2947
    %v2950 = vmul.f32 %v2940, %v2947
    %v2951 = vmul.f32 %v2941, %v2947
    %v2952 = vmul.f32 %v2942, %v2947
    %v2954 = vlaneseq
    %v2955 = vshrl.u32 %v2954, 7
    %v2956 = vsub.s32 0, %v2955
    %v2957 = vrot.slane %v2890, %v2956
    %v2959 = vadd.f32 %v2949, %v2957
    %v2960 = vadd.f32 %v2950, %v2957
    %v2961 = vadd.f32 %v2951, %v2957
    %v2962 = vadd.f32 %v2952, %v2957
    %2963 = vst.msk [vmem:[#allocation8] sm:$0xff] %vm214, %v2959
    %2964 = vst.msk [vmem:[#allocation8 + $0x8] sm:$0xff] %vm214, %v2960
    %2965 = vst.msk [vmem:[#allocation8 + $0x10] sm:$0xff] %vm214, %v2961
    %2966 = vst.msk [vmem:[#allocation8 + $0x18] sm:$0xff] %vm214, %v2962
    // Predicated region
    $region86: #{tpu_custom_call.1} parent=1 // pred_check
      _
    $region87: #{tpu_custom_call.1} parent=1 // pred_check_branch
      %2968 = sbr.rel (0) target = $region89
    $region88: #{tpu_custom_call.1} parent=1 // pred_region
      %s2970 = ssub.s32 512, 512
      %2971 = vsyncadd [#allocation4], %s2970
      %s2972 = sshll.u32 [#allocation8], 4
      %s2973 = int_to_ptr.vmem [resolvable:$true] %s2972
      %2978 = dma.vmem_to_hbm [thread:$0]  %s2973, 512, %s18, [#allocation4], 128, 128, 8
    $region89: #{tpu_custom_call.1} parent=1 // pred_fallthru
      _
    // Predicated region
    $region90: #{tpu_custom_call.1} parent=1 // pred_check
      _
    $region91: #{tpu_custom_call.1} parent=1 // pred_check_branch
      %2980 = sbr.rel (0) target = $region93
    $region92: #{tpu_custom_call.1} parent=1 // pred_region
      %2981 = dma.done [#allocation4], 512
    $region93: #{tpu_custom_call.1} parent=1 // pred_fallthru
      _
    %2982 = vsyncpa [#allocation3], 1
    %2983 = vsyncpa [#allocation6], 1
    %2984 = vsyncpa [#allocation4], 1

</llo_original>
